<compile_context>
chip_gen: v7x
topology: tpu7x:2x2x1
jax: 0.10.0
libtpu: 0.0.40
codegen_flags: <defaults>
</compile_context>

<pallas_src>
import functools

import jax
import jax.numpy as jnp
from jax.experimental import pallas as pl
from jax.experimental.pallas import tpu as pltpu

# ----------------------------- hyper-parameters -----------------------------
BETA = 2        # β
ZETA = 2        # ζ (reference default 10; kept small for the demo, ζ >= 1 holds)
KAPPA = 3       # κ (odd)
KAPPA_S = 1     # κs
KAPPA_P = KAPPA // 2
BN_EPS = 1e-3
LRELU_SLOPE = 0.1
BR3X3 = 8       # branch3x3 channels (default 64, shrunk for the demo)
BRDBL1 = 8      # branch3x3dbl_1 channels (default 32)
BRDBL2 = 8      # branch3x3dbl_2 channels (default 64)

LANE = 128
MAX_TM = 512                      # rows per M-tile (multiple of 16; VMEM-safe on v7x)
VMEM_LIMIT = 32 * 1024 * 1024     # scoped-VMEM budget valid on v5e / v6e / v7x


def _pick_tile(mg, cap=MAX_TM):
    """Largest multiple of 16 that divides mg (<= cap); else the full extent."""
    t = min(cap, (mg // 16) * 16)
    while t >= 16:
        if mg % t == 0:
            return t
        t -= 16
    return mg


# ------------------------------ Pallas kernels ------------------------------
def _matmul_stats_kernel(cols_ref, w_ref, y_ref, stats_ref):
    """Pass 1: y_tile = cols_tile @ w (bf16 operands, f32 MXU accumulation) and
    accumulate per-channel sum / sum-of-squares across the M-tile grid axis so
    the BatchNorm statistics remain global over the whole stats group."""
    y = jnp.dot(cols_ref[0], w_ref[...], preferred_element_type=jnp.float32)
    y_ref[0] = y
    ssum = jnp.sum(y, axis=0, keepdims=True)
    ssq = jnp.sum(y * y, axis=0, keepdims=True)
    upd = jnp.concatenate(
        [ssum, ssq, jnp.zeros((6, y.shape[1]), jnp.float32)], axis=0)

    @pl.when(pl.program_id(1) == 0)
    def _():
        stats_ref[0] = upd

    @pl.when(pl.program_id(1) > 0)
    def _():
        stats_ref[0] = stats_ref[0] + upd


def _bn_lrelu_kernel(y_ref, stats_ref, gamma_ref, beta_ref, out_ref, *,
                     inv_m, eps, slope):
    """Pass 2: normalize with the global per-group batch statistics, affine,
    LeakyReLU.  All epilogue math stays in f32 (no bf16 VPU ops -> v5e safe)."""
    y = y_ref[0]
    st = stats_ref[0]
    mean = st[0:1, :] * inv_m
    ex2 = st[1:2, :] * inv_m
    var = ex2 - mean * mean                      # biased variance (PyTorch BN)
    rstd = jax.lax.rsqrt(var + eps)
    yn = (y - mean) * (rstd * gamma_ref[...]) + beta_ref[...]
    out_ref[0] = jnp.where(yn >= 0.0, yn, slope * yn)


# ------------------------------ building blocks -----------------------------
def _im2col(x_nchw, k, p):
    n, c, h, w = x_nchw.shape
    ho = h + 2 * p - k + 1
    wo = w + 2 * p - k + 1
    x = jnp.transpose(x_nchw, (0, 2, 3, 1))              # NHWC (glue)
    if k == 1 and p == 0:
        cols = x.reshape(n * h * w, c)
    else:
        xp = jnp.pad(x, ((0, 0), (p, p), (p, p), (0, 0)))
        patches = [xp[:, kh:kh + ho, kw:kw + wo, :]
                   for kh in range(k) for kw in range(k)]
        cols = jnp.stack(patches, axis=3).reshape(n * ho * wo, k * k * c)
    # TODO(synk): for production shapes, build the patch columns inside the kernel
    # (shifted-window BlockSpecs over a padded NHWC block) to avoid k*k x im2col
    # HBM traffic; negligible at these demo sizes.
    return cols, ho, wo


def conv_bn_lrelu(x_nchw, prep, k, p, cout, *, per_sample_stats=False):
    """Conv2d(k, stride=1, pad=p, bias=False) + BatchNorm2d(batch stats, eps=1e-3)
    + LeakyReLU(0.1), as two tiled Pallas passes (matmul+stats, normalize)."""
    n = x_nchw.shape[0]
    cols, ho, wo = _im2col(x_nchw, k, p)
    cols = cols.astype(jnp.bfloat16)
    kdim = cols.shape[1]
    wf, gamma, beta = prep['wf'], prep['gamma'], prep['beta']
    cpad = wf.shape[1]                                   # lane-dense (multiple of 128)

    g = n if per_sample_stats else 1                     # BatchNorm statistic groups
    mg = (n * ho * wo) // g
    cols = cols.reshape(g, mg, kdim)
    tm = _pick_tile(mg)
    nmt = mg // tm

    y, stats = pl.pallas_call(
        _matmul_stats_kernel,
        grid=(g, nmt),
        in_specs=[
            pl.BlockSpec((1, tm, kdim), lambda gi, mi: (gi, mi, 0)),
            pl.BlockSpec((kdim, cpad), lambda gi, mi: (0, 0)),
        ],
        out_specs=[
            pl.BlockSpec((1, tm, cpad), lambda gi, mi: (gi, mi, 0)),
            pl.BlockSpec((1, 8, cpad), lambda gi, mi: (gi, 0, 0)),
        ],
        out_shape=[
            jax.ShapeDtypeStruct((g, mg, cpad), jnp.float32),
            jax.ShapeDtypeStruct((g, 8, cpad), jnp.float32),
        ],
        compiler_params=pltpu.CompilerParams(
            dimension_semantics=("parallel", "arbitrary"),
            vmem_limit_bytes=VMEM_LIMIT),
    )(cols, wf)

    out = pl.pallas_call(
        functools.partial(_bn_lrelu_kernel, inv_m=1.0 / mg, eps=BN_EPS,
                          slope=LRELU_SLOPE),
        grid=(g, nmt),
        in_specs=[
            pl.BlockSpec((1, tm, cpad), lambda gi, mi: (gi, mi, 0)),
            pl.BlockSpec((1, 8, cpad), lambda gi, mi: (gi, 0, 0)),
            pl.BlockSpec((1, cpad), lambda gi, mi: (0, 0)),
            pl.BlockSpec((1, cpad), lambda gi, mi: (0, 0)),
        ],
        out_specs=pl.BlockSpec((1, tm, cpad), lambda gi, mi: (gi, mi, 0)),
        out_shape=jax.ShapeDtypeStruct((g, mg, cpad), jnp.float32),
        input_output_aliases={0: 0},                     # reuse the y buffer
        compiler_params=pltpu.CompilerParams(
            dimension_semantics=("parallel", "parallel"),
            vmem_limit_bytes=VMEM_LIMIT),
    )(y, stats, gamma, beta)

    out = out.reshape(n, ho, wo, cpad)[:, :, :, :cout]
    return jnp.transpose(out, (0, 3, 1, 2))              # back to NCHW


def maxpool2d(x_nchw, k, p):
    """nn.MaxPool2d(k, stride=1, padding=p): pure elementwise VPU work, XLA fuses."""
    n, c, h, w = x_nchw.shape
    ho = h + 2 * p - k + 1
    wo = w + 2 * p - k + 1
    xp = jnp.pad(x_nchw, ((0, 0), (0, 0), (p, p), (p, p)),
                 constant_values=-jnp.inf)
    out = None
    for kh in range(k):
        for kw in range(k):
            s = xp[:, :, kh:kh + ho, kw:kw + wo]
            out = s if out is None else jnp.maximum(out, s)
    return out


def unfold_sum(x_nchw, k, p):
    """fτ = Unfold(x).permute(0,2,1).sum(dim=1).view(B, C, k, k) -- tiny reduction."""
    n, c, h, w = x_nchw.shape
    ho = h + 2 * p - k + 1
    wo = w + 2 * p - k + 1
    xp = jnp.pad(x_nchw, ((0, 0), (0, 0), (p, p), (p, p)))
    sums = [jnp.sum(xp[:, :, kh:kh + ho, kw:kw + wo], axis=(2, 3))
            for kh in range(k) for kw in range(k)]
    return jnp.stack(sums, axis=-1).reshape(n, c, k, k)


def inc_forward(prep, x, *, k, p, kout, pout, cout, per_sample_stats=False):
    """BB(T='inc') forward: 3 branches, channel concat, 1 output conv block.
    branch3x3 + branch3x3dbl_1 share the im2col input and were weight-fused."""
    bcat = conv_bn_lrelu(x, prep['b3d1'], k, p, BR3X3 + BRDBL1,
                         per_sample_stats=per_sample_stats)
    b3 = bcat[:, :BR3X3]
    d = bcat[:, BR3X3:]
    d = conv_bn_lrelu(d, prep['d2'], k, p, BRDBL2, per_sample_stats=per_sample_stats)
    d = conv_bn_lrelu(d, prep['d3'], k, p, BRDBL2, per_sample_stats=per_sample_stats)
    bp = maxpool2d(x, k, p)
    z = jnp.concatenate([b3, d, bp], axis=1)
    return conv_bn_lrelu(z, prep['inc'], kout, pout, cout,
                         per_sample_stats=per_sample_stats)


def system_forward(sysp, x):
    """System.forward (forward numerics only; gradient hooks are backward-only)."""
    b = x.shape[0]
    ftau = unfold_sum(x, KAPPA, KAPPA_P)                              # (B, d0, κ, κ)
    c = inc_forward(sysp['classifier'], ftau, k=KAPPA, p=KAPPA_P,
                    kout=KAPPA, pout=0, cout=BETA).reshape(b, BETA)
    cselect = jnp.argmax(c, axis=-1)                                  # traced, no .item()
    csum = jnp.sum(c)
    x_det = jax.lax.stop_gradient(x)

    # Evaluate every expert on the whole detached batch with PER-SAMPLE BatchNorm
    # statistics (numerically identical to the original per-sample expert calls),
    # then select per sample -- removes the host-sync Python loop of the reference.
    def run_experts(plist):
        outs = [inc_forward(pe, x_det, k=KAPPA, p=KAPPA_P, kout=1, pout=0,
                            cout=1, per_sample_stats=True) for pe in plist]
        return jnp.stack(outs, axis=0)                                # (β, B, 1, H, W)

    pew_all = run_experts(sysp['ew'])
    peb_all = run_experts(sysp['eb'])
    sel = jax.nn.one_hot(cselect, BETA, dtype=pew_all.dtype)          # (B, β)
    planes_ew = jnp.einsum('bk,kbchw->bchw', sel, pew_all) + 0.0 * csum
    planes_eb = jnp.einsum('bk,kbchw->bchw', sel, peb_all) + 0.0 * csum

    # TODO(synk): System.forward in the reference source is truncated (no return
    # statement); we adopt (fi, fip1, ci) = (x, planes_ew*x + planes_eb, c) so
    # that DT.forward's loop `fi, fip1, ci = self.dt[z](fip1)` is well defined.
    fi = x
    fip1 = planes_ew * x + planes_eb
    return fi, fip1, c


@jax.jit
def dt_forward(dt_params, f0):
    """DT.forward."""
    fip1 = f0
    fi = ci = None
    for sysp in dt_params:
        fi, fip1, ci = system_forward(sysp, fip1)
    return fi, fip1, ci


# ------------------------------ parameter init ------------------------------
def init_conv_bb(key, cin, cout, k):
    scale = 1.0 / float((k * k * cin) ** 0.5)
    w = jax.random.normal(key, (k, k, cin, cout), jnp.float32) * scale
    return {'w': w,
            'gamma': jnp.ones((cout,), jnp.float32),
            'beta': jnp.zeros((cout,), jnp.float32)}


def init_inc(key, cin, cout, kout):
    ks = jax.random.split(key, 5)
    return {'b3': init_conv_bb(ks[0], cin, BR3X3, KAPPA),
            'd1': init_conv_bb(ks[1], cin, BRDBL1, 1),
            'd2': init_conv_bb(ks[2], BRDBL1, BRDBL2, KAPPA),
            'd3': init_conv_bb(ks[3], BRDBL2, BRDBL2, KAPPA),
            'inc': init_conv_bb(ks[4], BR3X3 + BRDBL2 + cin, cout, kout)}


def init_system(key, d0):
    ks = jax.random.split(key, 2 * BETA + 1)
    return {'ew': [init_inc(ks[i], d0, 1, 1) for i in range(BETA)],
            'eb': [init_inc(ks[BETA + i], d0, 1, 1) for i in range(BETA)],
            'classifier': init_inc(ks[2 * BETA], d0, BETA, KAPPA)}


def init_dt(key, d0):
    return [init_system(k, d0) for k in jax.random.split(key, ZETA)]


# ---- prepare: reshape / pad / cast weights once, outside the jitted forward ----
def _prep_conv(w, gamma, beta):
    kh, kw, cin, cout = w.shape
    kdim = kh * kw * cin
    cpad = ((cout + LANE - 1) // LANE) * LANE            # lane-dense output width
    wf = jnp.pad(w.reshape(kdim, cout),
                 ((0, 0), (0, cpad - cout))).astype(jnp.bfloat16)
    g = jnp.pad(gamma, (0, cpad - cout)).reshape(1, cpad).astype(jnp.float32)
    b = jnp.pad(beta, (0, cpad - cout)).reshape(1, cpad).astype(jnp.float32)
    return {'wf': wf, 'gamma': g, 'beta': b}


def prep_inc(raw, k):
    # Fuse branch3x3 (kxk, pad=k//2) with branch3x3dbl_1 (1x1) by embedding the
    # 1x1 weight at the centre tap; exact because the conv uses pad = k // 2.
    w_b3 = raw['b3']['w']
    cin = w_b3.shape[2]
    w_d1 = raw['d1']['w'][0, 0]                          # (cin, BRDBL1)
    w_d1e = jnp.zeros((k, k, cin, w_d1.shape[-1]), jnp.float32)
    w_d1e = w_d1e.at[k // 2, k // 2].set(w_d1)
    w_cat = jnp.concatenate([w_b3, w_d1e], axis=-1)
    g_cat = jnp.concatenate([raw['b3']['gamma'], raw['d1']['gamma']])
    b_cat = jnp.concatenate([raw['b3']['beta'], raw['d1']['beta']])
    return {'b3d1': _prep_conv(w_cat, g_cat, b_cat),
            'd2': _prep_conv(raw['d2']['w'], raw['d2']['gamma'], raw['d2']['beta']),
            'd3': _prep_conv(raw['d3']['w'], raw['d3']['gamma'], raw['d3']['beta']),
            'inc': _prep_conv(raw['inc']['w'], raw['inc']['gamma'], raw['inc']['beta'])}


def prep_system(raw):
    return {'ew': [prep_inc(e, KAPPA) for e in raw['ew']],
            'eb': [prep_inc(e, KAPPA) for e in raw['eb']],
            'classifier': prep_inc(raw['classifier'], KAPPA)}


def prep_dt(raw):
    return [prep_system(s) for s in raw]


# ----------------------------------- main ------------------------------------
if __name__ == "__main__":
    key = jax.random.PRNGKey(0)
    k_params, k_input = jax.random.split(key)

    # Small demo shapes; 32x32 spatial so the expert convs exercise a multi-tile
    # M-grid (per-sample Mg = 1024 -> two 512-row tiles with stats accumulation).
    B, D0, H, W = 2, 4, 32, 32
    f0 = jax.random.normal(k_input, (B, D0, H, W), jnp.float32)       # NCHW input

    params = prep_dt(init_dt(k_params, D0))

    fi, fip1, ci = dt_forward(params, f0)
    jax.block_until_ready((fi, fip1, ci))

    assert fi.shape == (B, D0, H, W)
    assert fip1.shape == (B, D0, H, W)
    assert ci.shape == (B, BETA)
    assert bool(jnp.all(jnp.isfinite(fi)))
    assert bool(jnp.all(jnp.isfinite(fip1)))
    assert bool(jnp.all(jnp.isfinite(ci)))
    print("KERNEL_OK")
</pallas_src>

<mosaic_0001>
module attributes {stable_mosaic.version = 11 : i64} {
  func.func @_matmul_stats_kernel(%arg0: i32, %arg1: i32, %arg2: memref<1x512x36xbf16, #tpu.memory_space<vmem>>, %arg3: memref<36x128xbf16, #tpu.memory_space<vmem>>, %arg4: memref<1x512x128xf32, #tpu.memory_space<vmem>>, %arg5: memref<1x8x128xf32, #tpu.memory_space<vmem>>) attributes {dimension_semantics = [#tpu.dimension_semantics<parallel>, #tpu.dimension_semantics<arbitrary>], iteration_bounds = array<i64: 2, 2>, scalar_prefetch = 0 : i64, scratch_operands = 0 : i64, tpu.core_type = #tpu.core_type<tc>, window_params = [{transform_indices = @transform_0, window_bounds = array<i64: 1, 512, 36>}, {pipeline_mode = #tpu.pipeline_mode<synchronous>, transform_indices = @transform_1, window_bounds = array<i64: 36, 128>}, {transform_indices = @transform_2, window_bounds = array<i64: 1, 512, 128>}, {transform_indices = @transform_3, window_bounds = array<i64: 1, 8, 128>}]} {
    %c0 = arith.constant 0 : index
    %c0_0 = arith.constant 0 : index
    %c0_1 = arith.constant 0 : index
    %0 = vector.load %arg2[%c0, %c0_0, %c0_1] : memref<1x512x36xbf16, #tpu.memory_space<vmem>>, vector<1x512x36xbf16>
    %1 = vector.shape_cast %0 : vector<1x512x36xbf16> to vector<512x36xbf16>
    %c0_2 = arith.constant 0 : index
    %c0_3 = arith.constant 0 : index
    %2 = vector.load %arg3[%c0_2, %c0_3] : memref<36x128xbf16, #tpu.memory_space<vmem>>, vector<36x128xbf16>
    %cst = arith.constant dense<0.000000e+00> : vector<512x128xf32>
    %3 = tpu.matmul %1, %2, %cst {dimension_numbers = #tpu.dot_dimension_numbers<[1], [0], [0], [1], [0, 0, 1, 1], [], []>} : vector<512x36xbf16>, vector<36x128xbf16>, vector<512x128xf32> -> vector<512x128xf32>
    %c0_4 = arith.constant 0 : index
    %c0_5 = arith.constant 0 : index
    %c0_6 = arith.constant 0 : index
    %4 = vector.load %arg4[%c0_4, %c0_5, %c0_6] : memref<1x512x128xf32, #tpu.memory_space<vmem>>, vector<1x512x128xf32>
    %5 = vector.shape_cast %4 : vector<1x512x128xf32> to vector<512x128xf32>
    %6 = vector.shape_cast %3 : vector<512x128xf32> to vector<1x512x128xf32>
    tpu.vector_store %arg4[%c0_4, %c0_5, %c0_6], %6 {strides = array<i32>} : memref<1x512x128xf32, #tpu.memory_space<vmem>>, vector<1x512x128xf32>,
    %cst_7 = arith.constant dense<0.000000e+00> : vector<128xf32>
    %7 = vector.multi_reduction <add>, %3, %cst_7 [0] : vector<512x128xf32> to vector<128xf32>
    %8 = vector.shape_cast %7 : vector<128xf32> to vector<1x128xf32>
    %9 = arith.mulf %3, %3 : vector<512x128xf32>
    %cst_8 = arith.constant dense<0.000000e+00> : vector<128xf32>
    %10 = vector.multi_reduction <add>, %9, %cst_8 [0] : vector<512x128xf32> to vector<128xf32>
    %11 = vector.shape_cast %10 : vector<128xf32> to vector<1x128xf32>
    %cst_9 = arith.constant 0.000000e+00 : f32
    %12 = vector.broadcast %cst_9 : f32 to vector<6x128xf32>
    %13 = tpu.concatenate %8, %11, %12 in 0 : vector<1x128xf32>, vector<1x128xf32>, vector<6x128xf32> -> vector<8x128xf32>
    %c0_i32 = arith.constant 0 : i32
    %14 = arith.cmpi eq, %arg1, %c0_i32 : i32
    %15 = arith.extui %14 : i1 to i32
    %c0_i32_10 = arith.constant 0 : i32
    %16 = arith.cmpi ne, %15, %c0_i32_10 : i32
    scf.if %16 {
      %c0_13 = arith.constant 0 : index
      %c0_14 = arith.constant 0 : index
      %c0_15 = arith.constant 0 : index
      %20 = vector.load %arg5[%c0_13, %c0_14, %c0_15] : memref<1x8x128xf32, #tpu.memory_space<vmem>>, vector<1x8x128xf32>
      %21 = vector.shape_cast %20 : vector<1x8x128xf32> to vector<8x128xf32>
      %22 = vector.shape_cast %13 : vector<8x128xf32> to vector<1x8x128xf32>
      tpu.vector_store %arg5[%c0_13, %c0_14, %c0_15], %22 {strides = array<i32>} : memref<1x8x128xf32, #tpu.memory_space<vmem>>, vector<1x8x128xf32>,
    } else {
    }
    %c0_i32_11 = arith.constant 0 : i32
    %17 = arith.cmpi sgt, %arg1, %c0_i32_11 : i32
    %18 = arith.extui %17 : i1 to i32
    %c0_i32_12 = arith.constant 0 : i32
    %19 = arith.cmpi ne, %18, %c0_i32_12 : i32
    scf.if %19 {
      %c0_13 = arith.constant 0 : index
      %c0_14 = arith.constant 0 : index
      %c0_15 = arith.constant 0 : index
      %20 = vector.load %arg5[%c0_13, %c0_14, %c0_15] : memref<1x8x128xf32, #tpu.memory_space<vmem>>, vector<1x8x128xf32>
      %21 = vector.shape_cast %20 : vector<1x8x128xf32> to vector<8x128xf32>
      %22 = arith.addf %21, %13 : vector<8x128xf32>
      %c0_16 = arith.constant 0 : index
      %c0_17 = arith.constant 0 : index
      %c0_18 = arith.constant 0 : index
      %23 = vector.load %arg5[%c0_16, %c0_17, %c0_18] : memref<1x8x128xf32, #tpu.memory_space<vmem>>, vector<1x8x128xf32>
      %24 = vector.shape_cast %23 : vector<1x8x128xf32> to vector<8x128xf32>
      %25 = vector.shape_cast %22 : vector<8x128xf32> to vector<1x8x128xf32>
      tpu.vector_store %arg5[%c0_16, %c0_17, %c0_18], %25 {strides = array<i32>} : memref<1x8x128xf32, #tpu.memory_space<vmem>>, vector<1x8x128xf32>,
    } else {
    }
    return
  }
  func.func @transform_0(%arg0: i32, %arg1: i32) -> (i32, i32, i32) {
    %c0_i32 = arith.constant 0 : i32
    %c0_i32_0 = arith.constant 0 : i32
    return %arg0, %arg1, %c0_i32 : i32, i32, i32
  }
  func.func @transform_1(%arg0: i32, %arg1: i32) -> (i32, i32) {
    %c0_i32 = arith.constant 0 : i32
    %c0_i32_0 = arith.constant 0 : i32
    %c0_i32_1 = arith.constant 0 : i32
    return %c0_i32, %c0_i32_0 : i32, i32
  }
  func.func @transform_2(%arg0: i32, %arg1: i32) -> (i32, i32, i32) {
    %c0_i32 = arith.constant 0 : i32
    %c0_i32_0 = arith.constant 0 : i32
    return %arg0, %arg1, %c0_i32 : i32, i32, i32
  }
  func.func @transform_3(%arg0: i32, %arg1: i32) -> (i32, i32, i32) {
    %c0_i32 = arith.constant 0 : i32
    %c0_i32_0 = arith.constant 0 : i32
    %c0_i32_1 = arith.constant 0 : i32
    return %arg0, %c0_i32, %c0_i32_0 : i32, i32, i32
  }
}

module attributes {stable_mosaic.version = 11 : i64} {
  func.func @_bn_lrelu_kernel(%arg0: i32, %arg1: i32, %arg2: memref<1x512x128xf32, #tpu.memory_space<vmem>>, %arg3: memref<1x8x128xf32, #tpu.memory_space<vmem>>, %arg4: memref<1x128xf32, #tpu.memory_space<vmem>>, %arg5: memref<1x128xf32, #tpu.memory_space<vmem>>, %arg6: memref<1x512x128xf32, #tpu.memory_space<vmem>>) attributes {dimension_semantics = [#tpu.dimension_semantics<parallel>, #tpu.dimension_semantics<parallel>], iteration_bounds = array<i64: 2, 2>, scalar_prefetch = 0 : i64, scratch_operands = 0 : i64, tpu.core_type = #tpu.core_type<tc>, window_params = [{transform_indices = @transform_0, window_bounds = array<i64: 1, 512, 128>}, {transform_indices = @transform_1, window_bounds = array<i64: 1, 8, 128>}, {pipeline_mode = #tpu.pipeline_mode<synchronous>, transform_indices = @transform_2, window_bounds = array<i64: 1, 128>}, {pipeline_mode = #tpu.pipeline_mode<synchronous>, transform_indices = @transform_3, window_bounds = array<i64: 1, 128>}, {transform_indices = @transform_4, window_bounds = array<i64: 1, 512, 128>}]} {
    %c0 = arith.constant 0 : index
    %c0_0 = arith.constant 0 : index
    %c0_1 = arith.constant 0 : index
    %0 = vector.load %arg2[%c0, %c0_0, %c0_1] : memref<1x512x128xf32, #tpu.memory_space<vmem>>, vector<1x512x128xf32>
    %1 = vector.shape_cast %0 : vector<1x512x128xf32> to vector<512x128xf32>
    %c0_2 = arith.constant 0 : index
    %c0_3 = arith.constant 0 : index
    %c0_4 = arith.constant 0 : index
    %2 = vector.load %arg3[%c0_2, %c0_3, %c0_4] : memref<1x8x128xf32, #tpu.memory_space<vmem>>, vector<1x8x128xf32>
    %3 = vector.shape_cast %2 : vector<1x8x128xf32> to vector<8x128xf32>
    %4 = vector.extract_strided_slice %3 {offsets = [0, 0], sizes = [1, 128], strides = [1, 1]} : vector<8x128xf32> to vector<1x128xf32>
    %cst = arith.constant 9.765625E-4 : f32
    %5 = vector.broadcast %cst : f32 to vector<1x128xf32>
    %6 = arith.mulf %4, %5 : vector<1x128xf32>
    %7 = vector.extract_strided_slice %3 {offsets = [1, 0], sizes = [1, 128], strides = [1, 1]} : vector<8x128xf32> to vector<1x128xf32>
    %cst_5 = arith.constant 9.765625E-4 : f32
    %8 = vector.broadcast %cst_5 : f32 to vector<1x128xf32>
    %9 = arith.mulf %7, %8 : vector<1x128xf32>
    %10 = arith.mulf %6, %6 : vector<1x128xf32>
    %11 = arith.subf %9, %10 : vector<1x128xf32>
    %cst_6 = arith.constant 1.000000e-03 : f32
    %12 = vector.broadcast %cst_6 : f32 to vector<1x128xf32>
    %13 = arith.addf %11, %12 : vector<1x128xf32>
    %14 = math.rsqrt %13 : vector<1x128xf32>
    %15 = vector.broadcast %6 : vector<1x128xf32> to vector<512x128xf32>
    %16 = arith.subf %1, %15 : vector<512x128xf32>
    %c0_7 = arith.constant 0 : index
    %c0_8 = arith.constant 0 : index
    %17 = vector.load %arg4[%c0_7, %c0_8] : memref<1x128xf32, #tpu.memory_space<vmem>>, vector<1x128xf32>
    %18 = arith.mulf %14, %17 : vector<1x128xf32>
    %19 = vector.broadcast %18 : vector<1x128xf32> to vector<512x128xf32>
    %20 = arith.mulf %16, %19 : vector<512x128xf32>
    %c0_9 = arith.constant 0 : index
    %c0_10 = arith.constant 0 : index
    %21 = vector.load %arg5[%c0_9, %c0_10] : memref<1x128xf32, #tpu.memory_space<vmem>>, vector<1x128xf32>
    %22 = vector.broadcast %21 : vector<1x128xf32> to vector<512x128xf32>
    %23 = arith.addf %20, %22 : vector<512x128xf32>
    %cst_11 = arith.constant 0.000000e+00 : f32
    %24 = vector.broadcast %cst_11 : f32 to vector<512x128xf32>
    %25 = arith.cmpf oge, %23, %24 : vector<512x128xf32>
    %cst_12 = arith.constant 1.000000e-01 : f32
    %26 = vector.broadcast %cst_12 : f32 to vector<512x128xf32>
    %27 = arith.mulf %26, %23 : vector<512x128xf32>
    %28 = arith.select %25, %23, %27 : vector<512x128xi1>, vector<512x128xf32>
    %c0_13 = arith.constant 0 : index
    %c0_14 = arith.constant 0 : index
    %c0_15 = arith.constant 0 : index
    %29 = vector.load %arg6[%c0_13, %c0_14, %c0_15] : memref<1x512x128xf32, #tpu.memory_space<vmem>>, vector<1x512x128xf32>
    %30 = vector.shape_cast %29 : vector<1x512x128xf32> to vector<512x128xf32>
    %31 = vector.shape_cast %28 : vector<512x128xf32> to vector<1x512x128xf32>
    tpu.vector_store %arg6[%c0_13, %c0_14, %c0_15], %31 {strides = array<i32>} : memref<1x512x128xf32, #tpu.memory_space<vmem>>, vector<1x512x128xf32>,
    return
  }
  func.func @transform_0(%arg0: i32, %arg1: i32) -> (i32, i32, i32) {
    %c0_i32 = arith.constant 0 : i32
    %c0_i32_0 = arith.constant 0 : i32
    return %arg0, %arg1, %c0_i32 : i32, i32, i32
  }
  func.func @transform_1(%arg0: i32, %arg1: i32) -> (i32, i32, i32) {
    %c0_i32 = arith.constant 0 : i32
    %c0_i32_0 = arith.constant 0 : i32
    %c0_i32_1 = arith.constant 0 : i32
    return %arg0, %c0_i32, %c0_i32_0 : i32, i32, i32
  }
  func.func @transform_2(%arg0: i32, %arg1: i32) -> (i32, i32) {
    %c0_i32 = arith.constant 0 : i32
    %c0_i32_0 = arith.constant 0 : i32
    %c0_i32_1 = arith.constant 0 : i32
    return %c0_i32, %c0_i32_0 : i32, i32
  }
  func.func @transform_3(%arg0: i32, %arg1: i32) -> (i32, i32) {
    %c0_i32 = arith.constant 0 : i32
    %c0_i32_0 = arith.constant 0 : i32
    %c0_i32_1 = arith.constant 0 : i32
    return %c0_i32, %c0_i32_0 : i32, i32
  }
  func.func @transform_4(%arg0: i32, %arg1: i32) -> (i32, i32, i32) {
    %c0_i32 = arith.constant 0 : i32
    %c0_i32_0 = arith.constant 0 : i32
    return %arg0, %arg1, %c0_i32 : i32, i32, i32
  }
}

module attributes {stable_mosaic.version = 11 : i64} {
  func.func @_matmul_stats_kernel(%arg0: i32, %arg1: i32, %arg2: memref<1x512x72xbf16, #tpu.memory_space<vmem>>, %arg3: memref<72x128xbf16, #tpu.memory_space<vmem>>, %arg4: memref<1x512x128xf32, #tpu.memory_space<vmem>>, %arg5: memref<1x8x128xf32, #tpu.memory_space<vmem>>) attributes {dimension_semantics = [#tpu.dimension_semantics<parallel>, #tpu.dimension_semantics<arbitrary>], iteration_bounds = array<i64: 2, 2>, scalar_prefetch = 0 : i64, scratch_operands = 0 : i64, tpu.core_type = #tpu.core_type<tc>, window_params = [{transform_indices = @transform_0, window_bounds = array<i64: 1, 512, 72>}, {pipeline_mode = #tpu.pipeline_mode<synchronous>, transform_indices = @transform_1, window_bounds = array<i64: 72, 128>}, {transform_indices = @transform_2, window_bounds = array<i64: 1, 512, 128>}, {transform_indices = @transform_3, window_bounds = array<i64: 1, 8, 128>}]} {
    %c0 = arith.constant 0 : index
    %c0_0 = arith.constant 0 : index
    %c0_1 = arith.constant 0 : index
    %0 = vector.load %arg2[%c0, %c0_0, %c0_1] : memref<1x512x72xbf16, #tpu.memory_space<vmem>>, vector<1x512x72xbf16>
    %1 = vector.shape_cast %0 : vector<1x512x72xbf16> to vector<512x72xbf16>
    %c0_2 = arith.constant 0 : index
    %c0_3 = arith.constant 0 : index
    %2 = vector.load %arg3[%c0_2, %c0_3] : memref<72x128xbf16, #tpu.memory_space<vmem>>, vector<72x128xbf16>
    %cst = arith.constant dense<0.000000e+00> : vector<512x128xf32>
    %3 = tpu.matmul %1, %2, %cst {dimension_numbers = #tpu.dot_dimension_numbers<[1], [0], [0], [1], [0, 0, 1, 1], [], []>} : vector<512x72xbf16>, vector<72x128xbf16>, vector<512x128xf32> -> vector<512x128xf32>
    %c0_4 = arith.constant 0 : index
    %c0_5 = arith.constant 0 : index
    %c0_6 = arith.constant 0 : index
    %4 = vector.load %arg4[%c0_4, %c0_5, %c0_6] : memref<1x512x128xf32, #tpu.memory_space<vmem>>, vector<1x512x128xf32>
    %5 = vector.shape_cast %4 : vector<1x512x128xf32> to vector<512x128xf32>
    %6 = vector.shape_cast %3 : vector<512x128xf32> to vector<1x512x128xf32>
    tpu.vector_store %arg4[%c0_4, %c0_5, %c0_6], %6 {strides = array<i32>} : memref<1x512x128xf32, #tpu.memory_space<vmem>>, vector<1x512x128xf32>,
    %cst_7 = arith.constant dense<0.000000e+00> : vector<128xf32>
    %7 = vector.multi_reduction <add>, %3, %cst_7 [0] : vector<512x128xf32> to vector<128xf32>
    %8 = vector.shape_cast %7 : vector<128xf32> to vector<1x128xf32>
    %9 = arith.mulf %3, %3 : vector<512x128xf32>
    %cst_8 = arith.constant dense<0.000000e+00> : vector<128xf32>
    %10 = vector.multi_reduction <add>, %9, %cst_8 [0] : vector<512x128xf32> to vector<128xf32>
    %11 = vector.shape_cast %10 : vector<128xf32> to vector<1x128xf32>
    %cst_9 = arith.constant 0.000000e+00 : f32
    %12 = vector.broadcast %cst_9 : f32 to vector<6x128xf32>
    %13 = tpu.concatenate %8, %11, %12 in 0 : vector<1x128xf32>, vector<1x128xf32>, vector<6x128xf32> -> vector<8x128xf32>
    %c0_i32 = arith.constant 0 : i32
    %14 = arith.cmpi eq, %arg1, %c0_i32 : i32
    %15 = arith.extui %14 : i1 to i32
    %c0_i32_10 = arith.constant 0 : i32
    %16 = arith.cmpi ne, %15, %c0_i32_10 : i32
    scf.if %16 {
      %c0_13 = arith.constant 0 : index
      %c0_14 = arith.constant 0 : index
      %c0_15 = arith.constant 0 : index
      %20 = vector.load %arg5[%c0_13, %c0_14, %c0_15] : memref<1x8x128xf32, #tpu.memory_space<vmem>>, vector<1x8x128xf32>
      %21 = vector.shape_cast %20 : vector<1x8x128xf32> to vector<8x128xf32>
      %22 = vector.shape_cast %13 : vector<8x128xf32> to vector<1x8x128xf32>
      tpu.vector_store %arg5[%c0_13, %c0_14, %c0_15], %22 {strides = array<i32>} : memref<1x8x128xf32, #tpu.memory_space<vmem>>, vector<1x8x128xf32>,
    } else {
    }
    %c0_i32_11 = arith.constant 0 : i32
    %17 = arith.cmpi sgt, %arg1, %c0_i32_11 : i32
    %18 = arith.extui %17 : i1 to i32
    %c0_i32_12 = arith.constant 0 : i32
    %19 = arith.cmpi ne, %18, %c0_i32_12 : i32
    scf.if %19 {
      %c0_13 = arith.constant 0 : index
      %c0_14 = arith.constant 0 : index
      %c0_15 = arith.constant 0 : index
      %20 = vector.load %arg5[%c0_13, %c0_14, %c0_15] : memref<1x8x128xf32, #tpu.memory_space<vmem>>, vector<1x8x128xf32>
      %21 = vector.shape_cast %20 : vector<1x8x128xf32> to vector<8x128xf32>
      %22 = arith.addf %21, %13 : vector<8x128xf32>
      %c0_16 = arith.constant 0 : index
      %c0_17 = arith.constant 0 : index
      %c0_18 = arith.constant 0 : index
      %23 = vector.load %arg5[%c0_16, %c0_17, %c0_18] : memref<1x8x128xf32, #tpu.memory_space<vmem>>, vector<1x8x128xf32>
      %24 = vector.shape_cast %23 : vector<1x8x128xf32> to vector<8x128xf32>
      %25 = vector.shape_cast %22 : vector<8x128xf32> to vector<1x8x128xf32>
      tpu.vector_store %arg5[%c0_16, %c0_17, %c0_18], %25 {strides = array<i32>} : memref<1x8x128xf32, #tpu.memory_space<vmem>>, vector<1x8x128xf32>,
    } else {
    }
    return
  }
  func.func @transform_0(%arg0: i32, %arg1: i32) -> (i32, i32, i32) {
    %c0_i32 = arith.constant 0 : i32
    %c0_i32_0 = arith.constant 0 : i32
    return %arg0, %arg1, %c0_i32 : i32, i32, i32
  }
  func.func @transform_1(%arg0: i32, %arg1: i32) -> (i32, i32) {
    %c0_i32 = arith.constant 0 : i32
    %c0_i32_0 = arith.constant 0 : i32
    %c0_i32_1 = arith.constant 0 : i32
    return %c0_i32, %c0_i32_0 : i32, i32
  }
  func.func @transform_2(%arg0: i32, %arg1: i32) -> (i32, i32, i32) {
    %c0_i32 = arith.constant 0 : i32
    %c0_i32_0 = arith.constant 0 : i32
    return %arg0, %arg1, %c0_i32 : i32, i32, i32
  }
  func.func @transform_3(%arg0: i32, %arg1: i32) -> (i32, i32, i32) {
    %c0_i32 = arith.constant 0 : i32
    %c0_i32_0 = arith.constant 0 : i32
    %c0_i32_1 = arith.constant 0 : i32
    return %arg0, %c0_i32, %c0_i32_0 : i32, i32, i32
  }
}

module attributes {stable_mosaic.version = 11 : i64} {
  func.func @_matmul_stats_kernel(%arg0: i32, %arg1: i32, %arg2: memref<1x512x20xbf16, #tpu.memory_space<vmem>>, %arg3: memref<20x128xbf16, #tpu.memory_space<vmem>>, %arg4: memref<1x512x128xf32, #tpu.memory_space<vmem>>, %arg5: memref<1x8x128xf32, #tpu.memory_space<vmem>>) attributes {dimension_semantics = [#tpu.dimension_semantics<parallel>, #tpu.dimension_semantics<arbitrary>], iteration_bounds = array<i64: 2, 2>, scalar_prefetch = 0 : i64, scratch_operands = 0 : i64, tpu.core_type = #tpu.core_type<tc>, window_params = [{transform_indices = @transform_0, window_bounds = array<i64: 1, 512, 20>}, {pipeline_mode = #tpu.pipeline_mode<synchronous>, transform_indices = @transform_1, window_bounds = array<i64: 20, 128>}, {transform_indices = @transform_2, window_bounds = array<i64: 1, 512, 128>}, {transform_indices = @transform_3, window_bounds = array<i64: 1, 8, 128>}]} {
    %c0 = arith.constant 0 : index
    %c0_0 = arith.constant 0 : index
    %c0_1 = arith.constant 0 : index
    %0 = vector.load %arg2[%c0, %c0_0, %c0_1] : memref<1x512x20xbf16, #tpu.memory_space<vmem>>, vector<1x512x20xbf16>
    %1 = vector.shape_cast %0 : vector<1x512x20xbf16> to vector<512x20xbf16>
    %c0_2 = arith.constant 0 : index
    %c0_3 = arith.constant 0 : index
    %2 = vector.load %arg3[%c0_2, %c0_3] : memref<20x128xbf16, #tpu.memory_space<vmem>>, vector<20x128xbf16>
    %cst = arith.constant dense<0.000000e+00> : vector<512x128xf32>
    %3 = tpu.matmul %1, %2, %cst {dimension_numbers = #tpu.dot_dimension_numbers<[1], [0], [0], [1], [0, 0, 1, 1], [], []>} : vector<512x20xbf16>, vector<20x128xbf16>, vector<512x128xf32> -> vector<512x128xf32>
    %c0_4 = arith.constant 0 : index
    %c0_5 = arith.constant 0 : index
    %c0_6 = arith.constant 0 : index
    %4 = vector.load %arg4[%c0_4, %c0_5, %c0_6] : memref<1x512x128xf32, #tpu.memory_space<vmem>>, vector<1x512x128xf32>
    %5 = vector.shape_cast %4 : vector<1x512x128xf32> to vector<512x128xf32>
    %6 = vector.shape_cast %3 : vector<512x128xf32> to vector<1x512x128xf32>
    tpu.vector_store %arg4[%c0_4, %c0_5, %c0_6], %6 {strides = array<i32>} : memref<1x512x128xf32, #tpu.memory_space<vmem>>, vector<1x512x128xf32>,
    %cst_7 = arith.constant dense<0.000000e+00> : vector<128xf32>
    %7 = vector.multi_reduction <add>, %3, %cst_7 [0] : vector<512x128xf32> to vector<128xf32>
    %8 = vector.shape_cast %7 : vector<128xf32> to vector<1x128xf32>
    %9 = arith.mulf %3, %3 : vector<512x128xf32>
    %cst_8 = arith.constant dense<0.000000e+00> : vector<128xf32>
    %10 = vector.multi_reduction <add>, %9, %cst_8 [0] : vector<512x128xf32> to vector<128xf32>
    %11 = vector.shape_cast %10 : vector<128xf32> to vector<1x128xf32>
    %cst_9 = arith.constant 0.000000e+00 : f32
    %12 = vector.broadcast %cst_9 : f32 to vector<6x128xf32>
    %13 = tpu.concatenate %8, %11, %12 in 0 : vector<1x128xf32>, vector<1x128xf32>, vector<6x128xf32> -> vector<8x128xf32>
    %c0_i32 = arith.constant 0 : i32
    %14 = arith.cmpi eq, %arg1, %c0_i32 : i32
    %15 = arith.extui %14 : i1 to i32
    %c0_i32_10 = arith.constant 0 : i32
    %16 = arith.cmpi ne, %15, %c0_i32_10 : i32
    scf.if %16 {
      %c0_13 = arith.constant 0 : index
      %c0_14 = arith.constant 0 : index
      %c0_15 = arith.constant 0 : index
      %20 = vector.load %arg5[%c0_13, %c0_14, %c0_15] : memref<1x8x128xf32, #tpu.memory_space<vmem>>, vector<1x8x128xf32>
      %21 = vector.shape_cast %20 : vector<1x8x128xf32> to vector<8x128xf32>
      %22 = vector.shape_cast %13 : vector<8x128xf32> to vector<1x8x128xf32>
      tpu.vector_store %arg5[%c0_13, %c0_14, %c0_15], %22 {strides = array<i32>} : memref<1x8x128xf32, #tpu.memory_space<vmem>>, vector<1x8x128xf32>,
    } else {
    }
    %c0_i32_11 = arith.constant 0 : i32
    %17 = arith.cmpi sgt, %arg1, %c0_i32_11 : i32
    %18 = arith.extui %17 : i1 to i32
    %c0_i32_12 = arith.constant 0 : i32
    %19 = arith.cmpi ne, %18, %c0_i32_12 : i32
    scf.if %19 {
      %c0_13 = arith.constant 0 : index
      %c0_14 = arith.constant 0 : index
      %c0_15 = arith.constant 0 : index
      %20 = vector.load %arg5[%c0_13, %c0_14, %c0_15] : memref<1x8x128xf32, #tpu.memory_space<vmem>>, vector<1x8x128xf32>
      %21 = vector.shape_cast %20 : vector<1x8x128xf32> to vector<8x128xf32>
      %22 = arith.addf %21, %13 : vector<8x128xf32>
      %c0_16 = arith.constant 0 : index
      %c0_17 = arith.constant 0 : index
      %c0_18 = arith.constant 0 : index
      %23 = vector.load %arg5[%c0_16, %c0_17, %c0_18] : memref<1x8x128xf32, #tpu.memory_space<vmem>>, vector<1x8x128xf32>
      %24 = vector.shape_cast %23 : vector<1x8x128xf32> to vector<8x128xf32>
      %25 = vector.shape_cast %22 : vector<8x128xf32> to vector<1x8x128xf32>
      tpu.vector_store %arg5[%c0_16, %c0_17, %c0_18], %25 {strides = array<i32>} : memref<1x8x128xf32, #tpu.memory_space<vmem>>, vector<1x8x128xf32>,
    } else {
    }
    return
  }
  func.func @transform_0(%arg0: i32, %arg1: i32) -> (i32, i32, i32) {
    %c0_i32 = arith.constant 0 : i32
    %c0_i32_0 = arith.constant 0 : i32
    return %arg0, %arg1, %c0_i32 : i32, i32, i32
  }
  func.func @transform_1(%arg0: i32, %arg1: i32) -> (i32, i32) {
    %c0_i32 = arith.constant 0 : i32
    %c0_i32_0 = arith.constant 0 : i32
    %c0_i32_1 = arith.constant 0 : i32
    return %c0_i32, %c0_i32_0 : i32, i32
  }
  func.func @transform_2(%arg0: i32, %arg1: i32) -> (i32, i32, i32) {
    %c0_i32 = arith.constant 0 : i32
    %c0_i32_0 = arith.constant 0 : i32
    return %arg0, %arg1, %c0_i32 : i32, i32, i32
  }
  func.func @transform_3(%arg0: i32, %arg1: i32) -> (i32, i32, i32) {
    %c0_i32 = arith.constant 0 : i32
    %c0_i32_0 = arith.constant 0 : i32
    %c0_i32_1 = arith.constant 0 : i32
    return %arg0, %c0_i32, %c0_i32_0 : i32, i32, i32
  }
}

module attributes {stable_mosaic.version = 11 : i64} {
  func.func @_matmul_stats_kernel(%arg0: i32, %arg1: i32, %arg2: memref<1x18x36xbf16, #tpu.memory_space<vmem>>, %arg3: memref<36x128xbf16, #tpu.memory_space<vmem>>, %arg4: memref<1x18x128xf32, #tpu.memory_space<vmem>>, %arg5: memref<1x8x128xf32, #tpu.memory_space<vmem>>) attributes {dimension_semantics = [#tpu.dimension_semantics<parallel>, #tpu.dimension_semantics<arbitrary>], iteration_bounds = array<i64: 1, 1>, scalar_prefetch = 0 : i64, scratch_operands = 0 : i64, tpu.core_type = #tpu.core_type<tc>, window_params = [{transform_indices = @transform_0, window_bounds = array<i64: 1, 18, 36>}, {pipeline_mode = #tpu.pipeline_mode<synchronous>, transform_indices = @transform_1, window_bounds = array<i64: 36, 128>}, {transform_indices = @transform_2, window_bounds = array<i64: 1, 18, 128>}, {transform_indices = @transform_3, window_bounds = array<i64: 1, 8, 128>}]} {
    %c0 = arith.constant 0 : index
    %c0_0 = arith.constant 0 : index
    %c0_1 = arith.constant 0 : index
    %0 = vector.load %arg2[%c0, %c0_0, %c0_1] : memref<1x18x36xbf16, #tpu.memory_space<vmem>>, vector<1x18x36xbf16>
    %1 = vector.shape_cast %0 : vector<1x18x36xbf16> to vector<18x36xbf16>
    %c0_2 = arith.constant 0 : index
    %c0_3 = arith.constant 0 : index
    %2 = vector.load %arg3[%c0_2, %c0_3] : memref<36x128xbf16, #tpu.memory_space<vmem>>, vector<36x128xbf16>
    %cst = arith.constant dense<0.000000e+00> : vector<18x128xf32>
    %3 = tpu.matmul %1, %2, %cst {dimension_numbers = #tpu.dot_dimension_numbers<[1], [0], [0], [1], [0, 0, 1, 1], [], []>} : vector<18x36xbf16>, vector<36x128xbf16>, vector<18x128xf32> -> vector<18x128xf32>
    %c0_4 = arith.constant 0 : index
    %c0_5 = arith.constant 0 : index
    %c0_6 = arith.constant 0 : index
    %4 = vector.load %arg4[%c0_4, %c0_5, %c0_6] : memref<1x18x128xf32, #tpu.memory_space<vmem>>, vector<1x18x128xf32>
    %5 = vector.shape_cast %4 : vector<1x18x128xf32> to vector<18x128xf32>
    %6 = vector.shape_cast %3 : vector<18x128xf32> to vector<1x18x128xf32>
    tpu.vector_store %arg4[%c0_4, %c0_5, %c0_6], %6 {strides = array<i32>} : memref<1x18x128xf32, #tpu.memory_space<vmem>>, vector<1x18x128xf32>,
    %cst_7 = arith.constant dense<0.000000e+00> : vector<128xf32>
    %7 = vector.multi_reduction <add>, %3, %cst_7 [0] : vector<18x128xf32> to vector<128xf32>
    %8 = vector.shape_cast %7 : vector<128xf32> to vector<1x128xf32>
    %9 = arith.mulf %3, %3 : vector<18x128xf32>
    %cst_8 = arith.constant dense<0.000000e+00> : vector<128xf32>
    %10 = vector.multi_reduction <add>, %9, %cst_8 [0] : vector<18x128xf32> to vector<128xf32>
    %11 = vector.shape_cast %10 : vector<128xf32> to vector<1x128xf32>
    %cst_9 = arith.constant 0.000000e+00 : f32
    %12 = vector.broadcast %cst_9 : f32 to vector<6x128xf32>
    %13 = tpu.concatenate %8, %11, %12 in 0 : vector<1x128xf32>, vector<1x128xf32>, vector<6x128xf32> -> vector<8x128xf32>
    %c0_i32 = arith.constant 0 : i32
    %14 = arith.cmpi eq, %arg1, %c0_i32 : i32
    %15 = arith.extui %14 : i1 to i32
    %c0_i32_10 = arith.constant 0 : i32
    %16 = arith.cmpi ne, %15, %c0_i32_10 : i32
    scf.if %16 {
      %c0_13 = arith.constant 0 : index
      %c0_14 = arith.constant 0 : index
      %c0_15 = arith.constant 0 : index
      %20 = vector.load %arg5[%c0_13, %c0_14, %c0_15] : memref<1x8x128xf32, #tpu.memory_space<vmem>>, vector<1x8x128xf32>
      %21 = vector.shape_cast %20 : vector<1x8x128xf32> to vector<8x128xf32>
      %22 = vector.shape_cast %13 : vector<8x128xf32> to vector<1x8x128xf32>
      tpu.vector_store %arg5[%c0_13, %c0_14, %c0_15], %22 {strides = array<i32>} : memref<1x8x128xf32, #tpu.memory_space<vmem>>, vector<1x8x128xf32>,
    } else {
    }
    %c0_i32_11 = arith.constant 0 : i32
    %17 = arith.cmpi sgt, %arg1, %c0_i32_11 : i32
    %18 = arith.extui %17 : i1 to i32
    %c0_i32_12 = arith.constant 0 : i32
    %19 = arith.cmpi ne, %18, %c0_i32_12 : i32
    scf.if %19 {
      %c0_13 = arith.constant 0 : index
      %c0_14 = arith.constant 0 : index
      %c0_15 = arith.constant 0 : index
      %20 = vector.load %arg5[%c0_13, %c0_14, %c0_15] : memref<1x8x128xf32, #tpu.memory_space<vmem>>, vector<1x8x128xf32>
      %21 = vector.shape_cast %20 : vector<1x8x128xf32> to vector<8x128xf32>
      %22 = arith.addf %21, %13 : vector<8x128xf32>
      %c0_16 = arith.constant 0 : index
      %c0_17 = arith.constant 0 : index
      %c0_18 = arith.constant 0 : index
      %23 = vector.load %arg5[%c0_16, %c0_17, %c0_18] : memref<1x8x128xf32, #tpu.memory_space<vmem>>, vector<1x8x128xf32>
      %24 = vector.shape_cast %23 : vector<1x8x128xf32> to vector<8x128xf32>
      %25 = vector.shape_cast %22 : vector<8x128xf32> to vector<1x8x128xf32>
      tpu.vector_store %arg5[%c0_16, %c0_17, %c0_18], %25 {strides = array<i32>} : memref<1x8x128xf32, #tpu.memory_space<vmem>>, vector<1x8x128xf32>,
    } else {
    }
    return
  }
  func.func @transform_0(%arg0: i32, %arg1: i32) -> (i32, i32, i32) {
    %c0_i32 = arith.constant 0 : i32
    %c0_i32_0 = arith.constant 0 : i32
    return %arg0, %arg1, %c0_i32 : i32, i32, i32
  }
  func.func @transform_1(%arg0: i32, %arg1: i32) -> (i32, i32) {
    %c0_i32 = arith.constant 0 : i32
    %c0_i32_0 = arith.constant 0 : i32
    %c0_i32_1 = arith.constant 0 : i32
    return %c0_i32, %c0_i32_0 : i32, i32
  }
  func.func @transform_2(%arg0: i32, %arg1: i32) -> (i32, i32, i32) {
    %c0_i32 = arith.constant 0 : i32
    %c0_i32_0 = arith.constant 0 : i32
    return %arg0, %arg1, %c0_i32 : i32, i32, i32
  }
  func.func @transform_3(%arg0: i32, %arg1: i32) -> (i32, i32, i32) {
    %c0_i32 = arith.constant 0 : i32
    %c0_i32_0 = arith.constant 0 : i32
    %c0_i32_1 = arith.constant 0 : i32
    return %arg0, %c0_i32, %c0_i32_0 : i32, i32, i32
  }
}

module attributes {stable_mosaic.version = 11 : i64} {
  func.func @_bn_lrelu_kernel(%arg0: i32, %arg1: i32, %arg2: memref<1x18x128xf32, #tpu.memory_space<vmem>>, %arg3: memref<1x8x128xf32, #tpu.memory_space<vmem>>, %arg4: memref<1x128xf32, #tpu.memory_space<vmem>>, %arg5: memref<1x128xf32, #tpu.memory_space<vmem>>, %arg6: memref<1x18x128xf32, #tpu.memory_space<vmem>>) attributes {dimension_semantics = [#tpu.dimension_semantics<parallel>, #tpu.dimension_semantics<parallel>], iteration_bounds = array<i64: 1, 1>, scalar_prefetch = 0 : i64, scratch_operands = 0 : i64, tpu.core_type = #tpu.core_type<tc>, window_params = [{transform_indices = @transform_0, window_bounds = array<i64: 1, 18, 128>}, {transform_indices = @transform_1, window_bounds = array<i64: 1, 8, 128>}, {pipeline_mode = #tpu.pipeline_mode<synchronous>, transform_indices = @transform_2, window_bounds = array<i64: 1, 128>}, {pipeline_mode = #tpu.pipeline_mode<synchronous>, transform_indices = @transform_3, window_bounds = array<i64: 1, 128>}, {transform_indices = @transform_4, window_bounds = array<i64: 1, 18, 128>}]} {
    %c0 = arith.constant 0 : index
    %c0_0 = arith.constant 0 : index
    %c0_1 = arith.constant 0 : index
    %0 = vector.load %arg2[%c0, %c0_0, %c0_1] : memref<1x18x128xf32, #tpu.memory_space<vmem>>, vector<1x18x128xf32>
    %1 = vector.shape_cast %0 : vector<1x18x128xf32> to vector<18x128xf32>
    %c0_2 = arith.constant 0 : index
    %c0_3 = arith.constant 0 : index
    %c0_4 = arith.constant 0 : index
    %2 = vector.load %arg3[%c0_2, %c0_3, %c0_4] : memref<1x8x128xf32, #tpu.memory_space<vmem>>, vector<1x8x128xf32>
    %3 = vector.shape_cast %2 : vector<1x8x128xf32> to vector<8x128xf32>
    %4 = vector.extract_strided_slice %3 {offsets = [0, 0], sizes = [1, 128], strides = [1, 1]} : vector<8x128xf32> to vector<1x128xf32>
    %cst = arith.constant 0.055555556 : f32
    %5 = vector.broadcast %cst : f32 to vector<1x128xf32>
    %6 = arith.mulf %4, %5 : vector<1x128xf32>
    %7 = vector.extract_strided_slice %3 {offsets = [1, 0], sizes = [1, 128], strides = [1, 1]} : vector<8x128xf32> to vector<1x128xf32>
    %cst_5 = arith.constant 0.055555556 : f32
    %8 = vector.broadcast %cst_5 : f32 to vector<1x128xf32>
    %9 = arith.mulf %7, %8 : vector<1x128xf32>
    %10 = arith.mulf %6, %6 : vector<1x128xf32>
    %11 = arith.subf %9, %10 : vector<1x128xf32>
    %cst_6 = arith.constant 1.000000e-03 : f32
    %12 = vector.broadcast %cst_6 : f32 to vector<1x128xf32>
    %13 = arith.addf %11, %12 : vector<1x128xf32>
    %14 = math.rsqrt %13 : vector<1x128xf32>
    %15 = vector.broadcast %6 : vector<1x128xf32> to vector<18x128xf32>
    %16 = arith.subf %1, %15 : vector<18x128xf32>
    %c0_7 = arith.constant 0 : index
    %c0_8 = arith.constant 0 : index
    %17 = vector.load %arg4[%c0_7, %c0_8] : memref<1x128xf32, #tpu.memory_space<vmem>>, vector<1x128xf32>
    %18 = arith.mulf %14, %17 : vector<1x128xf32>
    %19 = vector.broadcast %18 : vector<1x128xf32> to vector<18x128xf32>
    %20 = arith.mulf %16, %19 : vector<18x128xf32>
    %c0_9 = arith.constant 0 : index
    %c0_10 = arith.constant 0 : index
    %21 = vector.load %arg5[%c0_9, %c0_10] : memref<1x128xf32, #tpu.memory_space<vmem>>, vector<1x128xf32>
    %22 = vector.broadcast %21 : vector<1x128xf32> to vector<18x128xf32>
    %23 = arith.addf %20, %22 : vector<18x128xf32>
    %cst_11 = arith.constant 0.000000e+00 : f32
    %24 = vector.broadcast %cst_11 : f32 to vector<18x128xf32>
    %25 = arith.cmpf oge, %23, %24 : vector<18x128xf32>
    %cst_12 = arith.constant 1.000000e-01 : f32
    %26 = vector.broadcast %cst_12 : f32 to vector<18x128xf32>
    %27 = arith.mulf %26, %23 : vector<18x128xf32>
    %28 = arith.select %25, %23, %27 : vector<18x128xi1>, vector<18x128xf32>
    %c0_13 = arith.constant 0 : index
    %c0_14 = arith.constant 0 : index
    %c0_15 = arith.constant 0 : index
    %29 = vector.load %arg6[%c0_13, %c0_14, %c0_15] : memref<1x18x128xf32, #tpu.memory_space<vmem>>, vector<1x18x128xf32>
    %30 = vector.shape_cast %29 : vector<1x18x128xf32> to vector<18x128xf32>
    %31 = vector.shape_cast %28 : vector<18x128xf32> to vector<1x18x128xf32>
    tpu.vector_store %arg6[%c0_13, %c0_14, %c0_15], %31 {strides = array<i32>} : memref<1x18x128xf32, #tpu.memory_space<vmem>>, vector<1x18x128xf32>,
    return
  }
  func.func @transform_0(%arg0: i32, %arg1: i32) -> (i32, i32, i32) {
    %c0_i32 = arith.constant 0 : i32
    %c0_i32_0 = arith.constant 0 : i32
    return %arg0, %arg1, %c0_i32 : i32, i32, i32
  }
  func.func @transform_1(%arg0: i32, %arg1: i32) -> (i32, i32, i32) {
    %c0_i32 = arith.constant 0 : i32
    %c0_i32_0 = arith.constant 0 : i32
    %c0_i32_1 = arith.constant 0 : i32
    return %arg0, %c0_i32, %c0_i32_0 : i32, i32, i32
  }
  func.func @transform_2(%arg0: i32, %arg1: i32) -> (i32, i32) {
    %c0_i32 = arith.constant 0 : i32
    %c0_i32_0 = arith.constant 0 : i32
    %c0_i32_1 = arith.constant 0 : i32
    return %c0_i32, %c0_i32_0 : i32, i32
  }
  func.func @transform_3(%arg0: i32, %arg1: i32) -> (i32, i32) {
    %c0_i32 = arith.constant 0 : i32
    %c0_i32_0 = arith.constant 0 : i32
    %c0_i32_1 = arith.constant 0 : i32
    return %c0_i32, %c0_i32_0 : i32, i32
  }
  func.func @transform_4(%arg0: i32, %arg1: i32) -> (i32, i32, i32) {
    %c0_i32 = arith.constant 0 : i32
    %c0_i32_0 = arith.constant 0 : i32
    return %arg0, %arg1, %c0_i32 : i32, i32, i32
  }
}

module attributes {stable_mosaic.version = 11 : i64} {
  func.func @_matmul_stats_kernel(%arg0: i32, %arg1: i32, %arg2: memref<1x18x72xbf16, #tpu.memory_space<vmem>>, %arg3: memref<72x128xbf16, #tpu.memory_space<vmem>>, %arg4: memref<1x18x128xf32, #tpu.memory_space<vmem>>, %arg5: memref<1x8x128xf32, #tpu.memory_space<vmem>>) attributes {dimension_semantics = [#tpu.dimension_semantics<parallel>, #tpu.dimension_semantics<arbitrary>], iteration_bounds = array<i64: 1, 1>, scalar_prefetch = 0 : i64, scratch_operands = 0 : i64, tpu.core_type = #tpu.core_type<tc>, window_params = [{transform_indices = @transform_0, window_bounds = array<i64: 1, 18, 72>}, {pipeline_mode = #tpu.pipeline_mode<synchronous>, transform_indices = @transform_1, window_bounds = array<i64: 72, 128>}, {transform_indices = @transform_2, window_bounds = array<i64: 1, 18, 128>}, {transform_indices = @transform_3, window_bounds = array<i64: 1, 8, 128>}]} {
    %c0 = arith.constant 0 : index
    %c0_0 = arith.constant 0 : index
    %c0_1 = arith.constant 0 : index
    %0 = vector.load %arg2[%c0, %c0_0, %c0_1] : memref<1x18x72xbf16, #tpu.memory_space<vmem>>, vector<1x18x72xbf16>
    %1 = vector.shape_cast %0 : vector<1x18x72xbf16> to vector<18x72xbf16>
    %c0_2 = arith.constant 0 : index
    %c0_3 = arith.constant 0 : index
    %2 = vector.load %arg3[%c0_2, %c0_3] : memref<72x128xbf16, #tpu.memory_space<vmem>>, vector<72x128xbf16>
    %cst = arith.constant dense<0.000000e+00> : vector<18x128xf32>
    %3 = tpu.matmul %1, %2, %cst {dimension_numbers = #tpu.dot_dimension_numbers<[1], [0], [0], [1], [0, 0, 1, 1], [], []>} : vector<18x72xbf16>, vector<72x128xbf16>, vector<18x128xf32> -> vector<18x128xf32>
    %c0_4 = arith.constant 0 : index
    %c0_5 = arith.constant 0 : index
    %c0_6 = arith.constant 0 : index
    %4 = vector.load %arg4[%c0_4, %c0_5, %c0_6] : memref<1x18x128xf32, #tpu.memory_space<vmem>>, vector<1x18x128xf32>
    %5 = vector.shape_cast %4 : vector<1x18x128xf32> to vector<18x128xf32>
    %6 = vector.shape_cast %3 : vector<18x128xf32> to vector<1x18x128xf32>
    tpu.vector_store %arg4[%c0_4, %c0_5, %c0_6], %6 {strides = array<i32>} : memref<1x18x128xf32, #tpu.memory_space<vmem>>, vector<1x18x128xf32>,
    %cst_7 = arith.constant dense<0.000000e+00> : vector<128xf32>
    %7 = vector.multi_reduction <add>, %3, %cst_7 [0] : vector<18x128xf32> to vector<128xf32>
    %8 = vector.shape_cast %7 : vector<128xf32> to vector<1x128xf32>
    %9 = arith.mulf %3, %3 : vector<18x128xf32>
    %cst_8 = arith.constant dense<0.000000e+00> : vector<128xf32>
    %10 = vector.multi_reduction <add>, %9, %cst_8 [0] : vector<18x128xf32> to vector<128xf32>
    %11 = vector.shape_cast %10 : vector<128xf32> to vector<1x128xf32>
    %cst_9 = arith.constant 0.000000e+00 : f32
    %12 = vector.broadcast %cst_9 : f32 to vector<6x128xf32>
    %13 = tpu.concatenate %8, %11, %12 in 0 : vector<1x128xf32>, vector<1x128xf32>, vector<6x128xf32> -> vector<8x128xf32>
    %c0_i32 = arith.constant 0 : i32
    %14 = arith.cmpi eq, %arg1, %c0_i32 : i32
    %15 = arith.extui %14 : i1 to i32
    %c0_i32_10 = arith.constant 0 : i32
    %16 = arith.cmpi ne, %15, %c0_i32_10 : i32
    scf.if %16 {
      %c0_13 = arith.constant 0 : index
      %c0_14 = arith.constant 0 : index
      %c0_15 = arith.constant 0 : index
      %20 = vector.load %arg5[%c0_13, %c0_14, %c0_15] : memref<1x8x128xf32, #tpu.memory_space<vmem>>, vector<1x8x128xf32>
      %21 = vector.shape_cast %20 : vector<1x8x128xf32> to vector<8x128xf32>
      %22 = vector.shape_cast %13 : vector<8x128xf32> to vector<1x8x128xf32>
      tpu.vector_store %arg5[%c0_13, %c0_14, %c0_15], %22 {strides = array<i32>} : memref<1x8x128xf32, #tpu.memory_space<vmem>>, vector<1x8x128xf32>,
    } else {
    }
    %c0_i32_11 = arith.constant 0 : i32
    %17 = arith.cmpi sgt, %arg1, %c0_i32_11 : i32
    %18 = arith.extui %17 : i1 to i32
    %c0_i32_12 = arith.constant 0 : i32
    %19 = arith.cmpi ne, %18, %c0_i32_12 : i32
    scf.if %19 {
      %c0_13 = arith.constant 0 : index
      %c0_14 = arith.constant 0 : index
      %c0_15 = arith.constant 0 : index
      %20 = vector.load %arg5[%c0_13, %c0_14, %c0_15] : memref<1x8x128xf32, #tpu.memory_space<vmem>>, vector<1x8x128xf32>
      %21 = vector.shape_cast %20 : vector<1x8x128xf32> to vector<8x128xf32>
      %22 = arith.addf %21, %13 : vector<8x128xf32>
      %c0_16 = arith.constant 0 : index
      %c0_17 = arith.constant 0 : index
      %c0_18 = arith.constant 0 : index
      %23 = vector.load %arg5[%c0_16, %c0_17, %c0_18] : memref<1x8x128xf32, #tpu.memory_space<vmem>>, vector<1x8x128xf32>
      %24 = vector.shape_cast %23 : vector<1x8x128xf32> to vector<8x128xf32>
      %25 = vector.shape_cast %22 : vector<8x128xf32> to vector<1x8x128xf32>
      tpu.vector_store %arg5[%c0_16, %c0_17, %c0_18], %25 {strides = array<i32>} : memref<1x8x128xf32, #tpu.memory_space<vmem>>, vector<1x8x128xf32>,
    } else {
    }
    return
  }
  func.func @transform_0(%arg0: i32, %arg1: i32) -> (i32, i32, i32) {
    %c0_i32 = arith.constant 0 : i32
    %c0_i32_0 = arith.constant 0 : i32
    return %arg0, %arg1, %c0_i32 : i32, i32, i32
  }
  func.func @transform_1(%arg0: i32, %arg1: i32) -> (i32, i32) {
    %c0_i32 = arith.constant 0 : i32
    %c0_i32_0 = arith.constant 0 : i32
    %c0_i32_1 = arith.constant 0 : i32
    return %c0_i32, %c0_i32_0 : i32, i32
  }
  func.func @transform_2(%arg0: i32, %arg1: i32) -> (i32, i32, i32) {
    %c0_i32 = arith.constant 0 : i32
    %c0_i32_0 = arith.constant 0 : i32
    return %arg0, %arg1, %c0_i32 : i32, i32, i32
  }
  func.func @transform_3(%arg0: i32, %arg1: i32) -> (i32, i32, i32) {
    %c0_i32 = arith.constant 0 : i32
    %c0_i32_0 = arith.constant 0 : i32
    %c0_i32_1 = arith.constant 0 : i32
    return %arg0, %c0_i32, %c0_i32_0 : i32, i32, i32
  }
}

module attributes {stable_mosaic.version = 11 : i64} {
  func.func @_bn_lrelu_kernel(%arg0: i32, %arg1: i32, %arg2: memref<1x2x128xf32, #tpu.memory_space<vmem>>, %arg3: memref<1x8x128xf32, #tpu.memory_space<vmem>>, %arg4: memref<1x128xf32, #tpu.memory_space<vmem>>, %arg5: memref<1x128xf32, #tpu.memory_space<vmem>>, %arg6: memref<1x2x128xf32, #tpu.memory_space<vmem>>) attributes {dimension_semantics = [#tpu.dimension_semantics<parallel>, #tpu.dimension_semantics<parallel>], iteration_bounds = array<i64: 1, 1>, scalar_prefetch = 0 : i64, scratch_operands = 0 : i64, tpu.core_type = #tpu.core_type<tc>, window_params = [{transform_indices = @transform_0, window_bounds = array<i64: 1, 2, 128>}, {transform_indices = @transform_1, window_bounds = array<i64: 1, 8, 128>}, {pipeline_mode = #tpu.pipeline_mode<synchronous>, transform_indices = @transform_2, window_bounds = array<i64: 1, 128>}, {pipeline_mode = #tpu.pipeline_mode<synchronous>, transform_indices = @transform_3, window_bounds = array<i64: 1, 128>}, {transform_indices = @transform_4, window_bounds = array<i64: 1, 2, 128>}]} {
    %c0 = arith.constant 0 : index
    %c0_0 = arith.constant 0 : index
    %c0_1 = arith.constant 0 : index
    %0 = vector.load %arg2[%c0, %c0_0, %c0_1] : memref<1x2x128xf32, #tpu.memory_space<vmem>>, vector<1x2x128xf32>
    %1 = vector.shape_cast %0 : vector<1x2x128xf32> to vector<2x128xf32>
    %c0_2 = arith.constant 0 : index
    %c0_3 = arith.constant 0 : index
    %c0_4 = arith.constant 0 : index
    %2 = vector.load %arg3[%c0_2, %c0_3, %c0_4] : memref<1x8x128xf32, #tpu.memory_space<vmem>>, vector<1x8x128xf32>
    %3 = vector.shape_cast %2 : vector<1x8x128xf32> to vector<8x128xf32>
    %4 = vector.extract_strided_slice %3 {offsets = [0, 0], sizes = [1, 128], strides = [1, 1]} : vector<8x128xf32> to vector<1x128xf32>
    %cst = arith.constant 5.000000e-01 : f32
    %5 = vector.broadcast %cst : f32 to vector<1x128xf32>
    %6 = arith.mulf %4, %5 : vector<1x128xf32>
    %7 = vector.extract_strided_slice %3 {offsets = [1, 0], sizes = [1, 128], strides = [1, 1]} : vector<8x128xf32> to vector<1x128xf32>
    %cst_5 = arith.constant 5.000000e-01 : f32
    %8 = vector.broadcast %cst_5 : f32 to vector<1x128xf32>
    %9 = arith.mulf %7, %8 : vector<1x128xf32>
    %10 = arith.mulf %6, %6 : vector<1x128xf32>
    %11 = arith.subf %9, %10 : vector<1x128xf32>
    %cst_6 = arith.constant 1.000000e-03 : f32
    %12 = vector.broadcast %cst_6 : f32 to vector<1x128xf32>
    %13 = arith.addf %11, %12 : vector<1x128xf32>
    %14 = math.rsqrt %13 : vector<1x128xf32>
    %15 = vector.broadcast %6 : vector<1x128xf32> to vector<2x128xf32>
    %16 = arith.subf %1, %15 : vector<2x128xf32>
    %c0_7 = arith.constant 0 : index
    %c0_8 = arith.constant 0 : index
    %17 = vector.load %arg4[%c0_7, %c0_8] : memref<1x128xf32, #tpu.memory_space<vmem>>, vector<1x128xf32>
    %18 = arith.mulf %14, %17 : vector<1x128xf32>
    %19 = vector.broadcast %18 : vector<1x128xf32> to vector<2x128xf32>
    %20 = arith.mulf %16, %19 : vector<2x128xf32>
    %c0_9 = arith.constant 0 : index
    %c0_10 = arith.constant 0 : index
    %21 = vector.load %arg5[%c0_9, %c0_10] : memref<1x128xf32, #tpu.memory_space<vmem>>, vector<1x128xf32>
    %22 = vector.broadcast %21 : vector<1x128xf32> to vector<2x128xf32>
    %23 = arith.addf %20, %22 : vector<2x128xf32>
    %cst_11 = arith.constant 0.000000e+00 : f32
    %24 = vector.broadcast %cst_11 : f32 to vector<2x128xf32>
    %25 = arith.cmpf oge, %23, %24 : vector<2x128xf32>
    %cst_12 = arith.constant 1.000000e-01 : f32
    %26 = vector.broadcast %cst_12 : f32 to vector<2x128xf32>
    %27 = arith.mulf %26, %23 : vector<2x128xf32>
    %28 = arith.select %25, %23, %27 : vector<2x128xi1>, vector<2x128xf32>
    %c0_13 = arith.constant 0 : index
    %c0_14 = arith.constant 0 : index
    %c0_15 = arith.constant 0 : index
    %29 = vector.load %arg6[%c0_13, %c0_14, %c0_15] : memref<1x2x128xf32, #tpu.memory_space<vmem>>, vector<1x2x128xf32>
    %30 = vector.shape_cast %29 : vector<1x2x128xf32> to vector<2x128xf32>
    %31 = vector.shape_cast %28 : vector<2x128xf32> to vector<1x2x128xf32>
    tpu.vector_store %arg6[%c0_13, %c0_14, %c0_15], %31 {strides = array<i32>} : memref<1x2x128xf32, #tpu.memory_space<vmem>>, vector<1x2x128xf32>,
    return
  }
  func.func @transform_0(%arg0: i32, %arg1: i32) -> (i32, i32, i32) {
    %c0_i32 = arith.constant 0 : i32
    %c0_i32_0 = arith.constant 0 : i32
    return %arg0, %arg1, %c0_i32 : i32, i32, i32
  }
  func.func @transform_1(%arg0: i32, %arg1: i32) -> (i32, i32, i32) {
    %c0_i32 = arith.constant 0 : i32
    %c0_i32_0 = arith.constant 0 : i32
    %c0_i32_1 = arith.constant 0 : i32
    return %arg0, %c0_i32, %c0_i32_0 : i32, i32, i32
  }
  func.func @transform_2(%arg0: i32, %arg1: i32) -> (i32, i32) {
    %c0_i32 = arith.constant 0 : i32
    %c0_i32_0 = arith.constant 0 : i32
    %c0_i32_1 = arith.constant 0 : i32
    return %c0_i32, %c0_i32_0 : i32, i32
  }
  func.func @transform_3(%arg0: i32, %arg1: i32) -> (i32, i32) {
    %c0_i32 = arith.constant 0 : i32
    %c0_i32_0 = arith.constant 0 : i32
    %c0_i32_1 = arith.constant 0 : i32
    return %c0_i32, %c0_i32_0 : i32, i32
  }
  func.func @transform_4(%arg0: i32, %arg1: i32) -> (i32, i32, i32) {
    %c0_i32 = arith.constant 0 : i32
    %c0_i32_0 = arith.constant 0 : i32
    return %arg0, %arg1, %c0_i32 : i32, i32, i32
  }
}

module attributes {stable_mosaic.version = 11 : i64} {
  func.func @_matmul_stats_kernel(%arg0: i32, %arg1: i32, %arg2: memref<1x2x180xbf16, #tpu.memory_space<vmem>>, %arg3: memref<180x128xbf16, #tpu.memory_space<vmem>>, %arg4: memref<1x2x128xf32, #tpu.memory_space<vmem>>, %arg5: memref<1x8x128xf32, #tpu.memory_space<vmem>>) attributes {dimension_semantics = [#tpu.dimension_semantics<parallel>, #tpu.dimension_semantics<arbitrary>], iteration_bounds = array<i64: 1, 1>, scalar_prefetch = 0 : i64, scratch_operands = 0 : i64, tpu.core_type = #tpu.core_type<tc>, window_params = [{transform_indices = @transform_0, window_bounds = array<i64: 1, 2, 180>}, {pipeline_mode = #tpu.pipeline_mode<synchronous>, transform_indices = @transform_1, window_bounds = array<i64: 180, 128>}, {transform_indices = @transform_2, window_bounds = array<i64: 1, 2, 128>}, {transform_indices = @transform_3, window_bounds = array<i64: 1, 8, 128>}]} {
    %c0 = arith.constant 0 : index
    %c0_0 = arith.constant 0 : index
    %c0_1 = arith.constant 0 : index
    %0 = vector.load %arg2[%c0, %c0_0, %c0_1] : memref<1x2x180xbf16, #tpu.memory_space<vmem>>, vector<1x2x180xbf16>
    %1 = vector.shape_cast %0 : vector<1x2x180xbf16> to vector<2x180xbf16>
    %c0_2 = arith.constant 0 : index
    %c0_3 = arith.constant 0 : index
    %2 = vector.load %arg3[%c0_2, %c0_3] : memref<180x128xbf16, #tpu.memory_space<vmem>>, vector<180x128xbf16>
    %cst = arith.constant dense<0.000000e+00> : vector<2x128xf32>
    %3 = tpu.matmul %1, %2, %cst {dimension_numbers = #tpu.dot_dimension_numbers<[1], [0], [0], [1], [0, 0, 1, 1], [], []>} : vector<2x180xbf16>, vector<180x128xbf16>, vector<2x128xf32> -> vector<2x128xf32>
    %c0_4 = arith.constant 0 : index
    %c0_5 = arith.constant 0 : index
    %c0_6 = arith.constant 0 : index
    %4 = vector.load %arg4[%c0_4, %c0_5, %c0_6] : memref<1x2x128xf32, #tpu.memory_space<vmem>>, vector<1x2x128xf32>
    %5 = vector.shape_cast %4 : vector<1x2x128xf32> to vector<2x128xf32>
    %6 = vector.shape_cast %3 : vector<2x128xf32> to vector<1x2x128xf32>
    tpu.vector_store %arg4[%c0_4, %c0_5, %c0_6], %6 {strides = array<i32>} : memref<1x2x128xf32, #tpu.memory_space<vmem>>, vector<1x2x128xf32>,
    %cst_7 = arith.constant dense<0.000000e+00> : vector<128xf32>
    %7 = vector.multi_reduction <add>, %3, %cst_7 [0] : vector<2x128xf32> to vector<128xf32>
    %8 = vector.shape_cast %7 : vector<128xf32> to vector<1x128xf32>
    %9 = arith.mulf %3, %3 : vector<2x128xf32>
    %cst_8 = arith.constant dense<0.000000e+00> : vector<128xf32>
    %10 = vector.multi_reduction <add>, %9, %cst_8 [0] : vector<2x128xf32> to vector<128xf32>
    %11 = vector.shape_cast %10 : vector<128xf32> to vector<1x128xf32>
    %cst_9 = arith.constant 0.000000e+00 : f32
    %12 = vector.broadcast %cst_9 : f32 to vector<6x128xf32>
    %13 = tpu.concatenate %8, %11, %12 in 0 : vector<1x128xf32>, vector<1x128xf32>, vector<6x128xf32> -> vector<8x128xf32>
    %c0_i32 = arith.constant 0 : i32
    %14 = arith.cmpi eq, %arg1, %c0_i32 : i32
    %15 = arith.extui %14 : i1 to i32
    %c0_i32_10 = arith.constant 0 : i32
    %16 = arith.cmpi ne, %15, %c0_i32_10 : i32
    scf.if %16 {
      %c0_13 = arith.constant 0 : index
      %c0_14 = arith.constant 0 : index
      %c0_15 = arith.constant 0 : index
      %20 = vector.load %arg5[%c0_13, %c0_14, %c0_15] : memref<1x8x128xf32, #tpu.memory_space<vmem>>, vector<1x8x128xf32>
      %21 = vector.shape_cast %20 : vector<1x8x128xf32> to vector<8x128xf32>
      %22 = vector.shape_cast %13 : vector<8x128xf32> to vector<1x8x128xf32>
      tpu.vector_store %arg5[%c0_13, %c0_14, %c0_15], %22 {strides = array<i32>} : memref<1x8x128xf32, #tpu.memory_space<vmem>>, vector<1x8x128xf32>,
    } else {
    }
    %c0_i32_11 = arith.constant 0 : i32
    %17 = arith.cmpi sgt, %arg1, %c0_i32_11 : i32
    %18 = arith.extui %17 : i1 to i32
    %c0_i32_12 = arith.constant 0 : i32
    %19 = arith.cmpi ne, %18, %c0_i32_12 : i32
    scf.if %19 {
      %c0_13 = arith.constant 0 : index
      %c0_14 = arith.constant 0 : index
      %c0_15 = arith.constant 0 : index
      %20 = vector.load %arg5[%c0_13, %c0_14, %c0_15] : memref<1x8x128xf32, #tpu.memory_space<vmem>>, vector<1x8x128xf32>
      %21 = vector.shape_cast %20 : vector<1x8x128xf32> to vector<8x128xf32>
      %22 = arith.addf %21, %13 : vector<8x128xf32>
      %c0_16 = arith.constant 0 : index
      %c0_17 = arith.constant 0 : index
      %c0_18 = arith.constant 0 : index
      %23 = vector.load %arg5[%c0_16, %c0_17, %c0_18] : memref<1x8x128xf32, #tpu.memory_space<vmem>>, vector<1x8x128xf32>
      %24 = vector.shape_cast %23 : vector<1x8x128xf32> to vector<8x128xf32>
      %25 = vector.shape_cast %22 : vector<8x128xf32> to vector<1x8x128xf32>
      tpu.vector_store %arg5[%c0_16, %c0_17, %c0_18], %25 {strides = array<i32>} : memref<1x8x128xf32, #tpu.memory_space<vmem>>, vector<1x8x128xf32>,
    } else {
    }
    return
  }
  func.func @transform_0(%arg0: i32, %arg1: i32) -> (i32, i32, i32) {
    %c0_i32 = arith.constant 0 : i32
    %c0_i32_0 = arith.constant 0 : i32
    return %arg0, %arg1, %c0_i32 : i32, i32, i32
  }
  func.func @transform_1(%arg0: i32, %arg1: i32) -> (i32, i32) {
    %c0_i32 = arith.constant 0 : i32
    %c0_i32_0 = arith.constant 0 : i32
    %c0_i32_1 = arith.constant 0 : i32
    return %c0_i32, %c0_i32_0 : i32, i32
  }
  func.func @transform_2(%arg0: i32, %arg1: i32) -> (i32, i32, i32) {
    %c0_i32 = arith.constant 0 : i32
    %c0_i32_0 = arith.constant 0 : i32
    return %arg0, %arg1, %c0_i32 : i32, i32, i32
  }
  func.func @transform_3(%arg0: i32, %arg1: i32) -> (i32, i32, i32) {
    %c0_i32 = arith.constant 0 : i32
    %c0_i32_0 = arith.constant 0 : i32
    %c0_i32_1 = arith.constant 0 : i32
    return %arg0, %c0_i32, %c0_i32_0 : i32, i32, i32
  }
}

</mosaic_0001>

<llo_original>
// kernel: dt_forward.89
$region0: #{dt_forward.89}
  #allocation0 [shape = 'u32[]', space=smem, size = 0x4, offset = 0x4, fixed_abs, tag = 'smem constant byte address 0x4 - core index']
  #allocation1 [shape = 'u32[144,128]{1,0:T(1,128)}', space=vmem, size = 0x12000, scoped, tag = 'internal scratch']
  %s0 = inlined_call_operand.vmem [shape: f32[2,1024,128], index: 0, kind: input, shape index: {}, may-alias: {0,4}]
  %s1 = inlined_call_operand.vmem [shape: f32[2,8,128], index: 1, kind: input, shape index: {}]
  %s2 = inlined_call_operand.vmem [shape: f32[1,128], index: 2, kind: input, shape index: {}]
  %s3 = inlined_call_operand.vmem [shape: f32[1,128], index: 3, kind: input, shape index: {}]
  %s4 = inlined_call_operand.vmem [shape: f32[2,1024,128], index: 4, kind: output, shape index: {}, may-alias: {0,4}]
  %s5 = sld [smem:[#allocation0]]
  $region49: #{dt_forward.89} parent=0
    _
  %s7 = ssub.s32 1, %s5
  %s8 = scalar_select 0, %s7, %s5
  loop: start=0, step=1, limit=6
  $region2: #{dt_forward.89} parent=0 // loop_pre_header
    _
  $region3: #{dt_forward.89} parent=0 // loop_header
    %s10 = sphi 0, %s14
    %p11 = scmp.ge.s32.totalorder %s10, 6
    %s17 = sphi 0, %s29
    %s18 = sphi 0, %s25
    %s19 = sphi 0, %s17
    %s20 = sphi 0, %s18
    %s21 = sphi 0, %s19
    %s22 = sphi 0, %s20
    %s34 = sphi 0, %s36
    %s37 = sphi 0, %s34
    %s38 = sphi 0, %s37
    %s54 = sphi 0, %s38
    %s60 = sphi 0, %s62
    %s63 = sphi 0, %s60
    %s64 = sphi 0, %s63
    %s80 = sphi 0, %s64
    %s84 = sphi 0, %s84
    %s86 = sphi 0, %s84
    %s87 = sphi 0, %s86
    %s101 = sphi 0, %s87
    %s105 = sphi 0, %s105
    %s107 = sphi 0, %s105
    %s108 = sphi 0, %s107
    %s122 = sphi 0, %s108
    %s130 = sphi 0, %s132
    %s133 = sphi 0, %s130
    %s134 = sphi 0, %s133
    %s150 = sphi 0, %s134
  $region4: #{dt_forward.89} parent=0 // loop_header_branch
    %13 = sbr.rel (%p11) target = $region8
  $region5: #{dt_forward.89} parent=0 // loop_body
    %s15 = ssub.s32 %s10, 1
    %s16 = ssub.s32 %s10, 2
    %s23 = sadd.s32 1, %s18
    %p24 = scmp.ge.s32.totalorder %s23, 2
    %s25 = scalar_select %p24, 0, %s23
    %s26 = sadd.s32 1, %s17
    %s27 = scalar_select %p24, %s26, %s17
    %p28 = scmp.ge.s32.totalorder %s27, 2
    %s29 = scalar_select %p28, 0, %s27
    %s30 = ssub.s32 %s17, %s29
    %s31 = ssub.s32 %s18, %s25
    %s32 = sor.u32 %s30, %s31
    %p33 = scmp.eq.s32.totalorder %s32, 0
    %s35 = sadd.s32 %s34, 1
    %s36 = scalar_select %p33, %s34, %s35
    %p39 = pneg %p33
    %p40 = scmp.eq.s32.totalorder %s10, 3
    %p41 = por %p39, %p40
    %p42 = scmp.ne.s32.totalorder %s34, %s37
    %p43 = scmp.eq.s32.totalorder %s10, 0
    %p44 = por %p42, %p43
    %p45 = scmp.ne.s32.totalorder %s34, %s37
    %p46 = scmp.eq.s32.totalorder %s15, 3
    %p47 = por %p45, %p46
    %p48 = scmp.ne.s32.totalorder %s37, %s38
    %p49 = scmp.eq.s32.totalorder %s15, 0
    %p50 = por %p48, %p49
    %p51 = scmp.ne.s32.totalorder %s37, %s38
    %p52 = scmp.eq.s32.totalorder %s16, 3
    %p53 = por %p51, %p52
    %p55 = scmp.ne.s32.totalorder %s38, %s54
    %p56 = scmp.eq.s32.totalorder %s16, 0
    %p57 = por %p55, %p56
    %s58 = ssub.s32 %s17, %s29
    %p59 = scmp.eq.s32.totalorder %s58, 0
    %s61 = sadd.s32 %s60, 1
    %s62 = scalar_select %p59, %s60, %s61
    %p65 = pneg %p59
    %p66 = scmp.eq.s32.totalorder %s10, 3
    %p67 = por %p65, %p66
    %p68 = scmp.ne.s32.totalorder %s60, %s63
    %p69 = scmp.eq.s32.totalorder %s10, 0
    %p70 = por %p68, %p69
    %p71 = scmp.ne.s32.totalorder %s60, %s63
    %p72 = scmp.eq.s32.totalorder %s15, 3
    %p73 = por %p71, %p72
    %p74 = scmp.ne.s32.totalorder %s63, %s64
    %p75 = scmp.eq.s32.totalorder %s15, 0
    %p76 = por %p74, %p75
    %p77 = scmp.ne.s32.totalorder %s63, %s64
    %p78 = scmp.eq.s32.totalorder %s16, 3
    %p79 = por %p77, %p78
    %p81 = scmp.ne.s32.totalorder %s64, %s80
    %p82 = scmp.eq.s32.totalorder %s16, 0
    %p83 = por %p81, %p82
    %s85 = sadd.s32 %s84, 1
    %p88 = scmp.eq.s32.totalorder %s10, 3
    %p89 = scmp.ne.s32.totalorder %s84, %s86
    %p90 = scmp.eq.s32.totalorder %s10, 0
    %p91 = por %p89, %p90
    %p92 = scmp.ne.s32.totalorder %s84, %s86
    %p93 = scmp.eq.s32.totalorder %s15, 3
    %p94 = por %p92, %p93
    %p95 = scmp.ne.s32.totalorder %s86, %s87
    %p96 = scmp.eq.s32.totalorder %s15, 0
    %p97 = por %p95, %p96
    %p98 = scmp.ne.s32.totalorder %s86, %s87
    %p99 = scmp.eq.s32.totalorder %s16, 3
    %p100 = por %p98, %p99
    %p102 = scmp.ne.s32.totalorder %s87, %s101
    %p103 = scmp.eq.s32.totalorder %s16, 0
    %p104 = por %p102, %p103
    %s106 = sadd.s32 %s105, 1
    %p109 = scmp.eq.s32.totalorder %s10, 3
    %p110 = scmp.ne.s32.totalorder %s105, %s107
    %p111 = scmp.eq.s32.totalorder %s10, 0
    %p112 = por %p110, %p111
    %p113 = scmp.ne.s32.totalorder %s105, %s107
    %p114 = scmp.eq.s32.totalorder %s15, 3
    %p115 = por %p113, %p114
    %p116 = scmp.ne.s32.totalorder %s107, %s108
    %p117 = scmp.eq.s32.totalorder %s15, 0
    %p118 = por %p116, %p117
    %p119 = scmp.ne.s32.totalorder %s107, %s108
    %p120 = scmp.eq.s32.totalorder %s16, 3
    %p121 = por %p119, %p120
    %p123 = scmp.ne.s32.totalorder %s108, %s122
    %p124 = scmp.eq.s32.totalorder %s16, 0
    %p125 = por %p123, %p124
    %s126 = ssub.s32 %s17, %s29
    %s127 = ssub.s32 %s18, %s25
    %s128 = sor.u32 %s126, %s127
    %p129 = scmp.eq.s32.totalorder %s128, 0
    %s131 = sadd.s32 %s130, 1
    %s132 = scalar_select %p129, %s130, %s131
    %p135 = pneg %p129
    %p136 = scmp.eq.s32.totalorder %s10, 3
    %p137 = por %p135, %p136
    %p138 = scmp.ne.s32.totalorder %s130, %s133
    %p139 = scmp.eq.s32.totalorder %s10, 0
    %p140 = por %p138, %p139
    %p141 = scmp.ne.s32.totalorder %s130, %s133
    %p142 = scmp.eq.s32.totalorder %s15, 3
    %p143 = por %p141, %p142
    %p144 = scmp.ne.s32.totalorder %s133, %s134
    %p145 = scmp.eq.s32.totalorder %s15, 0
    %p146 = por %p144, %p145
    %p147 = scmp.ne.s32.totalorder %s133, %s134
    %p148 = scmp.eq.s32.totalorder %s16, 3
    %p149 = por %p147, %p148
    %p151 = scmp.ne.s32.totalorder %s134, %s150
    %p152 = scmp.eq.s32.totalorder %s16, 0
    %p153 = por %p151, %p152
    %p154 = scmp.le.s32.totalorder 1, %s10
    %p155 = scmp.lt.s32.totalorder %s10, 5
    %p156 = pnand %p154, %p155
    %p157 = pneg %p156
    // Predicated region
    $region9: #{dt_forward.89} parent=5 // pred_check
      _
    $region10: #{dt_forward.89} parent=5 // pred_check_branch
      %159 = sbr.rel (%p156) target = $region12
    $region11: #{dt_forward.89} parent=5 // pred_region
      %s160 = ssub.s32 %s10, 1
      // Predicated region
      $region13: #{dt_forward.89} parent=11 // pred_check
        %p161 = pneg %p97
      $region14: #{dt_forward.89} parent=11 // pred_check_branch
        %163 = sbr.rel (%p161) target = $region16
      $region15: #{dt_forward.89} parent=11 // pred_region
        _
      $region16: #{dt_forward.89} parent=11 // pred_fallthru
        _
      // Predicated region
      $region17: #{dt_forward.89} parent=11 // pred_check
        %p164 = pneg %p118
      $region18: #{dt_forward.89} parent=11 // pred_check_branch
        %166 = sbr.rel (%p164) target = $region20
      $region19: #{dt_forward.89} parent=11 // pred_region
        _
      $region20: #{dt_forward.89} parent=11 // pred_fallthru
        _
    $region12: #{dt_forward.89} parent=5 // pred_fallthru
      _
    %p167 = scmp.lt.s32.totalorder %s10, 4
    // Predicated region
    $region21: #{dt_forward.89} parent=5 // pred_check
      %p168 = pneg %p167
    $region22: #{dt_forward.89} parent=5 // pred_check_branch
      %170 = sbr.rel (%p168) target = $region24
    $region23: #{dt_forward.89} parent=5 // pred_region
      // Predicated region
      $region25: #{dt_forward.89} parent=23 // pred_check
        %p171 = pneg %p44
      $region26: #{dt_forward.89} parent=23 // pred_check_branch
        %173 = sbr.rel (%p171) target = $region28
      $region27: #{dt_forward.89} parent=23 // pred_region
        %s174 = smul.u32 64, %s18
        %p175 = scmp.lt.s32.totalorder %s17, 1
        %s176 = scalar_select %p175, %s17, 1
        %p177 = scmp.lt.s32.totalorder %s174, 127
        %s178 = scalar_select %p177, %s174, 127
        %s179 = smul.addr %s176, 128
        %s180 = sadd.s32 %s178, %s179
        %s181 = smul.addr %s180, 8
        %s182 = scalar_lea.vmem %s0, %s181
        %s183 = smul.u32 64, %s18
      $region28: #{dt_forward.89} parent=23 // pred_fallthru
        _
      // Predicated region
      $region29: #{dt_forward.89} parent=23 // pred_check
        %p184 = pneg %p70
      $region30: #{dt_forward.89} parent=23 // pred_check_branch
        %186 = sbr.rel (%p184) target = $region32
      $region31: #{dt_forward.89} parent=23 // pred_region
        %p187 = scmp.lt.s32.totalorder %s17, 1
        %s188 = scalar_select %p187, %s17, 1
        %s189 = smul.addr %s188, 8
        %s190 = scalar_lea.vmem %s1, %s189
      $region32: #{dt_forward.89} parent=23 // pred_fallthru
        _
    $region24: #{dt_forward.89} parent=5 // pred_fallthru
      _
    %p191 = scmp.le.s32.totalorder 1, %s10
    %p192 = scmp.lt.s32.totalorder %s10, 5
    %p193 = pnand %p191, %p192
    %p194 = pneg %p193
    // Predicated region
    $region33: #{dt_forward.89} parent=5 // pred_check
      _
    $region34: #{dt_forward.89} parent=5 // pred_check_branch
      %196 = sbr.rel (%p193) target = $region36
    $region35: #{dt_forward.89} parent=5 // pred_region
      %s197 = ssub.s32 %s10, 1
      %s198 = smul.u32 64, %s20
      %p199 = scmp.lt.s32.totalorder %s19, 1
      %s200 = scalar_select %p199, %s19, 1
      %p201 = scmp.lt.s32.totalorder %s198, 127
      %s202 = scalar_select %p201, %s198, 127
      %s203 = smul.addr %s200, 128
      %s204 = sadd.s32 %s202, %s203
      %s205 = smul.addr %s204, 8
      %s206 = scalar_lea.vmem %s0, %s205
      %p207 = pneg %p50
      %p208 = pneg %p47
      %p209 = scmp.lt.s32.totalorder %s19, 1
      %s210 = scalar_select %p209, %s19, 1
      %s211 = smul.addr %s210, 8
      %s212 = scalar_lea.vmem %s1, %s211
      %p213 = pneg %p76
      %p214 = pneg %p73
      %p215 = pneg %p97
      %p216 = pneg %p94
      %p217 = pneg %p118
      %p218 = pneg %p115
      %p219 = pneg %p146
      %p220 = pneg %p143
      %s221 = smul.u32 64, %s20
      %p222 = scmp.lt.s32.totalorder %s19, 1
      %s223 = scalar_select %p222, %s19, 1
      %p224 = scmp.lt.s32.totalorder %s221, 127
      %s225 = scalar_select %p224, %s221, 127
      %s226 = smul.addr %s223, 128
      %s227 = sadd.s32 %s225, %s226
      %s228 = smul.addr %s227, 8
      %s229 = scalar_lea.vmem %s4, %s228
      %s230 = smul.u32 64, %s20
      %p231 = scmp.lt.s32.totalorder %s19, 1
      %s232 = scalar_select %p231, %s19, 1
      %p233 = scmp.lt.s32.totalorder %s230, 127
      %s234 = scalar_select %p233, %s230, 127
      %s235 = smul.addr %s232, 128
      %s236 = sadd.s32 %s234, %s235
      %s237 = smul.addr %s236, 8
      %s238 = scalar_lea.vmem %s0, %s237
      %s239 = smul.u32 64, %s20
      %p240 = scmp.lt.s32.totalorder %s19, 1
      %s241 = scalar_select %p240, %s19, 1
      %s242 = smul.addr %s241, 8
      %s243 = scalar_lea.vmem %s1, %s242
      %s244 = smul.u32 64, %s20
      %p245 = scmp.lt.s32.totalorder %s19, 1
      %s246 = scalar_select %p245, %s19, 1
      %p247 = scmp.lt.s32.totalorder %s244, 127
      %s248 = scalar_select %p247, %s244, 127
      %s249 = smul.addr %s246, 128
      %s250 = sadd.s32 %s248, %s249
      %s251 = smul.addr %s250, 8
      %s252 = scalar_lea.vmem %s4, %s251
      %s253 = smul.u32 64, %s20
      %v254 = vld [vmem:[%s238] sm:$0xff]
      %v255 = vld [vmem:[%s238 + $0x8] sm:$0xff]
      %v256 = vld [vmem:[%s238 + $0x10] sm:$0xff]
      %v257 = vld [vmem:[%s238 + $0x18] sm:$0xff]
      %v258 = vld [vmem:[%s238 + $0x20] sm:$0xff]
      %v259 = vld [vmem:[%s238 + $0x28] sm:$0xff]
      %v260 = vld [vmem:[%s238 + $0x30] sm:$0xff]
      %v261 = vld [vmem:[%s238 + $0x38] sm:$0xff]
      %v262 = vld [vmem:[%s238 + $0x40] sm:$0xff]
      %v263 = vld [vmem:[%s238 + $0x48] sm:$0xff]
      %v264 = vld [vmem:[%s238 + $0x50] sm:$0xff]
      %v265 = vld [vmem:[%s238 + $0x58] sm:$0xff]
      %v266 = vld [vmem:[%s238 + $0x60] sm:$0xff]
      %v267 = vld [vmem:[%s238 + $0x68] sm:$0xff]
      %v268 = vld [vmem:[%s238 + $0x70] sm:$0xff]
      %v269 = vld [vmem:[%s238 + $0x78] sm:$0xff]
      %v270 = vld [vmem:[%s238 + $0x80] sm:$0xff]
      %v271 = vld [vmem:[%s238 + $0x88] sm:$0xff]
      %v272 = vld [vmem:[%s238 + $0x90] sm:$0xff]
      %v273 = vld [vmem:[%s238 + $0x98] sm:$0xff]
      %v274 = vld [vmem:[%s238 + $0xa0] sm:$0xff]
      %v275 = vld [vmem:[%s238 + $0xa8] sm:$0xff]
      %v276 = vld [vmem:[%s238 + $0xb0] sm:$0xff]
      %v277 = vld [vmem:[%s238 + $0xb8] sm:$0xff]
      %v278 = vld [vmem:[%s238 + $0xc0] sm:$0xff]
      %v279 = vld [vmem:[%s238 + $0xc8] sm:$0xff]
      %v280 = vld [vmem:[%s238 + $0xd0] sm:$0xff]
      %v281 = vld [vmem:[%s238 + $0xd8] sm:$0xff]
      %v282 = vld [vmem:[%s238 + $0xe0] sm:$0xff]
      %v283 = vld [vmem:[%s238 + $0xe8] sm:$0xff]
      %v284 = vld [vmem:[%s238 + $0xf0] sm:$0xff]
      %v285 = vld [vmem:[%s238 + $0xf8] sm:$0xff]
      %v286 = vld [vmem:[%s238 + $0x100] sm:$0xff]
      %v287 = vld [vmem:[%s238 + $0x108] sm:$0xff]
      %v288 = vld [vmem:[%s238 + $0x110] sm:$0xff]
      %v289 = vld [vmem:[%s238 + $0x118] sm:$0xff]
      %v290 = vld [vmem:[%s238 + $0x120] sm:$0xff]
      %v291 = vld [vmem:[%s238 + $0x128] sm:$0xff]
      %v292 = vld [vmem:[%s238 + $0x130] sm:$0xff]
      %v293 = vld [vmem:[%s238 + $0x138] sm:$0xff]
      %v294 = vld [vmem:[%s238 + $0x140] sm:$0xff]
      %v295 = vld [vmem:[%s238 + $0x148] sm:$0xff]
      %v296 = vld [vmem:[%s238 + $0x150] sm:$0xff]
      %v297 = vld [vmem:[%s238 + $0x158] sm:$0xff]
      %v298 = vld [vmem:[%s238 + $0x160] sm:$0xff]
      %v299 = vld [vmem:[%s238 + $0x168] sm:$0xff]
      %v300 = vld [vmem:[%s238 + $0x170] sm:$0xff]
      %v301 = vld [vmem:[%s238 + $0x178] sm:$0xff]
      %v302 = vld [vmem:[%s238 + $0x180] sm:$0xff]
      %v303 = vld [vmem:[%s238 + $0x188] sm:$0xff]
      %v304 = vld [vmem:[%s238 + $0x190] sm:$0xff]
      %v305 = vld [vmem:[%s238 + $0x198] sm:$0xff]
      %v306 = vld [vmem:[%s238 + $0x1a0] sm:$0xff]
      %v307 = vld [vmem:[%s238 + $0x1a8] sm:$0xff]
      %v308 = vld [vmem:[%s238 + $0x1b0] sm:$0xff]
      %v309 = vld [vmem:[%s238 + $0x1b8] sm:$0xff]
      %v310 = vld [vmem:[%s238 + $0x1c0] sm:$0xff]
      %v311 = vld [vmem:[%s238 + $0x1c8] sm:$0xff]
      %v312 = vld [vmem:[%s238 + $0x1d0] sm:$0xff]
      %v313 = vld [vmem:[%s238 + $0x1d8] sm:$0xff]
      %v314 = vld [vmem:[%s238 + $0x1e0] sm:$0xff]
      %v315 = vld [vmem:[%s238 + $0x1e8] sm:$0xff]
      %v316 = vld [vmem:[%s238 + $0x1f0] sm:$0xff]
      %v317 = vld [vmem:[%s238 + $0x1f8] sm:$0xff]
      %v318 = vld [vmem:[%s243] sm:$0xff]
      %v319 = vmul.f32 %v318, 0.0009765625
      %v320 = vmul.f32 %v319, %v319
      %v322 = vrot.slane %v320, 7
      %v324 = vsub.f32 %v319, %v322
      %v325 = vadd.f32 %v324, 0.001
      %v326 = vrsqrt.pop %v325
      %v327 = vlaneseq
      %v328 = vshrl.u32 %v327, 7
      %v329 = vsub.s32 0, %v328
      %v330 = vrot.slane %v319, %v329
      %v331 = vsub.f32 %v254, %v330
      %v332 = vsub.f32 %v255, %v330
      %v333 = vsub.f32 %v256, %v330
      %v334 = vsub.f32 %v257, %v330
      %v335 = vsub.f32 %v258, %v330
      %v336 = vsub.f32 %v259, %v330
      %v337 = vsub.f32 %v260, %v330
      %v338 = vsub.f32 %v261, %v330
      %v339 = vsub.f32 %v262, %v330
      %v340 = vsub.f32 %v263, %v330
      %v341 = vsub.f32 %v264, %v330
      %v342 = vsub.f32 %v265, %v330
      %v343 = vsub.f32 %v266, %v330
      %v344 = vsub.f32 %v267, %v330
      %v345 = vsub.f32 %v268, %v330
      %v346 = vsub.f32 %v269, %v330
      %v347 = vsub.f32 %v270, %v330
      %v348 = vsub.f32 %v271, %v330
      %v349 = vsub.f32 %v272, %v330
      %v350 = vsub.f32 %v273, %v330
      %v351 = vsub.f32 %v274, %v330
      %v352 = vsub.f32 %v275, %v330
      %v353 = vsub.f32 %v276, %v330
      %v354 = vsub.f32 %v277, %v330
      %v355 = vsub.f32 %v278, %v330
      %v356 = vsub.f32 %v279, %v330
      %v357 = vsub.f32 %v280, %v330
      %v358 = vsub.f32 %v281, %v330
      %v359 = vsub.f32 %v282, %v330
      %v360 = vsub.f32 %v283, %v330
      %v361 = vsub.f32 %v284, %v330
      %v362 = vsub.f32 %v285, %v330
      %v363 = vsub.f32 %v286, %v330
      %v364 = vsub.f32 %v287, %v330
      %v365 = vsub.f32 %v288, %v330
      %v366 = vsub.f32 %v289, %v330
      %v367 = vsub.f32 %v290, %v330
      %v368 = vsub.f32 %v291, %v330
      %v369 = vsub.f32 %v292, %v330
      %v370 = vsub.f32 %v293, %v330
      %v371 = vsub.f32 %v294, %v330
      %v372 = vsub.f32 %v295, %v330
      %v373 = vsub.f32 %v296, %v330
      %v374 = vsub.f32 %v297, %v330
      %v375 = vsub.f32 %v298, %v330
      %v376 = vsub.f32 %v299, %v330
      %v377 = vsub.f32 %v300, %v330
      %v378 = vsub.f32 %v301, %v330
      %v379 = vsub.f32 %v302, %v330
      %v380 = vsub.f32 %v303, %v330
      %v381 = vsub.f32 %v304, %v330
      %v382 = vsub.f32 %v305, %v330
      %v383 = vsub.f32 %v306, %v330
      %v384 = vsub.f32 %v307, %v330
      %v385 = vsub.f32 %v308, %v330
      %v386 = vsub.f32 %v309, %v330
      %v387 = vsub.f32 %v310, %v330
      %v388 = vsub.f32 %v311, %v330
      %v389 = vsub.f32 %v312, %v330
      %v390 = vsub.f32 %v313, %v330
      %v391 = vsub.f32 %v314, %v330
      %v392 = vsub.f32 %v315, %v330
      %v393 = vsub.f32 %v316, %v330
      %v394 = vsub.f32 %v317, %v330
      %v395 = vld [vmem:[%s2] sm:$0x1]
      %v397 = vlaneseq
      %v398 = vshrl.u32 %v397, 7
      %v399 = vsub.s32 0, %v398
      %v400 = vrot.slane %v395, %v399
      %v402 = vmul.f32 %v326, %v400
      %v403 = vlaneseq
      %v404 = vshrl.u32 %v403, 7
      %v405 = vsub.s32 1, %v404
      %v406 = vrot.slane %v402, %v405
      %v407 = vmul.f32 %v331, %v406
      %v408 = vmul.f32 %v332, %v406
      %v409 = vmul.f32 %v333, %v406
      %v410 = vmul.f32 %v334, %v406
      %v411 = vmul.f32 %v335, %v406
      %v412 = vmul.f32 %v336, %v406
      %v413 = vmul.f32 %v337, %v406
      %v414 = vmul.f32 %v338, %v406
      %v415 = vmul.f32 %v339, %v406
      %v416 = vmul.f32 %v340, %v406
      %v417 = vmul.f32 %v341, %v406
      %v418 = vmul.f32 %v342, %v406
      %v419 = vmul.f32 %v343, %v406
      %v420 = vmul.f32 %v344, %v406
      %v421 = vmul.f32 %v345, %v406
      %v422 = vmul.f32 %v346, %v406
      %v423 = vmul.f32 %v347, %v406
      %v424 = vmul.f32 %v348, %v406
      %v425 = vmul.f32 %v349, %v406
      %v426 = vmul.f32 %v350, %v406
      %v427 = vmul.f32 %v351, %v406
      %v428 = vmul.f32 %v352, %v406
      %v429 = vmul.f32 %v353, %v406
      %v430 = vmul.f32 %v354, %v406
      %v431 = vmul.f32 %v355, %v406
      %v432 = vmul.f32 %v356, %v406
      %v433 = vmul.f32 %v357, %v406
      %v434 = vmul.f32 %v358, %v406
      %v435 = vmul.f32 %v359, %v406
      %v436 = vmul.f32 %v360, %v406
      %v437 = vmul.f32 %v361, %v406
      %v438 = vmul.f32 %v362, %v406
      %v439 = vmul.f32 %v363, %v406
      %v440 = vmul.f32 %v364, %v406
      %v441 = vmul.f32 %v365, %v406
      %v442 = vmul.f32 %v366, %v406
      %v443 = vmul.f32 %v367, %v406
      %v444 = vmul.f32 %v368, %v406
      %v445 = vmul.f32 %v369, %v406
      %v446 = vmul.f32 %v370, %v406
      %v447 = vmul.f32 %v371, %v406
      %v448 = vmul.f32 %v372, %v406
      %v449 = vmul.f32 %v373, %v406
      %v450 = vmul.f32 %v374, %v406
      %v451 = vmul.f32 %v375, %v406
      %v452 = vmul.f32 %v376, %v406
      %v453 = vmul.f32 %v377, %v406
      %v454 = vmul.f32 %v378, %v406
      %v455 = vmul.f32 %v379, %v406
      %v456 = vmul.f32 %v380, %v406
      %v457 = vmul.f32 %v381, %v406
      %v458 = vmul.f32 %v382, %v406
      %v459 = vmul.f32 %v383, %v406
      %v460 = vmul.f32 %v384, %v406
      %v461 = vmul.f32 %v385, %v406
      %v462 = vmul.f32 %v386, %v406
      %v463 = vmul.f32 %v387, %v406
      %v464 = vmul.f32 %v388, %v406
      %v465 = vmul.f32 %v389, %v406
      %v466 = vmul.f32 %v390, %v406
      %v467 = vmul.f32 %v391, %v406
      %v468 = vmul.f32 %v392, %v406
      %v469 = vmul.f32 %v393, %v406
      %v470 = vmul.f32 %v394, %v406
      %v471 = vld [vmem:[%s3] sm:$0x1]
      %v473 = vlaneseq
      %v474 = vshrl.u32 %v473, 7
      %v475 = vsub.s32 0, %v474
      %v476 = vrot.slane %v471, %v475
      %v478 = vadd.f32 %v407, %v476
      %v479 = vadd.f32 %v408, %v476
      %v480 = vadd.f32 %v409, %v476
      %v481 = vadd.f32 %v410, %v476
      %v482 = vadd.f32 %v411, %v476
      %v483 = vadd.f32 %v412, %v476
      %v484 = vadd.f32 %v413, %v476
      %v485 = vadd.f32 %v414, %v476
      %v486 = vadd.f32 %v415, %v476
      %v487 = vadd.f32 %v416, %v476
      %v488 = vadd.f32 %v417, %v476
      %v489 = vadd.f32 %v418, %v476
      %v490 = vadd.f32 %v419, %v476
      %v491 = vadd.f32 %v420, %v476
      %v492 = vadd.f32 %v421, %v476
      %v493 = vadd.f32 %v422, %v476
      %v494 = vadd.f32 %v423, %v476
      %v495 = vadd.f32 %v424, %v476
      %v496 = vadd.f32 %v425, %v476
      %v497 = vadd.f32 %v426, %v476
      %v498 = vadd.f32 %v427, %v476
      %v499 = vadd.f32 %v428, %v476
      %v500 = vadd.f32 %v429, %v476
      %v501 = vadd.f32 %v430, %v476
      %v502 = vadd.f32 %v431, %v476
      %v503 = vadd.f32 %v432, %v476
      %v504 = vadd.f32 %v433, %v476
      %v505 = vadd.f32 %v434, %v476
      %v506 = vadd.f32 %v435, %v476
      %v507 = vadd.f32 %v436, %v476
      %v508 = vadd.f32 %v437, %v476
      %v509 = vadd.f32 %v438, %v476
      %v510 = vadd.f32 %v439, %v476
      %v511 = vadd.f32 %v440, %v476
      %v512 = vadd.f32 %v441, %v476
      %v513 = vadd.f32 %v442, %v476
      %v514 = vadd.f32 %v443, %v476
      %v515 = vadd.f32 %v444, %v476
      %v516 = vadd.f32 %v445, %v476
      %v517 = vadd.f32 %v446, %v476
      %v518 = vadd.f32 %v447, %v476
      %v519 = vadd.f32 %v448, %v476
      %v520 = vadd.f32 %v449, %v476
      %v521 = vadd.f32 %v450, %v476
      %v522 = vadd.f32 %v451, %v476
      %v523 = vadd.f32 %v452, %v476
      %v524 = vadd.f32 %v453, %v476
      %v525 = vadd.f32 %v454, %v476
      %v526 = vadd.f32 %v455, %v476
      %v527 = vadd.f32 %v456, %v476
      %v528 = vadd.f32 %v457, %v476
      %v529 = vadd.f32 %v458, %v476
      %v530 = vadd.f32 %v459, %v476
      %v531 = vadd.f32 %v460, %v476
      %v532 = vadd.f32 %v461, %v476
      %v533 = vadd.f32 %v462, %v476
      %v534 = vadd.f32 %v463, %v476
      %v535 = vadd.f32 %v464, %v476
      %v536 = vadd.f32 %v465, %v476
      %v537 = vadd.f32 %v466, %v476
      %v538 = vadd.f32 %v467, %v476
      %v539 = vadd.f32 %v468, %v476
      %v540 = vadd.f32 %v469, %v476
      %v541 = vadd.f32 %v470, %v476
      %vm542 = vcmp.ge.f32.partialorder %v478, 0.0
      %vm543 = vcmp.ge.f32.partialorder %v479, 0.0
      %vm544 = vcmp.ge.f32.partialorder %v480, 0.0
      %vm545 = vcmp.ge.f32.partialorder %v481, 0.0
      %vm546 = vcmp.ge.f32.partialorder %v482, 0.0
      %vm547 = vcmp.ge.f32.partialorder %v483, 0.0
      %vm548 = vcmp.ge.f32.partialorder %v484, 0.0
      %vm549 = vcmp.ge.f32.partialorder %v485, 0.0
      %vm550 = vcmp.ge.f32.partialorder %v486, 0.0
      %vm551 = vcmp.ge.f32.partialorder %v487, 0.0
      %vm552 = vcmp.ge.f32.partialorder %v488, 0.0
      %vm553 = vcmp.ge.f32.partialorder %v489, 0.0
      %vm554 = vcmp.ge.f32.partialorder %v490, 0.0
      %vm555 = vcmp.ge.f32.partialorder %v491, 0.0
      %vm556 = vcmp.ge.f32.partialorder %v492, 0.0
      %vm557 = vcmp.ge.f32.partialorder %v493, 0.0
      %vm558 = vcmp.ge.f32.partialorder %v494, 0.0
      %vm559 = vcmp.ge.f32.partialorder %v495, 0.0
      %vm560 = vcmp.ge.f32.partialorder %v496, 0.0
      %vm561 = vcmp.ge.f32.partialorder %v497, 0.0
      %vm562 = vcmp.ge.f32.partialorder %v498, 0.0
      %vm563 = vcmp.ge.f32.partialorder %v499, 0.0
      %vm564 = vcmp.ge.f32.partialorder %v500, 0.0
      %vm565 = vcmp.ge.f32.partialorder %v501, 0.0
      %vm566 = vcmp.ge.f32.partialorder %v502, 0.0
      %vm567 = vcmp.ge.f32.partialorder %v503, 0.0
      %vm568 = vcmp.ge.f32.partialorder %v504, 0.0
      %vm569 = vcmp.ge.f32.partialorder %v505, 0.0
      %vm570 = vcmp.ge.f32.partialorder %v506, 0.0
      %vm571 = vcmp.ge.f32.partialorder %v507, 0.0
      %vm572 = vcmp.ge.f32.partialorder %v508, 0.0
      %vm573 = vcmp.ge.f32.partialorder %v509, 0.0
      %vm574 = vcmp.ge.f32.partialorder %v510, 0.0
      %vm575 = vcmp.ge.f32.partialorder %v511, 0.0
      %vm576 = vcmp.ge.f32.partialorder %v512, 0.0
      %vm577 = vcmp.ge.f32.partialorder %v513, 0.0
      %vm578 = vcmp.ge.f32.partialorder %v514, 0.0
      %vm579 = vcmp.ge.f32.partialorder %v515, 0.0
      %vm580 = vcmp.ge.f32.partialorder %v516, 0.0
      %vm581 = vcmp.ge.f32.partialorder %v517, 0.0
      %vm582 = vcmp.ge.f32.partialorder %v518, 0.0
      %vm583 = vcmp.ge.f32.partialorder %v519, 0.0
      %vm584 = vcmp.ge.f32.partialorder %v520, 0.0
      %vm585 = vcmp.ge.f32.partialorder %v521, 0.0
      %vm586 = vcmp.ge.f32.partialorder %v522, 0.0
      %vm587 = vcmp.ge.f32.partialorder %v523, 0.0
      %vm588 = vcmp.ge.f32.partialorder %v524, 0.0
      %vm589 = vcmp.ge.f32.partialorder %v525, 0.0
      %vm590 = vcmp.ge.f32.partialorder %v526, 0.0
      %vm591 = vcmp.ge.f32.partialorder %v527, 0.0
      %vm592 = vcmp.ge.f32.partialorder %v528, 0.0
      %vm593 = vcmp.ge.f32.partialorder %v529, 0.0
      %vm594 = vcmp.ge.f32.partialorder %v530, 0.0
      %vm595 = vcmp.ge.f32.partialorder %v531, 0.0
      %vm596 = vcmp.ge.f32.partialorder %v532, 0.0
      %vm597 = vcmp.ge.f32.partialorder %v533, 0.0
      %vm598 = vcmp.ge.f32.partialorder %v534, 0.0
      %vm599 = vcmp.ge.f32.partialorder %v535, 0.0
      %vm600 = vcmp.ge.f32.partialorder %v536, 0.0
      %vm601 = vcmp.ge.f32.partialorder %v537, 0.0
      %vm602 = vcmp.ge.f32.partialorder %v538, 0.0
      %vm603 = vcmp.ge.f32.partialorder %v539, 0.0
      %vm604 = vcmp.ge.f32.partialorder %v540, 0.0
      %vm605 = vcmp.ge.f32.partialorder %v541, 0.0
      %v606 = vmul.f32 %v478, 0.1
      %v607 = vmul.f32 %v479, 0.1
      %v608 = vmul.f32 %v480, 0.1
      %v609 = vmul.f32 %v481, 0.1
      %v610 = vmul.f32 %v482, 0.1
      %v611 = vmul.f32 %v483, 0.1
      %v612 = vmul.f32 %v484, 0.1
      %v613 = vmul.f32 %v485, 0.1
      %v614 = vmul.f32 %v486, 0.1
      %v615 = vmul.f32 %v487, 0.1
      %v616 = vmul.f32 %v488, 0.1
      %v617 = vmul.f32 %v489, 0.1
      %v618 = vmul.f32 %v490, 0.1
      %v619 = vmul.f32 %v491, 0.1
      %v620 = vmul.f32 %v492, 0.1
      %v621 = vmul.f32 %v493, 0.1
      %v622 = vmul.f32 %v494, 0.1
      %v623 = vmul.f32 %v495, 0.1
      %v624 = vmul.f32 %v496, 0.1
      %v625 = vmul.f32 %v497, 0.1
      %v626 = vmul.f32 %v498, 0.1
      %v627 = vmul.f32 %v499, 0.1
      %v628 = vmul.f32 %v500, 0.1
      %v629 = vmul.f32 %v501, 0.1
      %v630 = vmul.f32 %v502, 0.1
      %v631 = vmul.f32 %v503, 0.1
      %v632 = vmul.f32 %v504, 0.1
      %v633 = vmul.f32 %v505, 0.1
      %v634 = vmul.f32 %v506, 0.1
      %v635 = vmul.f32 %v507, 0.1
      %v636 = vmul.f32 %v508, 0.1
      %v637 = vmul.f32 %v509, 0.1
      %v638 = vmul.f32 %v510, 0.1
      %v639 = vmul.f32 %v511, 0.1
      %v640 = vmul.f32 %v512, 0.1
      %v641 = vmul.f32 %v513, 0.1
      %v642 = vmul.f32 %v514, 0.1
      %v643 = vmul.f32 %v515, 0.1
      %v644 = vmul.f32 %v516, 0.1
      %v645 = vmul.f32 %v517, 0.1
      %v646 = vmul.f32 %v518, 0.1
      %v647 = vmul.f32 %v519, 0.1
      %v648 = vmul.f32 %v520, 0.1
      %v649 = vmul.f32 %v521, 0.1
      %v650 = vmul.f32 %v522, 0.1
      %v651 = vmul.f32 %v523, 0.1
      %v652 = vmul.f32 %v524, 0.1
      %v653 = vmul.f32 %v525, 0.1
      %v654 = vmul.f32 %v526, 0.1
      %v655 = vmul.f32 %v527, 0.1
      %v656 = vmul.f32 %v528, 0.1
      %v657 = vmul.f32 %v529, 0.1
      %v658 = vmul.f32 %v530, 0.1
      %v659 = vmul.f32 %v531, 0.1
      %v660 = vmul.f32 %v532, 0.1
      %v661 = vmul.f32 %v533, 0.1
      %v662 = vmul.f32 %v534, 0.1
      %v663 = vmul.f32 %v535, 0.1
      %v664 = vmul.f32 %v536, 0.1
      %v665 = vmul.f32 %v537, 0.1
      %v666 = vmul.f32 %v538, 0.1
      %v667 = vmul.f32 %v539, 0.1
      %v668 = vmul.f32 %v540, 0.1
      %v669 = vmul.f32 %v541, 0.1
      %v670 = vsel %vm542, %v478, %v606
      %v671 = vsel %vm543, %v479, %v607
      %v672 = vsel %vm544, %v480, %v608
      %v673 = vsel %vm545, %v481, %v609
      %v674 = vsel %vm546, %v482, %v610
      %v675 = vsel %vm547, %v483, %v611
      %v676 = vsel %vm548, %v484, %v612
      %v677 = vsel %vm549, %v485, %v613
      %v678 = vsel %vm550, %v486, %v614
      %v679 = vsel %vm551, %v487, %v615
      %v680 = vsel %vm552, %v488, %v616
      %v681 = vsel %vm553, %v489, %v617
      %v682 = vsel %vm554, %v490, %v618
      %v683 = vsel %vm555, %v491, %v619
      %v684 = vsel %vm556, %v492, %v620
      %v685 = vsel %vm557, %v493, %v621
      %v686 = vsel %vm558, %v494, %v622
      %v687 = vsel %vm559, %v495, %v623
      %v688 = vsel %vm560, %v496, %v624
      %v689 = vsel %vm561, %v497, %v625
      %v690 = vsel %vm562, %v498, %v626
      %v691 = vsel %vm563, %v499, %v627
      %v692 = vsel %vm564, %v500, %v628
      %v693 = vsel %vm565, %v501, %v629
      %v694 = vsel %vm566, %v502, %v630
      %v695 = vsel %vm567, %v503, %v631
      %v696 = vsel %vm568, %v504, %v632
      %v697 = vsel %vm569, %v505, %v633
      %v698 = vsel %vm570, %v506, %v634
      %v699 = vsel %vm571, %v507, %v635
      %v700 = vsel %vm572, %v508, %v636
      %v701 = vsel %vm573, %v509, %v637
      %v702 = vsel %vm574, %v510, %v638
      %v703 = vsel %vm575, %v511, %v639
      %v704 = vsel %vm576, %v512, %v640
      %v705 = vsel %vm577, %v513, %v641
      %v706 = vsel %vm578, %v514, %v642
      %v707 = vsel %vm579, %v515, %v643
      %v708 = vsel %vm580, %v516, %v644
      %v709 = vsel %vm581, %v517, %v645
      %v710 = vsel %vm582, %v518, %v646
      %v711 = vsel %vm583, %v519, %v647
      %v712 = vsel %vm584, %v520, %v648
      %v713 = vsel %vm585, %v521, %v649
      %v714 = vsel %vm586, %v522, %v650
      %v715 = vsel %vm587, %v523, %v651
      %v716 = vsel %vm588, %v524, %v652
      %v717 = vsel %vm589, %v525, %v653
      %v718 = vsel %vm590, %v526, %v654
      %v719 = vsel %vm591, %v527, %v655
      %v720 = vsel %vm592, %v528, %v656
      %v721 = vsel %vm593, %v529, %v657
      %v722 = vsel %vm594, %v530, %v658
      %v723 = vsel %vm595, %v531, %v659
      %v724 = vsel %vm596, %v532, %v660
      %v725 = vsel %vm597, %v533, %v661
      %v726 = vsel %vm598, %v534, %v662
      %v727 = vsel %vm599, %v535, %v663
      %v728 = vsel %vm600, %v536, %v664
      %v729 = vsel %vm601, %v537, %v665
      %v730 = vsel %vm602, %v538, %v666
      %v731 = vsel %vm603, %v539, %v667
      %v732 = vsel %vm604, %v540, %v668
      %v733 = vsel %vm605, %v541, %v669
      %734 = vst [vmem:[%s252] sm:$0xff] %v670
      %735 = vst [vmem:[%s252 + $0x8] sm:$0xff] %v671
      %736 = vst [vmem:[%s252 + $0x10] sm:$0xff] %v672
      %737 = vst [vmem:[%s252 + $0x18] sm:$0xff] %v673
      %738 = vst [vmem:[%s252 + $0x20] sm:$0xff] %v674
      %739 = vst [vmem:[%s252 + $0x28] sm:$0xff] %v675
      %740 = vst [vmem:[%s252 + $0x30] sm:$0xff] %v676
      %741 = vst [vmem:[%s252 + $0x38] sm:$0xff] %v677
      %742 = vst [vmem:[%s252 + $0x40] sm:$0xff] %v678
      %743 = vst [vmem:[%s252 + $0x48] sm:$0xff] %v679
      %744 = vst [vmem:[%s252 + $0x50] sm:$0xff] %v680
      %745 = vst [vmem:[%s252 + $0x58] sm:$0xff] %v681
      %746 = vst [vmem:[%s252 + $0x60] sm:$0xff] %v682
      %747 = vst [vmem:[%s252 + $0x68] sm:$0xff] %v683
      %748 = vst [vmem:[%s252 + $0x70] sm:$0xff] %v684
      %749 = vst [vmem:[%s252 + $0x78] sm:$0xff] %v685
      %750 = vst [vmem:[%s252 + $0x80] sm:$0xff] %v686
      %751 = vst [vmem:[%s252 + $0x88] sm:$0xff] %v687
      %752 = vst [vmem:[%s252 + $0x90] sm:$0xff] %v688
      %753 = vst [vmem:[%s252 + $0x98] sm:$0xff] %v689
      %754 = vst [vmem:[%s252 + $0xa0] sm:$0xff] %v690
      %755 = vst [vmem:[%s252 + $0xa8] sm:$0xff] %v691
      %756 = vst [vmem:[%s252 + $0xb0] sm:$0xff] %v692
      %757 = vst [vmem:[%s252 + $0xb8] sm:$0xff] %v693
      %758 = vst [vmem:[%s252 + $0xc0] sm:$0xff] %v694
      %759 = vst [vmem:[%s252 + $0xc8] sm:$0xff] %v695
      %760 = vst [vmem:[%s252 + $0xd0] sm:$0xff] %v696
      %761 = vst [vmem:[%s252 + $0xd8] sm:$0xff] %v697
      %762 = vst [vmem:[%s252 + $0xe0] sm:$0xff] %v698
      %763 = vst [vmem:[%s252 + $0xe8] sm:$0xff] %v699
      %764 = vst [vmem:[%s252 + $0xf0] sm:$0xff] %v700
      %765 = vst [vmem:[%s252 + $0xf8] sm:$0xff] %v701
      %766 = vst [vmem:[%s252 + $0x100] sm:$0xff] %v702
      %767 = vst [vmem:[%s252 + $0x108] sm:$0xff] %v703
      %768 = vst [vmem:[%s252 + $0x110] sm:$0xff] %v704
      %769 = vst [vmem:[%s252 + $0x118] sm:$0xff] %v705
      %770 = vst [vmem:[%s252 + $0x120] sm:$0xff] %v706
      %771 = vst [vmem:[%s252 + $0x128] sm:$0xff] %v707
      %772 = vst [vmem:[%s252 + $0x130] sm:$0xff] %v708
      %773 = vst [vmem:[%s252 + $0x138] sm:$0xff] %v709
      %774 = vst [vmem:[%s252 + $0x140] sm:$0xff] %v710
      %775 = vst [vmem:[%s252 + $0x148] sm:$0xff] %v711
      %776 = vst [vmem:[%s252 + $0x150] sm:$0xff] %v712
      %777 = vst [vmem:[%s252 + $0x158] sm:$0xff] %v713
      %778 = vst [vmem:[%s252 + $0x160] sm:$0xff] %v714
      %779 = vst [vmem:[%s252 + $0x168] sm:$0xff] %v715
      %780 = vst [vmem:[%s252 + $0x170] sm:$0xff] %v716
      %781 = vst [vmem:[%s252 + $0x178] sm:$0xff] %v717
      %782 = vst [vmem:[%s252 + $0x180] sm:$0xff] %v718
      %783 = vst [vmem:[%s252 + $0x188] sm:$0xff] %v719
      %784 = vst [vmem:[%s252 + $0x190] sm:$0xff] %v720
      %785 = vst [vmem:[%s252 + $0x198] sm:$0xff] %v721
      %786 = vst [vmem:[%s252 + $0x1a0] sm:$0xff] %v722
      %787 = vst [vmem:[%s252 + $0x1a8] sm:$0xff] %v723
      %788 = vst [vmem:[%s252 + $0x1b0] sm:$0xff] %v724
      %789 = vst [vmem:[%s252 + $0x1b8] sm:$0xff] %v725
      %790 = vst [vmem:[%s252 + $0x1c0] sm:$0xff] %v726
      %791 = vst [vmem:[%s252 + $0x1c8] sm:$0xff] %v727
      %792 = vst [vmem:[%s252 + $0x1d0] sm:$0xff] %v728
      %793 = vst [vmem:[%s252 + $0x1d8] sm:$0xff] %v729
      %794 = vst [vmem:[%s252 + $0x1e0] sm:$0xff] %v730
      %795 = vst [vmem:[%s252 + $0x1e8] sm:$0xff] %v731
      %796 = vst [vmem:[%s252 + $0x1f0] sm:$0xff] %v732
      %797 = vst [vmem:[%s252 + $0x1f8] sm:$0xff] %v733
      %s798 = smul.u32 64, %s20
      %p799 = scmp.lt.s32.totalorder %s19, 1
      %s800 = scalar_select %p799, %s19, 1
      %p801 = scmp.lt.s32.totalorder %s798, 127
      %s802 = scalar_select %p801, %s798, 127
      %s803 = smul.addr %s800, 128
      %s804 = sadd.s32 %s802, %s803
      %s805 = smul.addr %s804, 8
      %s806 = scalar_lea.vmem %s4, %s805
      // Predicated region
      $region37: #{dt_forward.89} parent=35 // pred_check
        %p807 = pneg %p143
      $region38: #{dt_forward.89} parent=35 // pred_check_branch
        %809 = sbr.rel (%p807) target = $region40
      $region39: #{dt_forward.89} parent=35 // pred_region
        %s810 = smul.u32 64, %s20
      $region40: #{dt_forward.89} parent=35 // pred_fallthru
        _
    $region36: #{dt_forward.89} parent=5 // pred_fallthru
      _
    %p811 = scmp.le.s32.totalorder 2, %s10
    // Predicated region
    $region41: #{dt_forward.89} parent=5 // pred_check
      %p812 = pneg %p811
    $region42: #{dt_forward.89} parent=5 // pred_check_branch
      %814 = sbr.rel (%p812) target = $region44
    $region43: #{dt_forward.89} parent=5 // pred_region
      %s815 = ssub.s32 %s10, 2
      // Predicated region
      $region45: #{dt_forward.89} parent=43 // pred_check
        %p816 = pneg %p149
      $region46: #{dt_forward.89} parent=43 // pred_check_branch
        %818 = sbr.rel (%p816) target = $region48
      $region47: #{dt_forward.89} parent=43 // pred_region
        %s819 = smul.u32 64, %s22
        %p820 = scmp.lt.s32.totalorder %s21, 1
        %s821 = scalar_select %p820, %s21, 1
        %p822 = scmp.lt.s32.totalorder %s819, 127
        %s823 = scalar_select %p822, %s819, 127
        %s824 = smul.addr %s821, 128
        %s825 = sadd.s32 %s823, %s824
        %s826 = smul.addr %s825, 8
        %s827 = scalar_lea.vmem %s4, %s826
      $region48: #{dt_forward.89} parent=43 // pred_fallthru
        _
    $region44: #{dt_forward.89} parent=5 // pred_fallthru
      _
  $region6: #{dt_forward.89} parent=0 // loop_footer
    %s14 = sadd.s32 1, %s10
  $region7: #{dt_forward.89} parent=0 // loop_footer_branch
    %9 = sbr.rel target = $region3
  $region8: #{dt_forward.89} parent=0 // loop_exit
    _

// kernel: dt_forward.88
$region0: #{dt_forward.88}
  #allocation0 [shape = 'u32[]', space=smem, size = 0x4, offset = 0x4, fixed_abs, tag = 'smem constant byte address 0x4 - core index']
  #allocation1 [shape = 'u32[144,128]{1,0:T(1,128)}', space=vmem, size = 0x12000, scoped, tag = 'internal scratch']
  %s0 = inlined_call_operand.vmem [shape: bf16[2,1024,36], index: 0, kind: input, shape index: {}]
  %s1 = inlined_call_operand.vmem [shape: bf16[36,128], index: 1, kind: input, shape index: {}]
  %s2 = inlined_call_operand.vmem [shape: f32[2,1024,128], index: 2, kind: output, shape index: {0}]
  %s3 = inlined_call_operand.vmem [shape: f32[2,8,128], index: 3, kind: output, shape index: {1}]
  %4 = xla_tuple %s2, %s3
  %s5 = sld [smem:[#allocation0]]
  $region57: #{dt_forward.88} parent=0
    _
  %s7 = ssub.s32 1, %s5
  %s8 = scalar_select 0, %s7, %s5
  loop: start=0, step=1, limit=6
  $region2: #{dt_forward.88} parent=0 // loop_pre_header
    _
  $region3: #{dt_forward.88} parent=0 // loop_header
    %s10 = sphi 0, %s14
    %p11 = scmp.ge.s32.totalorder %s10, 6
    %s17 = sphi 0, %s29
    %s18 = sphi 0, %s25
    %s19 = sphi 0, %s17
    %s20 = sphi 0, %s18
    %s21 = sphi 0, %s19
    %s22 = sphi 0, %s20
    %s34 = sphi 0, %s36
    %s37 = sphi 0, %s34
    %s38 = sphi 0, %s37
    %s54 = sphi 0, %s38
    %s58 = sphi 0, %s58
    %s60 = sphi 0, %s58
    %s61 = sphi 0, %s60
    %s75 = sphi 0, %s61
    %s83 = sphi 0, %s85
    %s86 = sphi 0, %s83
    %s87 = sphi 0, %s86
    %s103 = sphi 0, %s87
    %s109 = sphi 0, %s111
    %s112 = sphi 0, %s109
    %s113 = sphi 0, %s112
    %s129 = sphi 0, %s113
  $region4: #{dt_forward.88} parent=0 // loop_header_branch
    %13 = sbr.rel (%p11) target = $region8
  $region5: #{dt_forward.88} parent=0 // loop_body
    %s15 = ssub.s32 %s10, 1
    %s16 = ssub.s32 %s10, 2
    %s23 = sadd.s32 1, %s18
    %p24 = scmp.ge.s32.totalorder %s23, 2
    %s25 = scalar_select %p24, 0, %s23
    %s26 = sadd.s32 1, %s17
    %s27 = scalar_select %p24, %s26, %s17
    %p28 = scmp.ge.s32.totalorder %s27, 2
    %s29 = scalar_select %p28, 0, %s27
    %s30 = ssub.s32 %s17, %s29
    %s31 = ssub.s32 %s18, %s25
    %s32 = sor.u32 %s30, %s31
    %p33 = scmp.eq.s32.totalorder %s32, 0
    %s35 = sadd.s32 %s34, 1
    %s36 = scalar_select %p33, %s34, %s35
    %p39 = pneg %p33
    %p40 = scmp.eq.s32.totalorder %s10, 3
    %p41 = por %p39, %p40
    %p42 = scmp.ne.s32.totalorder %s34, %s37
    %p43 = scmp.eq.s32.totalorder %s10, 0
    %p44 = por %p42, %p43
    %p45 = scmp.ne.s32.totalorder %s34, %s37
    %p46 = scmp.eq.s32.totalorder %s15, 3
    %p47 = por %p45, %p46
    %p48 = scmp.ne.s32.totalorder %s37, %s38
    %p49 = scmp.eq.s32.totalorder %s15, 0
    %p50 = por %p48, %p49
    %p51 = scmp.ne.s32.totalorder %s37, %s38
    %p52 = scmp.eq.s32.totalorder %s16, 3
    %p53 = por %p51, %p52
    %p55 = scmp.ne.s32.totalorder %s38, %s54
    %p56 = scmp.eq.s32.totalorder %s16, 0
    %p57 = por %p55, %p56
    %s59 = sadd.s32 %s58, 1
    %p62 = scmp.eq.s32.totalorder %s10, 3
    %p63 = scmp.ne.s32.totalorder %s58, %s60
    %p64 = scmp.eq.s32.totalorder %s10, 0
    %p65 = por %p63, %p64
    %p66 = scmp.ne.s32.totalorder %s58, %s60
    %p67 = scmp.eq.s32.totalorder %s15, 3
    %p68 = por %p66, %p67
    %p69 = scmp.ne.s32.totalorder %s60, %s61
    %p70 = scmp.eq.s32.totalorder %s15, 0
    %p71 = por %p69, %p70
    %p72 = scmp.ne.s32.totalorder %s60, %s61
    %p73 = scmp.eq.s32.totalorder %s16, 3
    %p74 = por %p72, %p73
    %p76 = scmp.ne.s32.totalorder %s61, %s75
    %p77 = scmp.eq.s32.totalorder %s16, 0
    %p78 = por %p76, %p77
    %s79 = ssub.s32 %s17, %s29
    %s80 = ssub.s32 %s18, %s25
    %s81 = sor.u32 %s79, %s80
    %p82 = scmp.eq.s32.totalorder %s81, 0
    %s84 = sadd.s32 %s83, 1
    %s85 = scalar_select %p82, %s83, %s84
    %p88 = pneg %p82
    %p89 = scmp.eq.s32.totalorder %s10, 3
    %p90 = por %p88, %p89
    %p91 = scmp.ne.s32.totalorder %s83, %s86
    %p92 = scmp.eq.s32.totalorder %s10, 0
    %p93 = por %p91, %p92
    %p94 = scmp.ne.s32.totalorder %s83, %s86
    %p95 = scmp.eq.s32.totalorder %s15, 3
    %p96 = por %p94, %p95
    %p97 = scmp.ne.s32.totalorder %s86, %s87
    %p98 = scmp.eq.s32.totalorder %s15, 0
    %p99 = por %p97, %p98
    %p100 = scmp.ne.s32.totalorder %s86, %s87
    %p101 = scmp.eq.s32.totalorder %s16, 3
    %p102 = por %p100, %p101
    %p104 = scmp.ne.s32.totalorder %s87, %s103
    %p105 = scmp.eq.s32.totalorder %s16, 0
    %p106 = por %p104, %p105
    %s107 = ssub.s32 %s17, %s29
    %p108 = scmp.eq.s32.totalorder %s107, 0
    %s110 = sadd.s32 %s109, 1
    %s111 = scalar_select %p108, %s109, %s110
    %p114 = pneg %p108
    %p115 = scmp.eq.s32.totalorder %s10, 3
    %p116 = por %p114, %p115
    %p117 = scmp.ne.s32.totalorder %s109, %s112
    %p118 = scmp.eq.s32.totalorder %s10, 0
    %p119 = por %p117, %p118
    %p120 = scmp.ne.s32.totalorder %s109, %s112
    %p121 = scmp.eq.s32.totalorder %s15, 3
    %p122 = por %p120, %p121
    %p123 = scmp.ne.s32.totalorder %s112, %s113
    %p124 = scmp.eq.s32.totalorder %s15, 0
    %p125 = por %p123, %p124
    %p126 = scmp.ne.s32.totalorder %s112, %s113
    %p127 = scmp.eq.s32.totalorder %s16, 3
    %p128 = por %p126, %p127
    %p130 = scmp.ne.s32.totalorder %s113, %s129
    %p131 = scmp.eq.s32.totalorder %s16, 0
    %p132 = por %p130, %p131
    %p133 = scmp.le.s32.totalorder 1, %s10
    %p134 = scmp.lt.s32.totalorder %s10, 5
    %p135 = pnand %p133, %p134
    %p136 = pneg %p135
    // Predicated region
    $region9: #{dt_forward.88} parent=5 // pred_check
      _
    $region10: #{dt_forward.88} parent=5 // pred_check_branch
      %138 = sbr.rel (%p135) target = $region12
    $region11: #{dt_forward.88} parent=5 // pred_region
      %s139 = ssub.s32 %s10, 1
      // Predicated region
      $region13: #{dt_forward.88} parent=11 // pred_check
        %p140 = pneg %p71
      $region14: #{dt_forward.88} parent=11 // pred_check_branch
        %142 = sbr.rel (%p140) target = $region16
      $region15: #{dt_forward.88} parent=11 // pred_region
        _
      $region16: #{dt_forward.88} parent=11 // pred_fallthru
        _
    $region12: #{dt_forward.88} parent=5 // pred_fallthru
      _
    %p143 = scmp.lt.s32.totalorder %s10, 4
    // Predicated region
    $region17: #{dt_forward.88} parent=5 // pred_check
      %p144 = pneg %p143
    $region18: #{dt_forward.88} parent=5 // pred_check_branch
      %146 = sbr.rel (%p144) target = $region20
    $region19: #{dt_forward.88} parent=5 // pred_region
      // Predicated region
      $region21: #{dt_forward.88} parent=19 // pred_check
        %p147 = pneg %p44
      $region22: #{dt_forward.88} parent=19 // pred_check_branch
        %149 = sbr.rel (%p147) target = $region24
      $region23: #{dt_forward.88} parent=19 // pred_region
        %s150 = smul.u32 64, %s18
        %p151 = scmp.lt.s32.totalorder %s17, 1
        %s152 = scalar_select %p151, %s17, 1
        %p153 = scmp.lt.s32.totalorder %s150, 127
        %s154 = scalar_select %p153, %s150, 127
        %s155 = smul.addr %s152, 128
        %s156 = sadd.s32 %s154, %s155
        %s157 = smul.addr %s156, 4
        %s158 = scalar_lea.vmem %s0, %s157
        %s159 = smul.u32 64, %s18
      $region24: #{dt_forward.88} parent=19 // pred_fallthru
        _
    $region20: #{dt_forward.88} parent=5 // pred_fallthru
      _
    %p160 = scmp.le.s32.totalorder 1, %s10
    %p161 = scmp.lt.s32.totalorder %s10, 5
    %p162 = pnand %p160, %p161
    %p163 = pneg %p162
    // Predicated region
    $region25: #{dt_forward.88} parent=5 // pred_check
      _
    $region26: #{dt_forward.88} parent=5 // pred_check_branch
      %165 = sbr.rel (%p162) target = $region28
    $region27: #{dt_forward.88} parent=5 // pred_region
      %s166 = ssub.s32 %s10, 1
      %s167 = smul.u32 64, %s20
      %p168 = scmp.lt.s32.totalorder %s19, 1
      %s169 = scalar_select %p168, %s19, 1
      %p170 = scmp.lt.s32.totalorder %s167, 127
      %s171 = scalar_select %p170, %s167, 127
      %s172 = smul.addr %s169, 128
      %s173 = sadd.s32 %s171, %s172
      %s174 = smul.addr %s173, 4
      %s175 = scalar_lea.vmem %s0, %s174
      %p176 = pneg %p50
      %p177 = pneg %p47
      %p178 = pneg %p71
      %p179 = pneg %p68
      %p180 = pneg %p99
      %p181 = pneg %p96
      %s182 = smul.u32 64, %s20
      %p183 = scmp.lt.s32.totalorder %s19, 1
      %s184 = scalar_select %p183, %s19, 1
      %p185 = scmp.lt.s32.totalorder %s182, 127
      %s186 = scalar_select %p185, %s182, 127
      %s187 = smul.addr %s184, 128
      %s188 = sadd.s32 %s186, %s187
      %s189 = smul.addr %s188, 8
      %s190 = scalar_lea.vmem %s2, %s189
      %p191 = pneg %p125
      %p192 = pneg %p122
      %p193 = scmp.lt.s32.totalorder %s19, 1
      %s194 = scalar_select %p193, %s19, 1
      %s195 = smul.addr %s194, 8
      %s196 = scalar_lea.vmem %s3, %s195
      %s197 = smul.u32 64, %s20
      %p198 = scmp.lt.s32.totalorder %s19, 1
      %s199 = scalar_select %p198, %s19, 1
      %p200 = scmp.lt.s32.totalorder %s197, 127
      %s201 = scalar_select %p200, %s197, 127
      %s202 = smul.addr %s199, 128
      %s203 = sadd.s32 %s201, %s202
      %s204 = smul.addr %s203, 4
      %s205 = scalar_lea.vmem %s0, %s204
      %s206 = smul.u32 64, %s20
      %s207 = smul.u32 64, %s20
      %p208 = scmp.lt.s32.totalorder %s19, 1
      %s209 = scalar_select %p208, %s19, 1
      %p210 = scmp.lt.s32.totalorder %s207, 127
      %s211 = scalar_select %p210, %s207, 127
      %s212 = smul.addr %s209, 128
      %s213 = sadd.s32 %s211, %s212
      %s214 = smul.addr %s213, 8
      %s215 = scalar_lea.vmem %s2, %s214
      %s216 = smul.u32 64, %s20
      %p217 = scmp.lt.s32.totalorder %s19, 1
      %s218 = scalar_select %p217, %s19, 1
      %s219 = smul.addr %s218, 8
      %s220 = scalar_lea.vmem %s3, %s219
      %v222 = vld [vmem:[%s205] sm:$0xf]
      %v223 = vld [vmem:[%s205 + $0x4] sm:$0xf]
      %v224 = vld [vmem:[%s205 + $0x8] sm:$0xf]
      %v225 = vld [vmem:[%s205 + $0xc] sm:$0xf]
      %v226 = vld [vmem:[%s205 + $0x10] sm:$0xf]
      %v227 = vld [vmem:[%s205 + $0x14] sm:$0xf]
      %v228 = vld [vmem:[%s205 + $0x18] sm:$0xf]
      %v229 = vld [vmem:[%s205 + $0x1c] sm:$0xf]
      %v230 = vld [vmem:[%s205 + $0x20] sm:$0xf]
      %v231 = vld [vmem:[%s205 + $0x24] sm:$0xf]
      %v232 = vld [vmem:[%s205 + $0x28] sm:$0xf]
      %v233 = vld [vmem:[%s205 + $0x2c] sm:$0xf]
      %v234 = vld [vmem:[%s205 + $0x30] sm:$0xf]
      %v235 = vld [vmem:[%s205 + $0x34] sm:$0xf]
      %v236 = vld [vmem:[%s205 + $0x38] sm:$0xf]
      %v237 = vld [vmem:[%s205 + $0x3c] sm:$0xf]
      %v238 = vld [vmem:[%s205 + $0x40] sm:$0xf]
      %v239 = vld [vmem:[%s205 + $0x44] sm:$0xf]
      %v240 = vld [vmem:[%s205 + $0x48] sm:$0xf]
      %v241 = vld [vmem:[%s205 + $0x4c] sm:$0xf]
      %v242 = vld [vmem:[%s205 + $0x50] sm:$0xf]
      %v243 = vld [vmem:[%s205 + $0x54] sm:$0xf]
      %v244 = vld [vmem:[%s205 + $0x58] sm:$0xf]
      %v245 = vld [vmem:[%s205 + $0x5c] sm:$0xf]
      %v246 = vld [vmem:[%s205 + $0x60] sm:$0xf]
      %v247 = vld [vmem:[%s205 + $0x64] sm:$0xf]
      %v248 = vld [vmem:[%s205 + $0x68] sm:$0xf]
      %v249 = vld [vmem:[%s205 + $0x6c] sm:$0xf]
      %v250 = vld [vmem:[%s205 + $0x70] sm:$0xf]
      %v251 = vld [vmem:[%s205 + $0x74] sm:$0xf]
      %v252 = vld [vmem:[%s205 + $0x78] sm:$0xf]
      %v253 = vld [vmem:[%s205 + $0x7c] sm:$0xf]
      %v254 = vld [vmem:[%s205 + $0x80] sm:$0xf]
      %v255 = vld [vmem:[%s205 + $0x84] sm:$0xf]
      %v256 = vld [vmem:[%s205 + $0x88] sm:$0xf]
      %v257 = vld [vmem:[%s205 + $0x8c] sm:$0xf]
      %v258 = vld [vmem:[%s205 + $0x90] sm:$0xf]
      %v259 = vld [vmem:[%s205 + $0x94] sm:$0xf]
      %v260 = vld [vmem:[%s205 + $0x98] sm:$0xf]
      %v261 = vld [vmem:[%s205 + $0x9c] sm:$0xf]
      %v262 = vld [vmem:[%s205 + $0xa0] sm:$0xf]
      %v263 = vld [vmem:[%s205 + $0xa4] sm:$0xf]
      %v264 = vld [vmem:[%s205 + $0xa8] sm:$0xf]
      %v265 = vld [vmem:[%s205 + $0xac] sm:$0xf]
      %v266 = vld [vmem:[%s205 + $0xb0] sm:$0xf]
      %v267 = vld [vmem:[%s205 + $0xb4] sm:$0xf]
      %v268 = vld [vmem:[%s205 + $0xb8] sm:$0xf]
      %v269 = vld [vmem:[%s205 + $0xbc] sm:$0xf]
      %v270 = vld [vmem:[%s205 + $0xc0] sm:$0xf]
      %v271 = vld [vmem:[%s205 + $0xc4] sm:$0xf]
      %v272 = vld [vmem:[%s205 + $0xc8] sm:$0xf]
      %v273 = vld [vmem:[%s205 + $0xcc] sm:$0xf]
      %v274 = vld [vmem:[%s205 + $0xd0] sm:$0xf]
      %v275 = vld [vmem:[%s205 + $0xd4] sm:$0xf]
      %v276 = vld [vmem:[%s205 + $0xd8] sm:$0xf]
      %v277 = vld [vmem:[%s205 + $0xdc] sm:$0xf]
      %v278 = vld [vmem:[%s205 + $0xe0] sm:$0xf]
      %v279 = vld [vmem:[%s205 + $0xe4] sm:$0xf]
      %v280 = vld [vmem:[%s205 + $0xe8] sm:$0xf]
      %v281 = vld [vmem:[%s205 + $0xec] sm:$0xf]
      %v282 = vld [vmem:[%s205 + $0xf0] sm:$0xf]
      %v283 = vld [vmem:[%s205 + $0xf4] sm:$0xf]
      %v284 = vld [vmem:[%s205 + $0xf8] sm:$0xf]
      %v285 = vld [vmem:[%s205 + $0xfc] sm:$0xf]
      %v286 = vld [vmem:[%s1] sm:$0xf]
      %v287 = vld [vmem:[%s1 + $0x4] sm:$0xf]
      %v288 = vld [vmem:[%s1 + $0x8] sm:$0xf]
      %v289 = vld [vmem:[%s1 + $0xc] sm:$0xf]
      %v290 = vld [vmem:[%s1 + $0x10] sm:$0x3]
      %v355 = vunpack.c.l.b16 %v222
      %v356 = vunpack.c.l.b16 %v223
      %v357 = vunpack.c.l.b16 %v224
      %v358 = vunpack.c.l.b16 %v225
      %v359 = vunpack.c.l.b16 %v226
      %v360 = vunpack.c.l.b16 %v227
      %v361 = vunpack.c.l.b16 %v228
      %v362 = vunpack.c.l.b16 %v229
      %v363 = vunpack.c.l.b16 %v230
      %v364 = vunpack.c.l.b16 %v231
      %v365 = vunpack.c.l.b16 %v232
      %v366 = vunpack.c.l.b16 %v233
      %v367 = vunpack.c.l.b16 %v234
      %v368 = vunpack.c.l.b16 %v235
      %v369 = vunpack.c.l.b16 %v236
      %v370 = vunpack.c.l.b16 %v237
      %v371 = vunpack.c.l.b16 %v238
      %v372 = vunpack.c.l.b16 %v239
      %v373 = vunpack.c.l.b16 %v240
      %v374 = vunpack.c.l.b16 %v241
      %v375 = vunpack.c.l.b16 %v242
      %v376 = vunpack.c.l.b16 %v243
      %v377 = vunpack.c.l.b16 %v244
      %v378 = vunpack.c.l.b16 %v245
      %v379 = vunpack.c.l.b16 %v246
      %v380 = vunpack.c.l.b16 %v247
      %v381 = vunpack.c.l.b16 %v248
      %v382 = vunpack.c.l.b16 %v249
      %v383 = vunpack.c.l.b16 %v250
      %v384 = vunpack.c.l.b16 %v251
      %v385 = vunpack.c.l.b16 %v252
      %v386 = vunpack.c.l.b16 %v253
      %v387 = vunpack.c.l.b16 %v254
      %v388 = vunpack.c.l.b16 %v255
      %v389 = vunpack.c.l.b16 %v256
      %v390 = vunpack.c.l.b16 %v257
      %v391 = vunpack.c.l.b16 %v258
      %v392 = vunpack.c.l.b16 %v259
      %v393 = vunpack.c.l.b16 %v260
      %v394 = vunpack.c.l.b16 %v261
      %v395 = vunpack.c.l.b16 %v262
      %v396 = vunpack.c.l.b16 %v263
      %v397 = vunpack.c.l.b16 %v264
      %v398 = vunpack.c.l.b16 %v265
      %v399 = vunpack.c.l.b16 %v266
      %v400 = vunpack.c.l.b16 %v267
      %v401 = vunpack.c.l.b16 %v268
      %v402 = vunpack.c.l.b16 %v269
      %v403 = vunpack.c.l.b16 %v270
      %v404 = vunpack.c.l.b16 %v271
      %v405 = vunpack.c.l.b16 %v272
      %v406 = vunpack.c.l.b16 %v273
      %v407 = vunpack.c.l.b16 %v274
      %v408 = vunpack.c.l.b16 %v275
      %v409 = vunpack.c.l.b16 %v276
      %v410 = vunpack.c.l.b16 %v277
      %v411 = vunpack.c.l.b16 %v278
      %v412 = vunpack.c.l.b16 %v279
      %v413 = vunpack.c.l.b16 %v280
      %v414 = vunpack.c.l.b16 %v281
      %v415 = vunpack.c.l.b16 %v282
      %v416 = vunpack.c.l.b16 %v283
      %v417 = vunpack.c.l.b16 %v284
      %v418 = vunpack.c.l.b16 %v285
      %v419 = vpack.c.b16 %v356, %v355
      %v420 = vpack.c.b16 %v358, %v357
      %v421 = vpack.c.b16 %v360, %v359
      %v422 = vpack.c.b16 %v362, %v361
      %v423 = vpack.c.b16 %v364, %v363
      %v424 = vpack.c.b16 %v366, %v365
      %v425 = vpack.c.b16 %v368, %v367
      %v426 = vpack.c.b16 %v370, %v369
      %v427 = vpack.c.b16 %v372, %v371
      %v428 = vpack.c.b16 %v374, %v373
      %v429 = vpack.c.b16 %v376, %v375
      %v430 = vpack.c.b16 %v378, %v377
      %v431 = vpack.c.b16 %v380, %v379
      %v432 = vpack.c.b16 %v382, %v381
      %v433 = vpack.c.b16 %v384, %v383
      %v434 = vpack.c.b16 %v386, %v385
      %v435 = vpack.c.b16 %v388, %v387
      %v436 = vpack.c.b16 %v390, %v389
      %v437 = vpack.c.b16 %v392, %v391
      %v438 = vpack.c.b16 %v394, %v393
      %v439 = vpack.c.b16 %v396, %v395
      %v440 = vpack.c.b16 %v398, %v397
      %v441 = vpack.c.b16 %v400, %v399
      %v442 = vpack.c.b16 %v402, %v401
      %v443 = vpack.c.b16 %v404, %v403
      %v444 = vpack.c.b16 %v406, %v405
      %v445 = vpack.c.b16 %v408, %v407
      %v446 = vpack.c.b16 %v410, %v409
      %v447 = vpack.c.b16 %v412, %v411
      %v448 = vpack.c.b16 %v414, %v413
      %v449 = vpack.c.b16 %v416, %v415
      %v450 = vpack.c.b16 %v418, %v417
      %v456 = vunpack.c.l.b16 %v286
      %v457 = vunpack.c.l.b16 %v287
      %v458 = vunpack.c.l.b16 %v288
      %v459 = vunpack.c.l.b16 %v289
      %v460 = vunpack.c.l.b16 %v290
      %v461 = vpack.c.b16 %v457, %v456
      %v462 = vpack.c.b16 %v459, %v458
      %v463 = vpack.c.b16 %v460, %v460
      %vm466 = vcmask 293888
      %v468 = vsel %vm466, %v419, 0
      %v471 = vsel %vm466, %v420, 0
      %v474 = vsel %vm466, %v421, 0
      %v477 = vsel %vm466, %v422, 0
      %v480 = vsel %vm466, %v423, 0
      %v483 = vsel %vm466, %v424, 0
      %v486 = vsel %vm466, %v425, 0
      %v489 = vsel %vm466, %v426, 0
      %v492 = vsel %vm466, %v427, 0
      %v495 = vsel %vm466, %v428, 0
      %v498 = vsel %vm466, %v429, 0
      %v501 = vsel %vm466, %v430, 0
      %v504 = vsel %vm466, %v431, 0
      %v507 = vsel %vm466, %v432, 0
      %v510 = vsel %vm466, %v433, 0
      %v513 = vsel %vm466, %v434, 0
      %v516 = vsel %vm466, %v435, 0
      %v519 = vsel %vm466, %v436, 0
      %v522 = vsel %vm466, %v437, 0
      %v525 = vsel %vm466, %v438, 0
      %v528 = vsel %vm466, %v439, 0
      %v531 = vsel %vm466, %v440, 0
      %v534 = vsel %vm466, %v441, 0
      %v537 = vsel %vm466, %v442, 0
      %v540 = vsel %vm466, %v443, 0
      %v543 = vsel %vm466, %v444, 0
      %v546 = vsel %vm466, %v445, 0
      %v549 = vsel %vm466, %v446, 0
      %v552 = vsel %vm466, %v447, 0
      %v555 = vsel %vm466, %v448, 0
      %v558 = vsel %vm466, %v449, 0
      %v561 = vsel %vm466, %v450, 0
      %vm563 = vcmask 1041408
      %v565 = vsel %vm563, %v463, 0
      %567 = vmatprep.subr.bf16.mxu0 0
      %568 = vmatpush1.bf16.msra.mxu0 %v461
      %569 = vmatprep.subr.bf16.mxu0 0
      %570 = vmatpush1.bf16.msra.mxu0 %v462
      %571 = vmatprep.subr.bf16.mxu0 0
      %572 = vmatpush1.bf16.msra.mxu0 %v565
      %573 = vmatprep.subr.bf16.mxu0 0
      %574 = vmatpush1.bf16.msra.mxu0 0
      %575 = vmatprep.subr.bf16.mxu0 0
      %576 = vmatpush1.bf16.msra.mxu0 0
      %577 = vmatprep.subr.bf16.mxu0 0
      %578 = vmatpush1.bf16.msra.mxu0 0
      %579 = vmatprep.subr.bf16.mxu0 0
      %580 = vmatpush1.bf16.msra.mxu0 0
      %581 = vmatprep.subr.bf16.mxu0 0
      %582 = vmatpush1.bf16.msra.mxu0 0
      %583 = vmatprep.subr.bf16.mxu0 0
      %584 = vmatpush1.bf16.msra.mxu0 0
      %585 = vmatprep.subr.bf16.mxu0 0
      %586 = vmatpush1.bf16.msra.mxu0 0
      %587 = vmatprep.subr.bf16.mxu0 0
      %588 = vmatpush1.bf16.msra.mxu0 0
      %589 = vmatprep.subr.bf16.mxu0 0
      %590 = vmatpush1.bf16.msra.mxu0 0
      %591 = vmatprep.subr.bf16.mxu0 0
      %592 = vmatpush1.bf16.msra.mxu0 0
      %593 = vmatprep.subr.bf16.mxu0 0
      %594 = vmatpush1.bf16.msra.mxu0 0
      %595 = vmatprep.subr.bf16.mxu0 0
      %596 = vmatpush1.bf16.msra.mxu0 0
      %597 = vmatprep.subr.bf16.mxu0 0
      %598 = vmatpush1.bf16.msra.mxu0 0
      %599 = vmatprep.mubr.bf16.mxu0 0
      %600 = vmatmul.mubr.bf16.gmra.mrb[0].mxu0 %v468
      %v601 = vpop.f32.mrb[0].mxu0
      %v602 = vadd.f32 0.0, %v601
      %v603 = vpop.f32.mrb[0].mxu0
      %v604 = vpop.f32.mrb[0].mxu0
      %v605 = vadd.f32 0.0, %v604
      %v606 = vpop.f32.mrb[0].mxu0
      %607 = vmatprep.mubr.bf16.mxu0 0
      %608 = vmatmul.mubr.bf16.gmra.mrb[0].mxu0 %v471
      %v609 = vpop.f32.mrb[0].mxu0
      %v610 = vadd.f32 0.0, %v609
      %v611 = vpop.f32.mrb[0].mxu0
      %v612 = vpop.f32.mrb[0].mxu0
      %v613 = vadd.f32 0.0, %v612
      %v614 = vpop.f32.mrb[0].mxu0
      %615 = vmatprep.mubr.bf16.mxu0 0
      %616 = vmatmul.mubr.bf16.gmra.mrb[0].mxu0 %v474
      %v617 = vpop.f32.mrb[0].mxu0
      %v618 = vadd.f32 0.0, %v617
      %v619 = vpop.f32.mrb[0].mxu0
      %v620 = vpop.f32.mrb[0].mxu0
      %v621 = vadd.f32 0.0, %v620
      %v622 = vpop.f32.mrb[0].mxu0
      %623 = vmatprep.mubr.bf16.mxu0 0
      %624 = vmatmul.mubr.bf16.gmra.mrb[0].mxu0 %v477
      %v625 = vpop.f32.mrb[0].mxu0
      %v626 = vadd.f32 0.0, %v625
      %v627 = vpop.f32.mrb[0].mxu0
      %v628 = vpop.f32.mrb[0].mxu0
      %v629 = vadd.f32 0.0, %v628
      %v630 = vpop.f32.mrb[0].mxu0
      %631 = vmatprep.mubr.bf16.mxu0 0
      %632 = vmatmul.mubr.bf16.gmra.mrb[0].mxu0 %v480
      %v633 = vpop.f32.mrb[0].mxu0
      %v634 = vadd.f32 0.0, %v633
      %v635 = vpop.f32.mrb[0].mxu0
      %v636 = vpop.f32.mrb[0].mxu0
      %v637 = vadd.f32 0.0, %v636
      %v638 = vpop.f32.mrb[0].mxu0
      %639 = vmatprep.mubr.bf16.mxu0 0
      %640 = vmatmul.mubr.bf16.gmra.mrb[0].mxu0 %v483
      %v641 = vpop.f32.mrb[0].mxu0
      %v642 = vadd.f32 0.0, %v641
      %v643 = vpop.f32.mrb[0].mxu0
      %v644 = vpop.f32.mrb[0].mxu0
      %v645 = vadd.f32 0.0, %v644
      %v646 = vpop.f32.mrb[0].mxu0
      %647 = vmatprep.mubr.bf16.mxu0 0
      %648 = vmatmul.mubr.bf16.gmra.mrb[0].mxu0 %v486
      %v649 = vpop.f32.mrb[0].mxu0
      %v650 = vadd.f32 0.0, %v649
      %v651 = vpop.f32.mrb[0].mxu0
      %v652 = vpop.f32.mrb[0].mxu0
      %v653 = vadd.f32 0.0, %v652
      %v654 = vpop.f32.mrb[0].mxu0
      %655 = vmatprep.mubr.bf16.mxu0 0
      %656 = vmatmul.mubr.bf16.gmra.mrb[0].mxu0 %v489
      %v657 = vpop.f32.mrb[0].mxu0
      %v658 = vadd.f32 0.0, %v657
      %v659 = vpop.f32.mrb[0].mxu0
      %v660 = vpop.f32.mrb[0].mxu0
      %v661 = vadd.f32 0.0, %v660
      %v662 = vpop.f32.mrb[0].mxu0
      %663 = vmatprep.mubr.bf16.mxu0 0
      %664 = vmatmul.mubr.bf16.gmra.mrb[0].mxu0 %v492
      %v665 = vpop.f32.mrb[0].mxu0
      %v666 = vadd.f32 0.0, %v665
      %v667 = vpop.f32.mrb[0].mxu0
      %v668 = vpop.f32.mrb[0].mxu0
      %v669 = vadd.f32 0.0, %v668
      %v670 = vpop.f32.mrb[0].mxu0
      %671 = vmatprep.mubr.bf16.mxu0 0
      %672 = vmatmul.mubr.bf16.gmra.mrb[0].mxu0 %v495
      %v673 = vpop.f32.mrb[0].mxu0
      %v674 = vadd.f32 0.0, %v673
      %v675 = vpop.f32.mrb[0].mxu0
      %v676 = vpop.f32.mrb[0].mxu0
      %v677 = vadd.f32 0.0, %v676
      %v678 = vpop.f32.mrb[0].mxu0
      %679 = vmatprep.mubr.bf16.mxu0 0
      %680 = vmatmul.mubr.bf16.gmra.mrb[0].mxu0 %v498
      %v681 = vpop.f32.mrb[0].mxu0
      %v682 = vadd.f32 0.0, %v681
      %v683 = vpop.f32.mrb[0].mxu0
      %v684 = vpop.f32.mrb[0].mxu0
      %v685 = vadd.f32 0.0, %v684
      %v686 = vpop.f32.mrb[0].mxu0
      %687 = vmatprep.mubr.bf16.mxu0 0
      %688 = vmatmul.mubr.bf16.gmra.mrb[0].mxu0 %v501
      %v689 = vpop.f32.mrb[0].mxu0
      %v690 = vadd.f32 0.0, %v689
      %v691 = vpop.f32.mrb[0].mxu0
      %v692 = vpop.f32.mrb[0].mxu0
      %v693 = vadd.f32 0.0, %v692
      %v694 = vpop.f32.mrb[0].mxu0
      %695 = vmatprep.mubr.bf16.mxu0 0
      %696 = vmatmul.mubr.bf16.gmra.mrb[0].mxu0 %v504
      %v697 = vpop.f32.mrb[0].mxu0
      %v698 = vadd.f32 0.0, %v697
      %v699 = vpop.f32.mrb[0].mxu0
      %v700 = vpop.f32.mrb[0].mxu0
      %v701 = vadd.f32 0.0, %v700
      %v702 = vpop.f32.mrb[0].mxu0
      %703 = vmatprep.mubr.bf16.mxu0 0
      %704 = vmatmul.mubr.bf16.gmra.mrb[0].mxu0 %v507
      %v705 = vpop.f32.mrb[0].mxu0
      %v706 = vadd.f32 0.0, %v705
      %v707 = vpop.f32.mrb[0].mxu0
      %v708 = vpop.f32.mrb[0].mxu0
      %v709 = vadd.f32 0.0, %v708
      %v710 = vpop.f32.mrb[0].mxu0
      %711 = vmatprep.mubr.bf16.mxu0 0
      %712 = vmatmul.mubr.bf16.gmra.mrb[0].mxu0 %v510
      %v713 = vpop.f32.mrb[0].mxu0
      %v714 = vadd.f32 0.0, %v713
      %v715 = vpop.f32.mrb[0].mxu0
      %v716 = vpop.f32.mrb[0].mxu0
      %v717 = vadd.f32 0.0, %v716
      %v718 = vpop.f32.mrb[0].mxu0
      %719 = vmatprep.mubr.bf16.mxu0 0
      %720 = vmatmul.mubr.bf16.gmra.mrb[0].mxu0 %v513
      %v721 = vpop.f32.mrb[0].mxu0
      %v722 = vadd.f32 0.0, %v721
      %v723 = vpop.f32.mrb[0].mxu0
      %v724 = vpop.f32.mrb[0].mxu0
      %v725 = vadd.f32 0.0, %v724
      %v726 = vpop.f32.mrb[0].mxu0
      %727 = vmatprep.mubr.bf16.mxu0 0
      %728 = vmatmul.mubr.bf16.gmra.mrb[0].mxu0 %v516
      %v729 = vpop.f32.mrb[0].mxu0
      %v730 = vadd.f32 0.0, %v729
      %v731 = vpop.f32.mrb[0].mxu0
      %v732 = vpop.f32.mrb[0].mxu0
      %v733 = vadd.f32 0.0, %v732
      %v734 = vpop.f32.mrb[0].mxu0
      %735 = vmatprep.mubr.bf16.mxu0 0
      %736 = vmatmul.mubr.bf16.gmra.mrb[0].mxu0 %v519
      %v737 = vpop.f32.mrb[0].mxu0
      %v738 = vadd.f32 0.0, %v737
      %v739 = vpop.f32.mrb[0].mxu0
      %v740 = vpop.f32.mrb[0].mxu0
      %v741 = vadd.f32 0.0, %v740
      %v742 = vpop.f32.mrb[0].mxu0
      %743 = vmatprep.mubr.bf16.mxu0 0
      %744 = vmatmul.mubr.bf16.gmra.mrb[0].mxu0 %v522
      %v745 = vpop.f32.mrb[0].mxu0
      %v746 = vadd.f32 0.0, %v745
      %v747 = vpop.f32.mrb[0].mxu0
      %v748 = vpop.f32.mrb[0].mxu0
      %v749 = vadd.f32 0.0, %v748
      %v750 = vpop.f32.mrb[0].mxu0
      %751 = vmatprep.mubr.bf16.mxu0 0
      %752 = vmatmul.mubr.bf16.gmra.mrb[0].mxu0 %v525
      %v753 = vpop.f32.mrb[0].mxu0
      %v754 = vadd.f32 0.0, %v753
      %v755 = vpop.f32.mrb[0].mxu0
      %v756 = vpop.f32.mrb[0].mxu0
      %v757 = vadd.f32 0.0, %v756
      %v758 = vpop.f32.mrb[0].mxu0
      %759 = vmatprep.mubr.bf16.mxu0 0
      %760 = vmatmul.mubr.bf16.gmra.mrb[0].mxu0 %v528
      %v761 = vpop.f32.mrb[0].mxu0
      %v762 = vadd.f32 0.0, %v761
      %v763 = vpop.f32.mrb[0].mxu0
      %v764 = vpop.f32.mrb[0].mxu0
      %v765 = vadd.f32 0.0, %v764
      %v766 = vpop.f32.mrb[0].mxu0
      %767 = vmatprep.mubr.bf16.mxu0 0
      %768 = vmatmul.mubr.bf16.gmra.mrb[0].mxu0 %v531
      %v769 = vpop.f32.mrb[0].mxu0
      %v770 = vadd.f32 0.0, %v769
      %v771 = vpop.f32.mrb[0].mxu0
      %v772 = vpop.f32.mrb[0].mxu0
      %v773 = vadd.f32 0.0, %v772
      %v774 = vpop.f32.mrb[0].mxu0
      %775 = vmatprep.mubr.bf16.mxu0 0
      %776 = vmatmul.mubr.bf16.gmra.mrb[0].mxu0 %v534
      %v777 = vpop.f32.mrb[0].mxu0
      %v778 = vadd.f32 0.0, %v777
      %v779 = vpop.f32.mrb[0].mxu0
      %v780 = vpop.f32.mrb[0].mxu0
      %v781 = vadd.f32 0.0, %v780
      %v782 = vpop.f32.mrb[0].mxu0
      %783 = vmatprep.mubr.bf16.mxu0 0
      %784 = vmatmul.mubr.bf16.gmra.mrb[0].mxu0 %v537
      %v785 = vpop.f32.mrb[0].mxu0
      %v786 = vadd.f32 0.0, %v785
      %v787 = vpop.f32.mrb[0].mxu0
      %v788 = vpop.f32.mrb[0].mxu0
      %v789 = vadd.f32 0.0, %v788
      %v790 = vpop.f32.mrb[0].mxu0
      %791 = vmatprep.mubr.bf16.mxu0 0
      %792 = vmatmul.mubr.bf16.gmra.mrb[0].mxu0 %v540
      %v793 = vpop.f32.mrb[0].mxu0
      %v794 = vadd.f32 0.0, %v793
      %v795 = vpop.f32.mrb[0].mxu0
      %v796 = vpop.f32.mrb[0].mxu0
      %v797 = vadd.f32 0.0, %v796
      %v798 = vpop.f32.mrb[0].mxu0
      %799 = vmatprep.mubr.bf16.mxu0 0
      %800 = vmatmul.mubr.bf16.gmra.mrb[0].mxu0 %v543
      %v801 = vpop.f32.mrb[0].mxu0
      %v802 = vadd.f32 0.0, %v801
      %v803 = vpop.f32.mrb[0].mxu0
      %v804 = vpop.f32.mrb[0].mxu0
      %v805 = vadd.f32 0.0, %v804
      %v806 = vpop.f32.mrb[0].mxu0
      %807 = vmatprep.mubr.bf16.mxu0 0
      %808 = vmatmul.mubr.bf16.gmra.mrb[0].mxu0 %v546
      %v809 = vpop.f32.mrb[0].mxu0
      %v810 = vadd.f32 0.0, %v809
      %v811 = vpop.f32.mrb[0].mxu0
      %v812 = vpop.f32.mrb[0].mxu0
      %v813 = vadd.f32 0.0, %v812
      %v814 = vpop.f32.mrb[0].mxu0
      %815 = vmatprep.mubr.bf16.mxu0 0
      %816 = vmatmul.mubr.bf16.gmra.mrb[0].mxu0 %v549
      %v817 = vpop.f32.mrb[0].mxu0
      %v818 = vadd.f32 0.0, %v817
      %v819 = vpop.f32.mrb[0].mxu0
      %v820 = vpop.f32.mrb[0].mxu0
      %v821 = vadd.f32 0.0, %v820
      %v822 = vpop.f32.mrb[0].mxu0
      %823 = vmatprep.mubr.bf16.mxu0 0
      %824 = vmatmul.mubr.bf16.gmra.mrb[0].mxu0 %v552
      %v825 = vpop.f32.mrb[0].mxu0
      %v826 = vadd.f32 0.0, %v825
      %v827 = vpop.f32.mrb[0].mxu0
      %v828 = vpop.f32.mrb[0].mxu0
      %v829 = vadd.f32 0.0, %v828
      %v830 = vpop.f32.mrb[0].mxu0
      %831 = vmatprep.mubr.bf16.mxu0 0
      %832 = vmatmul.mubr.bf16.gmra.mrb[0].mxu0 %v555
      %v833 = vpop.f32.mrb[0].mxu0
      %v834 = vadd.f32 0.0, %v833
      %v835 = vpop.f32.mrb[0].mxu0
      %v836 = vpop.f32.mrb[0].mxu0
      %v837 = vadd.f32 0.0, %v836
      %v838 = vpop.f32.mrb[0].mxu0
      %839 = vmatprep.mubr.bf16.mxu0 0
      %840 = vmatmul.mubr.bf16.gmra.mrb[0].mxu0 %v558
      %v841 = vpop.f32.mrb[0].mxu0
      %v842 = vadd.f32 0.0, %v841
      %v843 = vpop.f32.mrb[0].mxu0
      %v844 = vpop.f32.mrb[0].mxu0
      %v845 = vadd.f32 0.0, %v844
      %v846 = vpop.f32.mrb[0].mxu0
      %847 = vmatprep.mubr.bf16.mxu0 0
      %848 = vmatmul.mubr.bf16.gmra.mrb[0].mxu0 %v561
      %v849 = vpop.f32.mrb[0].mxu0
      %v850 = vadd.f32 0.0, %v849
      %v851 = vpop.f32.mrb[0].mxu0
      %v852 = vpop.f32.mrb[0].mxu0
      %v853 = vadd.f32 0.0, %v852
      %v854 = vpop.f32.mrb[0].mxu0
      %855 = vdwg.mxu0
      %856 = vst [vmem:[%s215] sm:$0xff] %v602
      %857 = vst [vmem:[%s215 + $0x8] sm:$0xff] %v605
      %858 = vst [vmem:[%s215 + $0x10] sm:$0xff] %v610
      %859 = vst [vmem:[%s215 + $0x18] sm:$0xff] %v613
      %860 = vst [vmem:[%s215 + $0x20] sm:$0xff] %v618
      %861 = vst [vmem:[%s215 + $0x28] sm:$0xff] %v621
      %862 = vst [vmem:[%s215 + $0x30] sm:$0xff] %v626
      %863 = vst [vmem:[%s215 + $0x38] sm:$0xff] %v629
      %864 = vst [vmem:[%s215 + $0x40] sm:$0xff] %v634
      %865 = vst [vmem:[%s215 + $0x48] sm:$0xff] %v637
      %866 = vst [vmem:[%s215 + $0x50] sm:$0xff] %v642
      %867 = vst [vmem:[%s215 + $0x58] sm:$0xff] %v645
      %868 = vst [vmem:[%s215 + $0x60] sm:$0xff] %v650
      %869 = vst [vmem:[%s215 + $0x68] sm:$0xff] %v653
      %870 = vst [vmem:[%s215 + $0x70] sm:$0xff] %v658
      %871 = vst [vmem:[%s215 + $0x78] sm:$0xff] %v661
      %872 = vst [vmem:[%s215 + $0x80] sm:$0xff] %v666
      %873 = vst [vmem:[%s215 + $0x88] sm:$0xff] %v669
      %874 = vst [vmem:[%s215 + $0x90] sm:$0xff] %v674
      %875 = vst [vmem:[%s215 + $0x98] sm:$0xff] %v677
      %876 = vst [vmem:[%s215 + $0xa0] sm:$0xff] %v682
      %877 = vst [vmem:[%s215 + $0xa8] sm:$0xff] %v685
      %878 = vst [vmem:[%s215 + $0xb0] sm:$0xff] %v690
      %879 = vst [vmem:[%s215 + $0xb8] sm:$0xff] %v693
      %880 = vst [vmem:[%s215 + $0xc0] sm:$0xff] %v698
      %881 = vst [vmem:[%s215 + $0xc8] sm:$0xff] %v701
      %882 = vst [vmem:[%s215 + $0xd0] sm:$0xff] %v706
      %883 = vst [vmem:[%s215 + $0xd8] sm:$0xff] %v709
      %884 = vst [vmem:[%s215 + $0xe0] sm:$0xff] %v714
      %885 = vst [vmem:[%s215 + $0xe8] sm:$0xff] %v717
      %886 = vst [vmem:[%s215 + $0xf0] sm:$0xff] %v722
      %887 = vst [vmem:[%s215 + $0xf8] sm:$0xff] %v725
      %888 = vst [vmem:[%s215 + $0x100] sm:$0xff] %v730
      %889 = vst [vmem:[%s215 + $0x108] sm:$0xff] %v733
      %890 = vst [vmem:[%s215 + $0x110] sm:$0xff] %v738
      %891 = vst [vmem:[%s215 + $0x118] sm:$0xff] %v741
      %892 = vst [vmem:[%s215 + $0x120] sm:$0xff] %v746
      %893 = vst [vmem:[%s215 + $0x128] sm:$0xff] %v749
      %894 = vst [vmem:[%s215 + $0x130] sm:$0xff] %v754
      %895 = vst [vmem:[%s215 + $0x138] sm:$0xff] %v757
      %896 = vst [vmem:[%s215 + $0x140] sm:$0xff] %v762
      %897 = vst [vmem:[%s215 + $0x148] sm:$0xff] %v765
      %898 = vst [vmem:[%s215 + $0x150] sm:$0xff] %v770
      %899 = vst [vmem:[%s215 + $0x158] sm:$0xff] %v773
      %900 = vst [vmem:[%s215 + $0x160] sm:$0xff] %v778
      %901 = vst [vmem:[%s215 + $0x168] sm:$0xff] %v781
      %902 = vst [vmem:[%s215 + $0x170] sm:$0xff] %v786
      %903 = vst [vmem:[%s215 + $0x178] sm:$0xff] %v789
      %904 = vst [vmem:[%s215 + $0x180] sm:$0xff] %v794
      %905 = vst [vmem:[%s215 + $0x188] sm:$0xff] %v797
      %906 = vst [vmem:[%s215 + $0x190] sm:$0xff] %v802
      %907 = vst [vmem:[%s215 + $0x198] sm:$0xff] %v805
      %908 = vst [vmem:[%s215 + $0x1a0] sm:$0xff] %v810
      %909 = vst [vmem:[%s215 + $0x1a8] sm:$0xff] %v813
      %910 = vst [vmem:[%s215 + $0x1b0] sm:$0xff] %v818
      %911 = vst [vmem:[%s215 + $0x1b8] sm:$0xff] %v821
      %912 = vst [vmem:[%s215 + $0x1c0] sm:$0xff] %v826
      %913 = vst [vmem:[%s215 + $0x1c8] sm:$0xff] %v829
      %914 = vst [vmem:[%s215 + $0x1d0] sm:$0xff] %v834
      %915 = vst [vmem:[%s215 + $0x1d8] sm:$0xff] %v837
      %916 = vst [vmem:[%s215 + $0x1e0] sm:$0xff] %v842
      %917 = vst [vmem:[%s215 + $0x1e8] sm:$0xff] %v845
      %918 = vst [vmem:[%s215 + $0x1f0] sm:$0xff] %v850
      %919 = vst [vmem:[%s215 + $0x1f8] sm:$0xff] %v853
      %v920 = vadd.f32 %v602, %v605
      %v921 = vadd.f32 %v920, %v610
      %v922 = vadd.f32 %v921, %v613
      %v923 = vadd.f32 %v922, %v618
      %v924 = vadd.f32 %v923, %v621
      %v925 = vadd.f32 %v924, %v626
      %v926 = vadd.f32 %v925, %v629
      %v927 = vadd.f32 %v926, %v634
      %v928 = vadd.f32 %v927, %v637
      %v929 = vadd.f32 %v928, %v642
      %v930 = vadd.f32 %v929, %v645
      %v931 = vadd.f32 %v930, %v650
      %v932 = vadd.f32 %v931, %v653
      %v933 = vadd.f32 %v932, %v658
      %v934 = vadd.f32 %v933, %v661
      %v935 = vadd.f32 %v934, %v666
      %v936 = vadd.f32 %v935, %v669
      %v937 = vadd.f32 %v936, %v674
      %v938 = vadd.f32 %v937, %v677
      %v939 = vadd.f32 %v938, %v682
      %v940 = vadd.f32 %v939, %v685
      %v941 = vadd.f32 %v940, %v690
      %v942 = vadd.f32 %v941, %v693
      %v943 = vadd.f32 %v942, %v698
      %v944 = vadd.f32 %v943, %v701
      %v945 = vadd.f32 %v944, %v706
      %v946 = vadd.f32 %v945, %v709
      %v947 = vadd.f32 %v946, %v714
      %v948 = vadd.f32 %v947, %v717
      %v949 = vadd.f32 %v948, %v722
      %v950 = vadd.f32 %v949, %v725
      %v951 = vadd.f32 %v950, %v730
      %v952 = vadd.f32 %v951, %v733
      %v953 = vadd.f32 %v952, %v738
      %v954 = vadd.f32 %v953, %v741
      %v955 = vadd.f32 %v954, %v746
      %v956 = vadd.f32 %v955, %v749
      %v957 = vadd.f32 %v956, %v754
      %v958 = vadd.f32 %v957, %v757
      %v959 = vadd.f32 %v958, %v762
      %v960 = vadd.f32 %v959, %v765
      %v961 = vadd.f32 %v960, %v770
      %v962 = vadd.f32 %v961, %v773
      %v963 = vadd.f32 %v962, %v778
      %v964 = vadd.f32 %v963, %v781
      %v965 = vadd.f32 %v964, %v786
      %v966 = vadd.f32 %v965, %v789
      %v967 = vadd.f32 %v966, %v794
      %v968 = vadd.f32 %v967, %v797
      %v969 = vadd.f32 %v968, %v802
      %v970 = vadd.f32 %v969, %v805
      %v971 = vadd.f32 %v970, %v810
      %v972 = vadd.f32 %v971, %v813
      %v973 = vadd.f32 %v972, %v818
      %v974 = vadd.f32 %v973, %v821
      %v975 = vadd.f32 %v974, %v826
      %v976 = vadd.f32 %v975, %v829
      %v977 = vadd.f32 %v976, %v834
      %v978 = vadd.f32 %v977, %v837
      %v979 = vadd.f32 %v978, %v842
      %v980 = vadd.f32 %v979, %v845
      %v981 = vadd.f32 %v980, %v850
      %v982 = vadd.f32 %v981, %v853
      %v983 = vrot.slane %v982, 4
      %v984 = vadd.f32 %v982, %v983
      %v985 = vrot.slane %v984, 2
      %v986 = vadd.f32 %v984, %v985
      %v987 = vrot.slane %v986, 1
      %v988 = vadd.f32 %v986, %v987
      %v989 = vmul.f32 %v602, %v602
      %v990 = vmul.f32 %v605, %v605
      %v991 = vmul.f32 %v610, %v610
      %v992 = vmul.f32 %v613, %v613
      %v993 = vmul.f32 %v618, %v618
      %v994 = vmul.f32 %v621, %v621
      %v995 = vmul.f32 %v626, %v626
      %v996 = vmul.f32 %v629, %v629
      %v997 = vmul.f32 %v634, %v634
      %v998 = vmul.f32 %v637, %v637
      %v999 = vmul.f32 %v642, %v642
      %v1000 = vmul.f32 %v645, %v645
      %v1001 = vmul.f32 %v650, %v650
      %v1002 = vmul.f32 %v653, %v653
      %v1003 = vmul.f32 %v658, %v658
      %v1004 = vmul.f32 %v661, %v661
      %v1005 = vmul.f32 %v666, %v666
      %v1006 = vmul.f32 %v669, %v669
      %v1007 = vmul.f32 %v674, %v674
      %v1008 = vmul.f32 %v677, %v677
      %v1009 = vmul.f32 %v682, %v682
      %v1010 = vmul.f32 %v685, %v685
      %v1011 = vmul.f32 %v690, %v690
      %v1012 = vmul.f32 %v693, %v693
      %v1013 = vmul.f32 %v698, %v698
      %v1014 = vmul.f32 %v701, %v701
      %v1015 = vmul.f32 %v706, %v706
      %v1016 = vmul.f32 %v709, %v709
      %v1017 = vmul.f32 %v714, %v714
      %v1018 = vmul.f32 %v717, %v717
      %v1019 = vmul.f32 %v722, %v722
      %v1020 = vmul.f32 %v725, %v725
      %v1021 = vmul.f32 %v730, %v730
      %v1022 = vmul.f32 %v733, %v733
      %v1023 = vmul.f32 %v738, %v738
      %v1024 = vmul.f32 %v741, %v741
      %v1025 = vmul.f32 %v746, %v746
      %v1026 = vmul.f32 %v749, %v749
      %v1027 = vmul.f32 %v754, %v754
      %v1028 = vmul.f32 %v757, %v757
      %v1029 = vmul.f32 %v762, %v762
      %v1030 = vmul.f32 %v765, %v765
      %v1031 = vmul.f32 %v770, %v770
      %v1032 = vmul.f32 %v773, %v773
      %v1033 = vmul.f32 %v778, %v778
      %v1034 = vmul.f32 %v781, %v781
      %v1035 = vmul.f32 %v786, %v786
      %v1036 = vmul.f32 %v789, %v789
      %v1037 = vmul.f32 %v794, %v794
      %v1038 = vmul.f32 %v797, %v797
      %v1039 = vmul.f32 %v802, %v802
      %v1040 = vmul.f32 %v805, %v805
      %v1041 = vmul.f32 %v810, %v810
      %v1042 = vmul.f32 %v813, %v813
      %v1043 = vmul.f32 %v818, %v818
      %v1044 = vmul.f32 %v821, %v821
      %v1045 = vmul.f32 %v826, %v826
      %v1046 = vmul.f32 %v829, %v829
      %v1047 = vmul.f32 %v834, %v834
      %v1048 = vmul.f32 %v837, %v837
      %v1049 = vmul.f32 %v842, %v842
      %v1050 = vmul.f32 %v845, %v845
      %v1051 = vmul.f32 %v850, %v850
      %v1052 = vmul.f32 %v853, %v853
      %v1053 = vadd.f32 %v989, %v990
      %v1054 = vadd.f32 %v1053, %v991
      %v1055 = vadd.f32 %v1054, %v992
      %v1056 = vadd.f32 %v1055, %v993
      %v1057 = vadd.f32 %v1056, %v994
      %v1058 = vadd.f32 %v1057, %v995
      %v1059 = vadd.f32 %v1058, %v996
      %v1060 = vadd.f32 %v1059, %v997
      %v1061 = vadd.f32 %v1060, %v998
      %v1062 = vadd.f32 %v1061, %v999
      %v1063 = vadd.f32 %v1062, %v1000
      %v1064 = vadd.f32 %v1063, %v1001
      %v1065 = vadd.f32 %v1064, %v1002
      %v1066 = vadd.f32 %v1065, %v1003
      %v1067 = vadd.f32 %v1066, %v1004
      %v1068 = vadd.f32 %v1067, %v1005
      %v1069 = vadd.f32 %v1068, %v1006
      %v1070 = vadd.f32 %v1069, %v1007
      %v1071 = vadd.f32 %v1070, %v1008
      %v1072 = vadd.f32 %v1071, %v1009
      %v1073 = vadd.f32 %v1072, %v1010
      %v1074 = vadd.f32 %v1073, %v1011
      %v1075 = vadd.f32 %v1074, %v1012
      %v1076 = vadd.f32 %v1075, %v1013
      %v1077 = vadd.f32 %v1076, %v1014
      %v1078 = vadd.f32 %v1077, %v1015
      %v1079 = vadd.f32 %v1078, %v1016
      %v1080 = vadd.f32 %v1079, %v1017
      %v1081 = vadd.f32 %v1080, %v1018
      %v1082 = vadd.f32 %v1081, %v1019
      %v1083 = vadd.f32 %v1082, %v1020
      %v1084 = vadd.f32 %v1083, %v1021
      %v1085 = vadd.f32 %v1084, %v1022
      %v1086 = vadd.f32 %v1085, %v1023
      %v1087 = vadd.f32 %v1086, %v1024
      %v1088 = vadd.f32 %v1087, %v1025
      %v1089 = vadd.f32 %v1088, %v1026
      %v1090 = vadd.f32 %v1089, %v1027
      %v1091 = vadd.f32 %v1090, %v1028
      %v1092 = vadd.f32 %v1091, %v1029
      %v1093 = vadd.f32 %v1092, %v1030
      %v1094 = vadd.f32 %v1093, %v1031
      %v1095 = vadd.f32 %v1094, %v1032
      %v1096 = vadd.f32 %v1095, %v1033
      %v1097 = vadd.f32 %v1096, %v1034
      %v1098 = vadd.f32 %v1097, %v1035
      %v1099 = vadd.f32 %v1098, %v1036
      %v1100 = vadd.f32 %v1099, %v1037
      %v1101 = vadd.f32 %v1100, %v1038
      %v1102 = vadd.f32 %v1101, %v1039
      %v1103 = vadd.f32 %v1102, %v1040
      %v1104 = vadd.f32 %v1103, %v1041
      %v1105 = vadd.f32 %v1104, %v1042
      %v1106 = vadd.f32 %v1105, %v1043
      %v1107 = vadd.f32 %v1106, %v1044
      %v1108 = vadd.f32 %v1107, %v1045
      %v1109 = vadd.f32 %v1108, %v1046
      %v1110 = vadd.f32 %v1109, %v1047
      %v1111 = vadd.f32 %v1110, %v1048
      %v1112 = vadd.f32 %v1111, %v1049
      %v1113 = vadd.f32 %v1112, %v1050
      %v1114 = vadd.f32 %v1113, %v1051
      %v1115 = vadd.f32 %v1114, %v1052
      %v1116 = vrot.slane %v1115, 4
      %v1117 = vadd.f32 %v1115, %v1116
      %v1118 = vrot.slane %v1117, 2
      %v1119 = vadd.f32 %v1117, %v1118
      %v1120 = vrot.slane %v1119, 1
      %v1121 = vadd.f32 %v1119, %v1120
      %vm1122 = vcmask 1040384
      %v1123 = vsel %vm1122, %v988, %v1121
      %v1124 = vsel %vm563, %v1123, 0.0
      %p1125 = scmp.eq.s32.totalorder %s20, 0
      // Predicated region
      $region29: #{dt_forward.88} parent=27 // pred_check
        %p1126 = pneg %p1125
      $region30: #{dt_forward.88} parent=27 // pred_check_branch
        %1128 = sbr.rel (%p1126) target = $region32
      $region31: #{dt_forward.88} parent=27 // pred_region
        %1129 = vst [vmem:[%s220] sm:$0xff] %v1124
      $region32: #{dt_forward.88} parent=27 // pred_fallthru
        _
      %p1130 = scmp.gt.s32.totalorder %s20, 0
      // Predicated region
      $region33: #{dt_forward.88} parent=27 // pred_check
        %p1131 = pneg %p1130
      $region34: #{dt_forward.88} parent=27 // pred_check_branch
        %1133 = sbr.rel (%p1131) target = $region36
      $region35: #{dt_forward.88} parent=27 // pred_region
        %v1134 = vld [vmem:[%s220] sm:$0xff]
        %v1135 = vadd.f32 %v1134, %v1124
        %1136 = vst [vmem:[%s220] sm:$0xff] %v1135
      $region36: #{dt_forward.88} parent=27 // pred_fallthru
        _
      %s1137 = smul.u32 64, %s20
      %p1138 = scmp.lt.s32.totalorder %s19, 1
      %s1139 = scalar_select %p1138, %s19, 1
      %p1140 = scmp.lt.s32.totalorder %s1137, 127
      %s1141 = scalar_select %p1140, %s1137, 127
      %s1142 = smul.addr %s1139, 128
      %s1143 = sadd.s32 %s1141, %s1142
      %s1144 = smul.addr %s1143, 8
      %s1145 = scalar_lea.vmem %s2, %s1144
      %p1146 = scmp.lt.s32.totalorder %s19, 1
      %s1147 = scalar_select %p1146, %s19, 1
      %s1148 = smul.addr %s1147, 8
      %s1149 = scalar_lea.vmem %s3, %s1148
      // Predicated region
      $region37: #{dt_forward.88} parent=27 // pred_check
        %p1150 = pneg %p96
      $region38: #{dt_forward.88} parent=27 // pred_check_branch
        %1152 = sbr.rel (%p1150) target = $region40
      $region39: #{dt_forward.88} parent=27 // pred_region
        %s1153 = smul.u32 64, %s20
      $region40: #{dt_forward.88} parent=27 // pred_fallthru
        _
      // Predicated region
      $region41: #{dt_forward.88} parent=27 // pred_check
        %p1154 = pneg %p122
      $region42: #{dt_forward.88} parent=27 // pred_check_branch
        %1156 = sbr.rel (%p1154) target = $region44
      $region43: #{dt_forward.88} parent=27 // pred_region
        _
      $region44: #{dt_forward.88} parent=27 // pred_fallthru
        _
    $region28: #{dt_forward.88} parent=5 // pred_fallthru
      _
    %p1157 = scmp.le.s32.totalorder 2, %s10
    // Predicated region
    $region45: #{dt_forward.88} parent=5 // pred_check
      %p1158 = pneg %p1157
    $region46: #{dt_forward.88} parent=5 // pred_check_branch
      %1160 = sbr.rel (%p1158) target = $region48
    $region47: #{dt_forward.88} parent=5 // pred_region
      %s1161 = ssub.s32 %s10, 2
      // Predicated region
      $region49: #{dt_forward.88} parent=47 // pred_check
        %p1162 = pneg %p102
      $region50: #{dt_forward.88} parent=47 // pred_check_branch
        %1164 = sbr.rel (%p1162) target = $region52
      $region51: #{dt_forward.88} parent=47 // pred_region
        %s1165 = smul.u32 64, %s22
        %p1166 = scmp.lt.s32.totalorder %s21, 1
        %s1167 = scalar_select %p1166, %s21, 1
        %p1168 = scmp.lt.s32.totalorder %s1165, 127
        %s1169 = scalar_select %p1168, %s1165, 127
        %s1170 = smul.addr %s1167, 128
        %s1171 = sadd.s32 %s1169, %s1170
        %s1172 = smul.addr %s1171, 8
        %s1173 = scalar_lea.vmem %s2, %s1172
      $region52: #{dt_forward.88} parent=47 // pred_fallthru
        _
      // Predicated region
      $region53: #{dt_forward.88} parent=47 // pred_check
        %p1174 = pneg %p128
      $region54: #{dt_forward.88} parent=47 // pred_check_branch
        %1176 = sbr.rel (%p1174) target = $region56
      $region55: #{dt_forward.88} parent=47 // pred_region
        %p1177 = scmp.lt.s32.totalorder %s21, 1
        %s1178 = scalar_select %p1177, %s21, 1
        %s1179 = smul.addr %s1178, 8
        %s1180 = scalar_lea.vmem %s3, %s1179
      $region56: #{dt_forward.88} parent=47 // pred_fallthru
        _
    $region48: #{dt_forward.88} parent=5 // pred_fallthru
      _
  $region6: #{dt_forward.88} parent=0 // loop_footer
    %s14 = sadd.s32 1, %s10
  $region7: #{dt_forward.88} parent=0 // loop_footer_branch
    %9 = sbr.rel target = $region3
  $region8: #{dt_forward.88} parent=0 // loop_exit
    _

// kernel: dt_forward.90
$region0: #{dt_forward.90}
  #allocation0 [shape = 'u32[]', space=smem, size = 0x4, offset = 0x4, fixed_abs, tag = 'smem constant byte address 0x4 - core index']
  #allocation1 [shape = 'u32[144,128]{1,0:T(1,128)}', space=vmem, size = 0x12000, scoped, tag = 'internal scratch']
  %s0 = inlined_call_operand.vmem [shape: bf16[2,1024,72], index: 0, kind: input, shape index: {}]
  %s1 = inlined_call_operand.vmem [shape: bf16[72,128], index: 1, kind: input, shape index: {}]
  %s2 = inlined_call_operand.vmem [shape: f32[2,1024,128], index: 2, kind: output, shape index: {0}]
  %s3 = inlined_call_operand.vmem [shape: f32[2,8,128], index: 3, kind: output, shape index: {1}]
  %4 = xla_tuple %s2, %s3
  %s5 = sld [smem:[#allocation0]]
  $region57: #{dt_forward.90} parent=0
    _
  %s7 = ssub.s32 1, %s5
  %s8 = scalar_select 0, %s7, %s5
  loop: start=0, step=1, limit=6
  $region2: #{dt_forward.90} parent=0 // loop_pre_header
    _
  $region3: #{dt_forward.90} parent=0 // loop_header
    %s10 = sphi 0, %s14
    %p11 = scmp.ge.s32.totalorder %s10, 6
    %s17 = sphi 0, %s29
    %s18 = sphi 0, %s25
    %s19 = sphi 0, %s17
    %s20 = sphi 0, %s18
    %s21 = sphi 0, %s19
    %s22 = sphi 0, %s20
    %s34 = sphi 0, %s36
    %s37 = sphi 0, %s34
    %s38 = sphi 0, %s37
    %s54 = sphi 0, %s38
    %s58 = sphi 0, %s58
    %s60 = sphi 0, %s58
    %s61 = sphi 0, %s60
    %s75 = sphi 0, %s61
    %s83 = sphi 0, %s85
    %s86 = sphi 0, %s83
    %s87 = sphi 0, %s86
    %s103 = sphi 0, %s87
    %s109 = sphi 0, %s111
    %s112 = sphi 0, %s109
    %s113 = sphi 0, %s112
    %s129 = sphi 0, %s113
  $region4: #{dt_forward.90} parent=0 // loop_header_branch
    %13 = sbr.rel (%p11) target = $region8
  $region5: #{dt_forward.90} parent=0 // loop_body
    %s15 = ssub.s32 %s10, 1
    %s16 = ssub.s32 %s10, 2
    %s23 = sadd.s32 1, %s18
    %p24 = scmp.ge.s32.totalorder %s23, 2
    %s25 = scalar_select %p24, 0, %s23
    %s26 = sadd.s32 1, %s17
    %s27 = scalar_select %p24, %s26, %s17
    %p28 = scmp.ge.s32.totalorder %s27, 2
    %s29 = scalar_select %p28, 0, %s27
    %s30 = ssub.s32 %s17, %s29
    %s31 = ssub.s32 %s18, %s25
    %s32 = sor.u32 %s30, %s31
    %p33 = scmp.eq.s32.totalorder %s32, 0
    %s35 = sadd.s32 %s34, 1
    %s36 = scalar_select %p33, %s34, %s35
    %p39 = pneg %p33
    %p40 = scmp.eq.s32.totalorder %s10, 3
    %p41 = por %p39, %p40
    %p42 = scmp.ne.s32.totalorder %s34, %s37
    %p43 = scmp.eq.s32.totalorder %s10, 0
    %p44 = por %p42, %p43
    %p45 = scmp.ne.s32.totalorder %s34, %s37
    %p46 = scmp.eq.s32.totalorder %s15, 3
    %p47 = por %p45, %p46
    %p48 = scmp.ne.s32.totalorder %s37, %s38
    %p49 = scmp.eq.s32.totalorder %s15, 0
    %p50 = por %p48, %p49
    %p51 = scmp.ne.s32.totalorder %s37, %s38
    %p52 = scmp.eq.s32.totalorder %s16, 3
    %p53 = por %p51, %p52
    %p55 = scmp.ne.s32.totalorder %s38, %s54
    %p56 = scmp.eq.s32.totalorder %s16, 0
    %p57 = por %p55, %p56
    %s59 = sadd.s32 %s58, 1
    %p62 = scmp.eq.s32.totalorder %s10, 3
    %p63 = scmp.ne.s32.totalorder %s58, %s60
    %p64 = scmp.eq.s32.totalorder %s10, 0
    %p65 = por %p63, %p64
    %p66 = scmp.ne.s32.totalorder %s58, %s60
    %p67 = scmp.eq.s32.totalorder %s15, 3
    %p68 = por %p66, %p67
    %p69 = scmp.ne.s32.totalorder %s60, %s61
    %p70 = scmp.eq.s32.totalorder %s15, 0
    %p71 = por %p69, %p70
    %p72 = scmp.ne.s32.totalorder %s60, %s61
    %p73 = scmp.eq.s32.totalorder %s16, 3
    %p74 = por %p72, %p73
    %p76 = scmp.ne.s32.totalorder %s61, %s75
    %p77 = scmp.eq.s32.totalorder %s16, 0
    %p78 = por %p76, %p77
    %s79 = ssub.s32 %s17, %s29
    %s80 = ssub.s32 %s18, %s25
    %s81 = sor.u32 %s79, %s80
    %p82 = scmp.eq.s32.totalorder %s81, 0
    %s84 = sadd.s32 %s83, 1
    %s85 = scalar_select %p82, %s83, %s84
    %p88 = pneg %p82
    %p89 = scmp.eq.s32.totalorder %s10, 3
    %p90 = por %p88, %p89
    %p91 = scmp.ne.s32.totalorder %s83, %s86
    %p92 = scmp.eq.s32.totalorder %s10, 0
    %p93 = por %p91, %p92
    %p94 = scmp.ne.s32.totalorder %s83, %s86
    %p95 = scmp.eq.s32.totalorder %s15, 3
    %p96 = por %p94, %p95
    %p97 = scmp.ne.s32.totalorder %s86, %s87
    %p98 = scmp.eq.s32.totalorder %s15, 0
    %p99 = por %p97, %p98
    %p100 = scmp.ne.s32.totalorder %s86, %s87
    %p101 = scmp.eq.s32.totalorder %s16, 3
    %p102 = por %p100, %p101
    %p104 = scmp.ne.s32.totalorder %s87, %s103
    %p105 = scmp.eq.s32.totalorder %s16, 0
    %p106 = por %p104, %p105
    %s107 = ssub.s32 %s17, %s29
    %p108 = scmp.eq.s32.totalorder %s107, 0
    %s110 = sadd.s32 %s109, 1
    %s111 = scalar_select %p108, %s109, %s110
    %p114 = pneg %p108
    %p115 = scmp.eq.s32.totalorder %s10, 3
    %p116 = por %p114, %p115
    %p117 = scmp.ne.s32.totalorder %s109, %s112
    %p118 = scmp.eq.s32.totalorder %s10, 0
    %p119 = por %p117, %p118
    %p120 = scmp.ne.s32.totalorder %s109, %s112
    %p121 = scmp.eq.s32.totalorder %s15, 3
    %p122 = por %p120, %p121
    %p123 = scmp.ne.s32.totalorder %s112, %s113
    %p124 = scmp.eq.s32.totalorder %s15, 0
    %p125 = por %p123, %p124
    %p126 = scmp.ne.s32.totalorder %s112, %s113
    %p127 = scmp.eq.s32.totalorder %s16, 3
    %p128 = por %p126, %p127
    %p130 = scmp.ne.s32.totalorder %s113, %s129
    %p131 = scmp.eq.s32.totalorder %s16, 0
    %p132 = por %p130, %p131
    %p133 = scmp.le.s32.totalorder 1, %s10
    %p134 = scmp.lt.s32.totalorder %s10, 5
    %p135 = pnand %p133, %p134
    %p136 = pneg %p135
    // Predicated region
    $region9: #{dt_forward.90} parent=5 // pred_check
      _
    $region10: #{dt_forward.90} parent=5 // pred_check_branch
      %138 = sbr.rel (%p135) target = $region12
    $region11: #{dt_forward.90} parent=5 // pred_region
      %s139 = ssub.s32 %s10, 1
      // Predicated region
      $region13: #{dt_forward.90} parent=11 // pred_check
        %p140 = pneg %p71
      $region14: #{dt_forward.90} parent=11 // pred_check_branch
        %142 = sbr.rel (%p140) target = $region16
      $region15: #{dt_forward.90} parent=11 // pred_region
        _
      $region16: #{dt_forward.90} parent=11 // pred_fallthru
        _
    $region12: #{dt_forward.90} parent=5 // pred_fallthru
      _
    %p143 = scmp.lt.s32.totalorder %s10, 4
    // Predicated region
    $region17: #{dt_forward.90} parent=5 // pred_check
      %p144 = pneg %p143
    $region18: #{dt_forward.90} parent=5 // pred_check_branch
      %146 = sbr.rel (%p144) target = $region20
    $region19: #{dt_forward.90} parent=5 // pred_region
      // Predicated region
      $region21: #{dt_forward.90} parent=19 // pred_check
        %p147 = pneg %p44
      $region22: #{dt_forward.90} parent=19 // pred_check_branch
        %149 = sbr.rel (%p147) target = $region24
      $region23: #{dt_forward.90} parent=19 // pred_region
        %s150 = smul.u32 64, %s18
        %p151 = scmp.lt.s32.totalorder %s17, 1
        %s152 = scalar_select %p151, %s17, 1
        %p153 = scmp.lt.s32.totalorder %s150, 127
        %s154 = scalar_select %p153, %s150, 127
        %s155 = smul.addr %s152, 128
        %s156 = sadd.s32 %s154, %s155
        %s157 = smul.addr %s156, 4
        %s158 = scalar_lea.vmem %s0, %s157
        %s159 = smul.u32 64, %s18
      $region24: #{dt_forward.90} parent=19 // pred_fallthru
        _
    $region20: #{dt_forward.90} parent=5 // pred_fallthru
      _
    %p160 = scmp.le.s32.totalorder 1, %s10
    %p161 = scmp.lt.s32.totalorder %s10, 5
    %p162 = pnand %p160, %p161
    %p163 = pneg %p162
    // Predicated region
    $region25: #{dt_forward.90} parent=5 // pred_check
      _
    $region26: #{dt_forward.90} parent=5 // pred_check_branch
      %165 = sbr.rel (%p162) target = $region28
    $region27: #{dt_forward.90} parent=5 // pred_region
      %s166 = ssub.s32 %s10, 1
      %s167 = smul.u32 64, %s20
      %p168 = scmp.lt.s32.totalorder %s19, 1
      %s169 = scalar_select %p168, %s19, 1
      %p170 = scmp.lt.s32.totalorder %s167, 127
      %s171 = scalar_select %p170, %s167, 127
      %s172 = smul.addr %s169, 128
      %s173 = sadd.s32 %s171, %s172
      %s174 = smul.addr %s173, 4
      %s175 = scalar_lea.vmem %s0, %s174
      %p176 = pneg %p50
      %p177 = pneg %p47
      %p178 = pneg %p71
      %p179 = pneg %p68
      %p180 = pneg %p99
      %p181 = pneg %p96
      %s182 = smul.u32 64, %s20
      %p183 = scmp.lt.s32.totalorder %s19, 1
      %s184 = scalar_select %p183, %s19, 1
      %p185 = scmp.lt.s32.totalorder %s182, 127
      %s186 = scalar_select %p185, %s182, 127
      %s187 = smul.addr %s184, 128
      %s188 = sadd.s32 %s186, %s187
      %s189 = smul.addr %s188, 8
      %s190 = scalar_lea.vmem %s2, %s189
      %p191 = pneg %p125
      %p192 = pneg %p122
      %p193 = scmp.lt.s32.totalorder %s19, 1
      %s194 = scalar_select %p193, %s19, 1
      %s195 = smul.addr %s194, 8
      %s196 = scalar_lea.vmem %s3, %s195
      %s197 = smul.u32 64, %s20
      %p198 = scmp.lt.s32.totalorder %s19, 1
      %s199 = scalar_select %p198, %s19, 1
      %p200 = scmp.lt.s32.totalorder %s197, 127
      %s201 = scalar_select %p200, %s197, 127
      %s202 = smul.addr %s199, 128
      %s203 = sadd.s32 %s201, %s202
      %s204 = smul.addr %s203, 4
      %s205 = scalar_lea.vmem %s0, %s204
      %s206 = smul.u32 64, %s20
      %s207 = smul.u32 64, %s20
      %p208 = scmp.lt.s32.totalorder %s19, 1
      %s209 = scalar_select %p208, %s19, 1
      %p210 = scmp.lt.s32.totalorder %s207, 127
      %s211 = scalar_select %p210, %s207, 127
      %s212 = smul.addr %s209, 128
      %s213 = sadd.s32 %s211, %s212
      %s214 = smul.addr %s213, 8
      %s215 = scalar_lea.vmem %s2, %s214
      %s216 = smul.u32 64, %s20
      %p217 = scmp.lt.s32.totalorder %s19, 1
      %s218 = scalar_select %p217, %s19, 1
      %s219 = smul.addr %s218, 8
      %s220 = scalar_lea.vmem %s3, %s219
      %v222 = vld [vmem:[%s205] sm:$0xf]
      %v223 = vld [vmem:[%s205 + $0x4] sm:$0xf]
      %v224 = vld [vmem:[%s205 + $0x8] sm:$0xf]
      %v225 = vld [vmem:[%s205 + $0xc] sm:$0xf]
      %v226 = vld [vmem:[%s205 + $0x10] sm:$0xf]
      %v227 = vld [vmem:[%s205 + $0x14] sm:$0xf]
      %v228 = vld [vmem:[%s205 + $0x18] sm:$0xf]
      %v229 = vld [vmem:[%s205 + $0x1c] sm:$0xf]
      %v230 = vld [vmem:[%s205 + $0x20] sm:$0xf]
      %v231 = vld [vmem:[%s205 + $0x24] sm:$0xf]
      %v232 = vld [vmem:[%s205 + $0x28] sm:$0xf]
      %v233 = vld [vmem:[%s205 + $0x2c] sm:$0xf]
      %v234 = vld [vmem:[%s205 + $0x30] sm:$0xf]
      %v235 = vld [vmem:[%s205 + $0x34] sm:$0xf]
      %v236 = vld [vmem:[%s205 + $0x38] sm:$0xf]
      %v237 = vld [vmem:[%s205 + $0x3c] sm:$0xf]
      %v238 = vld [vmem:[%s205 + $0x40] sm:$0xf]
      %v239 = vld [vmem:[%s205 + $0x44] sm:$0xf]
      %v240 = vld [vmem:[%s205 + $0x48] sm:$0xf]
      %v241 = vld [vmem:[%s205 + $0x4c] sm:$0xf]
      %v242 = vld [vmem:[%s205 + $0x50] sm:$0xf]
      %v243 = vld [vmem:[%s205 + $0x54] sm:$0xf]
      %v244 = vld [vmem:[%s205 + $0x58] sm:$0xf]
      %v245 = vld [vmem:[%s205 + $0x5c] sm:$0xf]
      %v246 = vld [vmem:[%s205 + $0x60] sm:$0xf]
      %v247 = vld [vmem:[%s205 + $0x64] sm:$0xf]
      %v248 = vld [vmem:[%s205 + $0x68] sm:$0xf]
      %v249 = vld [vmem:[%s205 + $0x6c] sm:$0xf]
      %v250 = vld [vmem:[%s205 + $0x70] sm:$0xf]
      %v251 = vld [vmem:[%s205 + $0x74] sm:$0xf]
      %v252 = vld [vmem:[%s205 + $0x78] sm:$0xf]
      %v253 = vld [vmem:[%s205 + $0x7c] sm:$0xf]
      %v254 = vld [vmem:[%s205 + $0x80] sm:$0xf]
      %v255 = vld [vmem:[%s205 + $0x84] sm:$0xf]
      %v256 = vld [vmem:[%s205 + $0x88] sm:$0xf]
      %v257 = vld [vmem:[%s205 + $0x8c] sm:$0xf]
      %v258 = vld [vmem:[%s205 + $0x90] sm:$0xf]
      %v259 = vld [vmem:[%s205 + $0x94] sm:$0xf]
      %v260 = vld [vmem:[%s205 + $0x98] sm:$0xf]
      %v261 = vld [vmem:[%s205 + $0x9c] sm:$0xf]
      %v262 = vld [vmem:[%s205 + $0xa0] sm:$0xf]
      %v263 = vld [vmem:[%s205 + $0xa4] sm:$0xf]
      %v264 = vld [vmem:[%s205 + $0xa8] sm:$0xf]
      %v265 = vld [vmem:[%s205 + $0xac] sm:$0xf]
      %v266 = vld [vmem:[%s205 + $0xb0] sm:$0xf]
      %v267 = vld [vmem:[%s205 + $0xb4] sm:$0xf]
      %v268 = vld [vmem:[%s205 + $0xb8] sm:$0xf]
      %v269 = vld [vmem:[%s205 + $0xbc] sm:$0xf]
      %v270 = vld [vmem:[%s205 + $0xc0] sm:$0xf]
      %v271 = vld [vmem:[%s205 + $0xc4] sm:$0xf]
      %v272 = vld [vmem:[%s205 + $0xc8] sm:$0xf]
      %v273 = vld [vmem:[%s205 + $0xcc] sm:$0xf]
      %v274 = vld [vmem:[%s205 + $0xd0] sm:$0xf]
      %v275 = vld [vmem:[%s205 + $0xd4] sm:$0xf]
      %v276 = vld [vmem:[%s205 + $0xd8] sm:$0xf]
      %v277 = vld [vmem:[%s205 + $0xdc] sm:$0xf]
      %v278 = vld [vmem:[%s205 + $0xe0] sm:$0xf]
      %v279 = vld [vmem:[%s205 + $0xe4] sm:$0xf]
      %v280 = vld [vmem:[%s205 + $0xe8] sm:$0xf]
      %v281 = vld [vmem:[%s205 + $0xec] sm:$0xf]
      %v282 = vld [vmem:[%s205 + $0xf0] sm:$0xf]
      %v283 = vld [vmem:[%s205 + $0xf4] sm:$0xf]
      %v284 = vld [vmem:[%s205 + $0xf8] sm:$0xf]
      %v285 = vld [vmem:[%s205 + $0xfc] sm:$0xf]
      %v286 = vld [vmem:[%s1] sm:$0xf]
      %v287 = vld [vmem:[%s1 + $0x4] sm:$0xf]
      %v288 = vld [vmem:[%s1 + $0x8] sm:$0xf]
      %v289 = vld [vmem:[%s1 + $0xc] sm:$0xf]
      %v290 = vld [vmem:[%s1 + $0x10] sm:$0xf]
      %v291 = vld [vmem:[%s1 + $0x14] sm:$0xf]
      %v292 = vld [vmem:[%s1 + $0x18] sm:$0xf]
      %v293 = vld [vmem:[%s1 + $0x1c] sm:$0xf]
      %v294 = vld [vmem:[%s1 + $0x20] sm:$0xf]
      %v359 = vunpack.c.l.b16 %v222
      %v360 = vunpack.c.l.b16 %v223
      %v361 = vunpack.c.l.b16 %v224
      %v362 = vunpack.c.l.b16 %v225
      %v363 = vunpack.c.l.b16 %v226
      %v364 = vunpack.c.l.b16 %v227
      %v365 = vunpack.c.l.b16 %v228
      %v366 = vunpack.c.l.b16 %v229
      %v367 = vunpack.c.l.b16 %v230
      %v368 = vunpack.c.l.b16 %v231
      %v369 = vunpack.c.l.b16 %v232
      %v370 = vunpack.c.l.b16 %v233
      %v371 = vunpack.c.l.b16 %v234
      %v372 = vunpack.c.l.b16 %v235
      %v373 = vunpack.c.l.b16 %v236
      %v374 = vunpack.c.l.b16 %v237
      %v375 = vunpack.c.l.b16 %v238
      %v376 = vunpack.c.l.b16 %v239
      %v377 = vunpack.c.l.b16 %v240
      %v378 = vunpack.c.l.b16 %v241
      %v379 = vunpack.c.l.b16 %v242
      %v380 = vunpack.c.l.b16 %v243
      %v381 = vunpack.c.l.b16 %v244
      %v382 = vunpack.c.l.b16 %v245
      %v383 = vunpack.c.l.b16 %v246
      %v384 = vunpack.c.l.b16 %v247
      %v385 = vunpack.c.l.b16 %v248
      %v386 = vunpack.c.l.b16 %v249
      %v387 = vunpack.c.l.b16 %v250
      %v388 = vunpack.c.l.b16 %v251
      %v389 = vunpack.c.l.b16 %v252
      %v390 = vunpack.c.l.b16 %v253
      %v391 = vunpack.c.l.b16 %v254
      %v392 = vunpack.c.l.b16 %v255
      %v393 = vunpack.c.l.b16 %v256
      %v394 = vunpack.c.l.b16 %v257
      %v395 = vunpack.c.l.b16 %v258
      %v396 = vunpack.c.l.b16 %v259
      %v397 = vunpack.c.l.b16 %v260
      %v398 = vunpack.c.l.b16 %v261
      %v399 = vunpack.c.l.b16 %v262
      %v400 = vunpack.c.l.b16 %v263
      %v401 = vunpack.c.l.b16 %v264
      %v402 = vunpack.c.l.b16 %v265
      %v403 = vunpack.c.l.b16 %v266
      %v404 = vunpack.c.l.b16 %v267
      %v405 = vunpack.c.l.b16 %v268
      %v406 = vunpack.c.l.b16 %v269
      %v407 = vunpack.c.l.b16 %v270
      %v408 = vunpack.c.l.b16 %v271
      %v409 = vunpack.c.l.b16 %v272
      %v410 = vunpack.c.l.b16 %v273
      %v411 = vunpack.c.l.b16 %v274
      %v412 = vunpack.c.l.b16 %v275
      %v413 = vunpack.c.l.b16 %v276
      %v414 = vunpack.c.l.b16 %v277
      %v415 = vunpack.c.l.b16 %v278
      %v416 = vunpack.c.l.b16 %v279
      %v417 = vunpack.c.l.b16 %v280
      %v418 = vunpack.c.l.b16 %v281
      %v419 = vunpack.c.l.b16 %v282
      %v420 = vunpack.c.l.b16 %v283
      %v421 = vunpack.c.l.b16 %v284
      %v422 = vunpack.c.l.b16 %v285
      %v423 = vpack.c.b16 %v360, %v359
      %v424 = vpack.c.b16 %v362, %v361
      %v425 = vpack.c.b16 %v364, %v363
      %v426 = vpack.c.b16 %v366, %v365
      %v427 = vpack.c.b16 %v368, %v367
      %v428 = vpack.c.b16 %v370, %v369
      %v429 = vpack.c.b16 %v372, %v371
      %v430 = vpack.c.b16 %v374, %v373
      %v431 = vpack.c.b16 %v376, %v375
      %v432 = vpack.c.b16 %v378, %v377
      %v433 = vpack.c.b16 %v380, %v379
      %v434 = vpack.c.b16 %v382, %v381
      %v435 = vpack.c.b16 %v384, %v383
      %v436 = vpack.c.b16 %v386, %v385
      %v437 = vpack.c.b16 %v388, %v387
      %v438 = vpack.c.b16 %v390, %v389
      %v439 = vpack.c.b16 %v392, %v391
      %v440 = vpack.c.b16 %v394, %v393
      %v441 = vpack.c.b16 %v396, %v395
      %v442 = vpack.c.b16 %v398, %v397
      %v443 = vpack.c.b16 %v400, %v399
      %v444 = vpack.c.b16 %v402, %v401
      %v445 = vpack.c.b16 %v404, %v403
      %v446 = vpack.c.b16 %v406, %v405
      %v447 = vpack.c.b16 %v408, %v407
      %v448 = vpack.c.b16 %v410, %v409
      %v449 = vpack.c.b16 %v412, %v411
      %v450 = vpack.c.b16 %v414, %v413
      %v451 = vpack.c.b16 %v416, %v415
      %v452 = vpack.c.b16 %v418, %v417
      %v453 = vpack.c.b16 %v420, %v419
      %v454 = vpack.c.b16 %v422, %v421
      %v464 = vunpack.c.l.b16 %v286
      %v465 = vunpack.c.l.b16 %v287
      %v466 = vunpack.c.l.b16 %v288
      %v467 = vunpack.c.l.b16 %v289
      %v468 = vunpack.c.l.b16 %v290
      %v469 = vunpack.c.l.b16 %v291
      %v470 = vunpack.c.l.b16 %v292
      %v471 = vunpack.c.l.b16 %v293
      %v472 = vunpack.c.l.b16 %v294
      %v473 = vpack.c.b16 %v465, %v464
      %v474 = vpack.c.b16 %v467, %v466
      %v475 = vpack.c.b16 %v469, %v468
      %v476 = vpack.c.b16 %v471, %v470
      %v477 = vpack.c.b16 %v472, %v472
      %vm482 = vcmask 588800
      %v484 = vsel %vm482, %v423, 0
      %v487 = vsel %vm482, %v424, 0
      %v490 = vsel %vm482, %v425, 0
      %v493 = vsel %vm482, %v426, 0
      %v496 = vsel %vm482, %v427, 0
      %v499 = vsel %vm482, %v428, 0
      %v502 = vsel %vm482, %v429, 0
      %v505 = vsel %vm482, %v430, 0
      %v508 = vsel %vm482, %v431, 0
      %v511 = vsel %vm482, %v432, 0
      %v514 = vsel %vm482, %v433, 0
      %v517 = vsel %vm482, %v434, 0
      %v520 = vsel %vm482, %v435, 0
      %v523 = vsel %vm482, %v436, 0
      %v526 = vsel %vm482, %v437, 0
      %v529 = vsel %vm482, %v438, 0
      %v532 = vsel %vm482, %v439, 0
      %v535 = vsel %vm482, %v440, 0
      %v538 = vsel %vm482, %v441, 0
      %v541 = vsel %vm482, %v442, 0
      %v544 = vsel %vm482, %v443, 0
      %v547 = vsel %vm482, %v444, 0
      %v550 = vsel %vm482, %v445, 0
      %v553 = vsel %vm482, %v446, 0
      %v556 = vsel %vm482, %v447, 0
      %v559 = vsel %vm482, %v448, 0
      %v562 = vsel %vm482, %v449, 0
      %v565 = vsel %vm482, %v450, 0
      %v568 = vsel %vm482, %v451, 0
      %v571 = vsel %vm482, %v452, 0
      %v574 = vsel %vm482, %v453, 0
      %v577 = vsel %vm482, %v454, 0
      %vm579 = vcmask 1043456
      %v581 = vsel %vm579, %v477, 0
      %583 = vmatprep.subr.bf16.mxu0 0
      %584 = vmatpush1.bf16.msra.mxu0 %v473
      %585 = vmatprep.subr.bf16.mxu0 0
      %586 = vmatpush1.bf16.msra.mxu0 %v474
      %587 = vmatprep.subr.bf16.mxu0 0
      %588 = vmatpush1.bf16.msra.mxu0 %v475
      %589 = vmatprep.subr.bf16.mxu0 0
      %590 = vmatpush1.bf16.msra.mxu0 %v476
      %591 = vmatprep.subr.bf16.mxu0 0
      %592 = vmatpush1.bf16.msra.mxu0 %v581
      %593 = vmatprep.subr.bf16.mxu0 0
      %594 = vmatpush1.bf16.msra.mxu0 0
      %595 = vmatprep.subr.bf16.mxu0 0
      %596 = vmatpush1.bf16.msra.mxu0 0
      %597 = vmatprep.subr.bf16.mxu0 0
      %598 = vmatpush1.bf16.msra.mxu0 0
      %599 = vmatprep.subr.bf16.mxu0 0
      %600 = vmatpush1.bf16.msra.mxu0 0
      %601 = vmatprep.subr.bf16.mxu0 0
      %602 = vmatpush1.bf16.msra.mxu0 0
      %603 = vmatprep.subr.bf16.mxu0 0
      %604 = vmatpush1.bf16.msra.mxu0 0
      %605 = vmatprep.subr.bf16.mxu0 0
      %606 = vmatpush1.bf16.msra.mxu0 0
      %607 = vmatprep.subr.bf16.mxu0 0
      %608 = vmatpush1.bf16.msra.mxu0 0
      %609 = vmatprep.subr.bf16.mxu0 0
      %610 = vmatpush1.bf16.msra.mxu0 0
      %611 = vmatprep.subr.bf16.mxu0 0
      %612 = vmatpush1.bf16.msra.mxu0 0
      %613 = vmatprep.subr.bf16.mxu0 0
      %614 = vmatpush1.bf16.msra.mxu0 0
      %615 = vmatprep.mubr.bf16.mxu0 0
      %616 = vmatmul.mubr.bf16.gmra.mrb[0].mxu0 %v484
      %v617 = vpop.f32.mrb[0].mxu0
      %v618 = vadd.f32 0.0, %v617
      %v619 = vpop.f32.mrb[0].mxu0
      %v620 = vpop.f32.mrb[0].mxu0
      %v621 = vadd.f32 0.0, %v620
      %v622 = vpop.f32.mrb[0].mxu0
      %623 = vmatprep.mubr.bf16.mxu0 0
      %624 = vmatmul.mubr.bf16.gmra.mrb[0].mxu0 %v487
      %v625 = vpop.f32.mrb[0].mxu0
      %v626 = vadd.f32 0.0, %v625
      %v627 = vpop.f32.mrb[0].mxu0
      %v628 = vpop.f32.mrb[0].mxu0
      %v629 = vadd.f32 0.0, %v628
      %v630 = vpop.f32.mrb[0].mxu0
      %631 = vmatprep.mubr.bf16.mxu0 0
      %632 = vmatmul.mubr.bf16.gmra.mrb[0].mxu0 %v490
      %v633 = vpop.f32.mrb[0].mxu0
      %v634 = vadd.f32 0.0, %v633
      %v635 = vpop.f32.mrb[0].mxu0
      %v636 = vpop.f32.mrb[0].mxu0
      %v637 = vadd.f32 0.0, %v636
      %v638 = vpop.f32.mrb[0].mxu0
      %639 = vmatprep.mubr.bf16.mxu0 0
      %640 = vmatmul.mubr.bf16.gmra.mrb[0].mxu0 %v493
      %v641 = vpop.f32.mrb[0].mxu0
      %v642 = vadd.f32 0.0, %v641
      %v643 = vpop.f32.mrb[0].mxu0
      %v644 = vpop.f32.mrb[0].mxu0
      %v645 = vadd.f32 0.0, %v644
      %v646 = vpop.f32.mrb[0].mxu0
      %647 = vmatprep.mubr.bf16.mxu0 0
      %648 = vmatmul.mubr.bf16.gmra.mrb[0].mxu0 %v496
      %v649 = vpop.f32.mrb[0].mxu0
      %v650 = vadd.f32 0.0, %v649
      %v651 = vpop.f32.mrb[0].mxu0
      %v652 = vpop.f32.mrb[0].mxu0
      %v653 = vadd.f32 0.0, %v652
      %v654 = vpop.f32.mrb[0].mxu0
      %655 = vmatprep.mubr.bf16.mxu0 0
      %656 = vmatmul.mubr.bf16.gmra.mrb[0].mxu0 %v499
      %v657 = vpop.f32.mrb[0].mxu0
      %v658 = vadd.f32 0.0, %v657
      %v659 = vpop.f32.mrb[0].mxu0
      %v660 = vpop.f32.mrb[0].mxu0
      %v661 = vadd.f32 0.0, %v660
      %v662 = vpop.f32.mrb[0].mxu0
      %663 = vmatprep.mubr.bf16.mxu0 0
      %664 = vmatmul.mubr.bf16.gmra.mrb[0].mxu0 %v502
      %v665 = vpop.f32.mrb[0].mxu0
      %v666 = vadd.f32 0.0, %v665
      %v667 = vpop.f32.mrb[0].mxu0
      %v668 = vpop.f32.mrb[0].mxu0
      %v669 = vadd.f32 0.0, %v668
      %v670 = vpop.f32.mrb[0].mxu0
      %671 = vmatprep.mubr.bf16.mxu0 0
      %672 = vmatmul.mubr.bf16.gmra.mrb[0].mxu0 %v505
      %v673 = vpop.f32.mrb[0].mxu0
      %v674 = vadd.f32 0.0, %v673
      %v675 = vpop.f32.mrb[0].mxu0
      %v676 = vpop.f32.mrb[0].mxu0
      %v677 = vadd.f32 0.0, %v676
      %v678 = vpop.f32.mrb[0].mxu0
      %679 = vmatprep.mubr.bf16.mxu0 0
      %680 = vmatmul.mubr.bf16.gmra.mrb[0].mxu0 %v508
      %v681 = vpop.f32.mrb[0].mxu0
      %v682 = vadd.f32 0.0, %v681
      %v683 = vpop.f32.mrb[0].mxu0
      %v684 = vpop.f32.mrb[0].mxu0
      %v685 = vadd.f32 0.0, %v684
      %v686 = vpop.f32.mrb[0].mxu0
      %687 = vmatprep.mubr.bf16.mxu0 0
      %688 = vmatmul.mubr.bf16.gmra.mrb[0].mxu0 %v511
      %v689 = vpop.f32.mrb[0].mxu0
      %v690 = vadd.f32 0.0, %v689
      %v691 = vpop.f32.mrb[0].mxu0
      %v692 = vpop.f32.mrb[0].mxu0
      %v693 = vadd.f32 0.0, %v692
      %v694 = vpop.f32.mrb[0].mxu0
      %695 = vmatprep.mubr.bf16.mxu0 0
      %696 = vmatmul.mubr.bf16.gmra.mrb[0].mxu0 %v514
      %v697 = vpop.f32.mrb[0].mxu0
      %v698 = vadd.f32 0.0, %v697
      %v699 = vpop.f32.mrb[0].mxu0
      %v700 = vpop.f32.mrb[0].mxu0
      %v701 = vadd.f32 0.0, %v700
      %v702 = vpop.f32.mrb[0].mxu0
      %703 = vmatprep.mubr.bf16.mxu0 0
      %704 = vmatmul.mubr.bf16.gmra.mrb[0].mxu0 %v517
      %v705 = vpop.f32.mrb[0].mxu0
      %v706 = vadd.f32 0.0, %v705
      %v707 = vpop.f32.mrb[0].mxu0
      %v708 = vpop.f32.mrb[0].mxu0
      %v709 = vadd.f32 0.0, %v708
      %v710 = vpop.f32.mrb[0].mxu0
      %711 = vmatprep.mubr.bf16.mxu0 0
      %712 = vmatmul.mubr.bf16.gmra.mrb[0].mxu0 %v520
      %v713 = vpop.f32.mrb[0].mxu0
      %v714 = vadd.f32 0.0, %v713
      %v715 = vpop.f32.mrb[0].mxu0
      %v716 = vpop.f32.mrb[0].mxu0
      %v717 = vadd.f32 0.0, %v716
      %v718 = vpop.f32.mrb[0].mxu0
      %719 = vmatprep.mubr.bf16.mxu0 0
      %720 = vmatmul.mubr.bf16.gmra.mrb[0].mxu0 %v523
      %v721 = vpop.f32.mrb[0].mxu0
      %v722 = vadd.f32 0.0, %v721
      %v723 = vpop.f32.mrb[0].mxu0
      %v724 = vpop.f32.mrb[0].mxu0
      %v725 = vadd.f32 0.0, %v724
      %v726 = vpop.f32.mrb[0].mxu0
      %727 = vmatprep.mubr.bf16.mxu0 0
      %728 = vmatmul.mubr.bf16.gmra.mrb[0].mxu0 %v526
      %v729 = vpop.f32.mrb[0].mxu0
      %v730 = vadd.f32 0.0, %v729
      %v731 = vpop.f32.mrb[0].mxu0
      %v732 = vpop.f32.mrb[0].mxu0
      %v733 = vadd.f32 0.0, %v732
      %v734 = vpop.f32.mrb[0].mxu0
      %735 = vmatprep.mubr.bf16.mxu0 0
      %736 = vmatmul.mubr.bf16.gmra.mrb[0].mxu0 %v529
      %v737 = vpop.f32.mrb[0].mxu0
      %v738 = vadd.f32 0.0, %v737
      %v739 = vpop.f32.mrb[0].mxu0
      %v740 = vpop.f32.mrb[0].mxu0
      %v741 = vadd.f32 0.0, %v740
      %v742 = vpop.f32.mrb[0].mxu0
      %743 = vmatprep.mubr.bf16.mxu0 0
      %744 = vmatmul.mubr.bf16.gmra.mrb[0].mxu0 %v532
      %v745 = vpop.f32.mrb[0].mxu0
      %v746 = vadd.f32 0.0, %v745
      %v747 = vpop.f32.mrb[0].mxu0
      %v748 = vpop.f32.mrb[0].mxu0
      %v749 = vadd.f32 0.0, %v748
      %v750 = vpop.f32.mrb[0].mxu0
      %751 = vmatprep.mubr.bf16.mxu0 0
      %752 = vmatmul.mubr.bf16.gmra.mrb[0].mxu0 %v535
      %v753 = vpop.f32.mrb[0].mxu0
      %v754 = vadd.f32 0.0, %v753
      %v755 = vpop.f32.mrb[0].mxu0
      %v756 = vpop.f32.mrb[0].mxu0
      %v757 = vadd.f32 0.0, %v756
      %v758 = vpop.f32.mrb[0].mxu0
      %759 = vmatprep.mubr.bf16.mxu0 0
      %760 = vmatmul.mubr.bf16.gmra.mrb[0].mxu0 %v538
      %v761 = vpop.f32.mrb[0].mxu0
      %v762 = vadd.f32 0.0, %v761
      %v763 = vpop.f32.mrb[0].mxu0
      %v764 = vpop.f32.mrb[0].mxu0
      %v765 = vadd.f32 0.0, %v764
      %v766 = vpop.f32.mrb[0].mxu0
      %767 = vmatprep.mubr.bf16.mxu0 0
      %768 = vmatmul.mubr.bf16.gmra.mrb[0].mxu0 %v541
      %v769 = vpop.f32.mrb[0].mxu0
      %v770 = vadd.f32 0.0, %v769
      %v771 = vpop.f32.mrb[0].mxu0
      %v772 = vpop.f32.mrb[0].mxu0
      %v773 = vadd.f32 0.0, %v772
      %v774 = vpop.f32.mrb[0].mxu0
      %775 = vmatprep.mubr.bf16.mxu0 0
      %776 = vmatmul.mubr.bf16.gmra.mrb[0].mxu0 %v544
      %v777 = vpop.f32.mrb[0].mxu0
      %v778 = vadd.f32 0.0, %v777
      %v779 = vpop.f32.mrb[0].mxu0
      %v780 = vpop.f32.mrb[0].mxu0
      %v781 = vadd.f32 0.0, %v780
      %v782 = vpop.f32.mrb[0].mxu0
      %783 = vmatprep.mubr.bf16.mxu0 0
      %784 = vmatmul.mubr.bf16.gmra.mrb[0].mxu0 %v547
      %v785 = vpop.f32.mrb[0].mxu0
      %v786 = vadd.f32 0.0, %v785
      %v787 = vpop.f32.mrb[0].mxu0
      %v788 = vpop.f32.mrb[0].mxu0
      %v789 = vadd.f32 0.0, %v788
      %v790 = vpop.f32.mrb[0].mxu0
      %791 = vmatprep.mubr.bf16.mxu0 0
      %792 = vmatmul.mubr.bf16.gmra.mrb[0].mxu0 %v550
      %v793 = vpop.f32.mrb[0].mxu0
      %v794 = vadd.f32 0.0, %v793
      %v795 = vpop.f32.mrb[0].mxu0
      %v796 = vpop.f32.mrb[0].mxu0
      %v797 = vadd.f32 0.0, %v796
      %v798 = vpop.f32.mrb[0].mxu0
      %799 = vmatprep.mubr.bf16.mxu0 0
      %800 = vmatmul.mubr.bf16.gmra.mrb[0].mxu0 %v553
      %v801 = vpop.f32.mrb[0].mxu0
      %v802 = vadd.f32 0.0, %v801
      %v803 = vpop.f32.mrb[0].mxu0
      %v804 = vpop.f32.mrb[0].mxu0
      %v805 = vadd.f32 0.0, %v804
      %v806 = vpop.f32.mrb[0].mxu0
      %807 = vmatprep.mubr.bf16.mxu0 0
      %808 = vmatmul.mubr.bf16.gmra.mrb[0].mxu0 %v556
      %v809 = vpop.f32.mrb[0].mxu0
      %v810 = vadd.f32 0.0, %v809
      %v811 = vpop.f32.mrb[0].mxu0
      %v812 = vpop.f32.mrb[0].mxu0
      %v813 = vadd.f32 0.0, %v812
      %v814 = vpop.f32.mrb[0].mxu0
      %815 = vmatprep.mubr.bf16.mxu0 0
      %816 = vmatmul.mubr.bf16.gmra.mrb[0].mxu0 %v559
      %v817 = vpop.f32.mrb[0].mxu0
      %v818 = vadd.f32 0.0, %v817
      %v819 = vpop.f32.mrb[0].mxu0
      %v820 = vpop.f32.mrb[0].mxu0
      %v821 = vadd.f32 0.0, %v820
      %v822 = vpop.f32.mrb[0].mxu0
      %823 = vmatprep.mubr.bf16.mxu0 0
      %824 = vmatmul.mubr.bf16.gmra.mrb[0].mxu0 %v562
      %v825 = vpop.f32.mrb[0].mxu0
      %v826 = vadd.f32 0.0, %v825
      %v827 = vpop.f32.mrb[0].mxu0
      %v828 = vpop.f32.mrb[0].mxu0
      %v829 = vadd.f32 0.0, %v828
      %v830 = vpop.f32.mrb[0].mxu0
      %831 = vmatprep.mubr.bf16.mxu0 0
      %832 = vmatmul.mubr.bf16.gmra.mrb[0].mxu0 %v565
      %v833 = vpop.f32.mrb[0].mxu0
      %v834 = vadd.f32 0.0, %v833
      %v835 = vpop.f32.mrb[0].mxu0
      %v836 = vpop.f32.mrb[0].mxu0
      %v837 = vadd.f32 0.0, %v836
      %v838 = vpop.f32.mrb[0].mxu0
      %839 = vmatprep.mubr.bf16.mxu0 0
      %840 = vmatmul.mubr.bf16.gmra.mrb[0].mxu0 %v568
      %v841 = vpop.f32.mrb[0].mxu0
      %v842 = vadd.f32 0.0, %v841
      %v843 = vpop.f32.mrb[0].mxu0
      %v844 = vpop.f32.mrb[0].mxu0
      %v845 = vadd.f32 0.0, %v844
      %v846 = vpop.f32.mrb[0].mxu0
      %847 = vmatprep.mubr.bf16.mxu0 0
      %848 = vmatmul.mubr.bf16.gmra.mrb[0].mxu0 %v571
      %v849 = vpop.f32.mrb[0].mxu0
      %v850 = vadd.f32 0.0, %v849
      %v851 = vpop.f32.mrb[0].mxu0
      %v852 = vpop.f32.mrb[0].mxu0
      %v853 = vadd.f32 0.0, %v852
      %v854 = vpop.f32.mrb[0].mxu0
      %855 = vmatprep.mubr.bf16.mxu0 0
      %856 = vmatmul.mubr.bf16.gmra.mrb[0].mxu0 %v574
      %v857 = vpop.f32.mrb[0].mxu0
      %v858 = vadd.f32 0.0, %v857
      %v859 = vpop.f32.mrb[0].mxu0
      %v860 = vpop.f32.mrb[0].mxu0
      %v861 = vadd.f32 0.0, %v860
      %v862 = vpop.f32.mrb[0].mxu0
      %863 = vmatprep.mubr.bf16.mxu0 0
      %864 = vmatmul.mubr.bf16.gmra.mrb[0].mxu0 %v577
      %v865 = vpop.f32.mrb[0].mxu0
      %v866 = vadd.f32 0.0, %v865
      %v867 = vpop.f32.mrb[0].mxu0
      %v868 = vpop.f32.mrb[0].mxu0
      %v869 = vadd.f32 0.0, %v868
      %v870 = vpop.f32.mrb[0].mxu0
      %871 = vdwg.mxu0
      %872 = vst [vmem:[%s215] sm:$0xff] %v618
      %873 = vst [vmem:[%s215 + $0x8] sm:$0xff] %v621
      %874 = vst [vmem:[%s215 + $0x10] sm:$0xff] %v626
      %875 = vst [vmem:[%s215 + $0x18] sm:$0xff] %v629
      %876 = vst [vmem:[%s215 + $0x20] sm:$0xff] %v634
      %877 = vst [vmem:[%s215 + $0x28] sm:$0xff] %v637
      %878 = vst [vmem:[%s215 + $0x30] sm:$0xff] %v642
      %879 = vst [vmem:[%s215 + $0x38] sm:$0xff] %v645
      %880 = vst [vmem:[%s215 + $0x40] sm:$0xff] %v650
      %881 = vst [vmem:[%s215 + $0x48] sm:$0xff] %v653
      %882 = vst [vmem:[%s215 + $0x50] sm:$0xff] %v658
      %883 = vst [vmem:[%s215 + $0x58] sm:$0xff] %v661
      %884 = vst [vmem:[%s215 + $0x60] sm:$0xff] %v666
      %885 = vst [vmem:[%s215 + $0x68] sm:$0xff] %v669
      %886 = vst [vmem:[%s215 + $0x70] sm:$0xff] %v674
      %887 = vst [vmem:[%s215 + $0x78] sm:$0xff] %v677
      %888 = vst [vmem:[%s215 + $0x80] sm:$0xff] %v682
      %889 = vst [vmem:[%s215 + $0x88] sm:$0xff] %v685
      %890 = vst [vmem:[%s215 + $0x90] sm:$0xff] %v690
      %891 = vst [vmem:[%s215 + $0x98] sm:$0xff] %v693
      %892 = vst [vmem:[%s215 + $0xa0] sm:$0xff] %v698
      %893 = vst [vmem:[%s215 + $0xa8] sm:$0xff] %v701
      %894 = vst [vmem:[%s215 + $0xb0] sm:$0xff] %v706
      %895 = vst [vmem:[%s215 + $0xb8] sm:$0xff] %v709
      %896 = vst [vmem:[%s215 + $0xc0] sm:$0xff] %v714
      %897 = vst [vmem:[%s215 + $0xc8] sm:$0xff] %v717
      %898 = vst [vmem:[%s215 + $0xd0] sm:$0xff] %v722
      %899 = vst [vmem:[%s215 + $0xd8] sm:$0xff] %v725
      %900 = vst [vmem:[%s215 + $0xe0] sm:$0xff] %v730
      %901 = vst [vmem:[%s215 + $0xe8] sm:$0xff] %v733
      %902 = vst [vmem:[%s215 + $0xf0] sm:$0xff] %v738
      %903 = vst [vmem:[%s215 + $0xf8] sm:$0xff] %v741
      %904 = vst [vmem:[%s215 + $0x100] sm:$0xff] %v746
      %905 = vst [vmem:[%s215 + $0x108] sm:$0xff] %v749
      %906 = vst [vmem:[%s215 + $0x110] sm:$0xff] %v754
      %907 = vst [vmem:[%s215 + $0x118] sm:$0xff] %v757
      %908 = vst [vmem:[%s215 + $0x120] sm:$0xff] %v762
      %909 = vst [vmem:[%s215 + $0x128] sm:$0xff] %v765
      %910 = vst [vmem:[%s215 + $0x130] sm:$0xff] %v770
      %911 = vst [vmem:[%s215 + $0x138] sm:$0xff] %v773
      %912 = vst [vmem:[%s215 + $0x140] sm:$0xff] %v778
      %913 = vst [vmem:[%s215 + $0x148] sm:$0xff] %v781
      %914 = vst [vmem:[%s215 + $0x150] sm:$0xff] %v786
      %915 = vst [vmem:[%s215 + $0x158] sm:$0xff] %v789
      %916 = vst [vmem:[%s215 + $0x160] sm:$0xff] %v794
      %917 = vst [vmem:[%s215 + $0x168] sm:$0xff] %v797
      %918 = vst [vmem:[%s215 + $0x170] sm:$0xff] %v802
      %919 = vst [vmem:[%s215 + $0x178] sm:$0xff] %v805
      %920 = vst [vmem:[%s215 + $0x180] sm:$0xff] %v810
      %921 = vst [vmem:[%s215 + $0x188] sm:$0xff] %v813
      %922 = vst [vmem:[%s215 + $0x190] sm:$0xff] %v818
      %923 = vst [vmem:[%s215 + $0x198] sm:$0xff] %v821
      %924 = vst [vmem:[%s215 + $0x1a0] sm:$0xff] %v826
      %925 = vst [vmem:[%s215 + $0x1a8] sm:$0xff] %v829
      %926 = vst [vmem:[%s215 + $0x1b0] sm:$0xff] %v834
      %927 = vst [vmem:[%s215 + $0x1b8] sm:$0xff] %v837
      %928 = vst [vmem:[%s215 + $0x1c0] sm:$0xff] %v842
      %929 = vst [vmem:[%s215 + $0x1c8] sm:$0xff] %v845
      %930 = vst [vmem:[%s215 + $0x1d0] sm:$0xff] %v850
      %931 = vst [vmem:[%s215 + $0x1d8] sm:$0xff] %v853
      %932 = vst [vmem:[%s215 + $0x1e0] sm:$0xff] %v858
      %933 = vst [vmem:[%s215 + $0x1e8] sm:$0xff] %v861
      %934 = vst [vmem:[%s215 + $0x1f0] sm:$0xff] %v866
      %935 = vst [vmem:[%s215 + $0x1f8] sm:$0xff] %v869
      %v936 = vadd.f32 %v618, %v621
      %v937 = vadd.f32 %v936, %v626
      %v938 = vadd.f32 %v937, %v629
      %v939 = vadd.f32 %v938, %v634
      %v940 = vadd.f32 %v939, %v637
      %v941 = vadd.f32 %v940, %v642
      %v942 = vadd.f32 %v941, %v645
      %v943 = vadd.f32 %v942, %v650
      %v944 = vadd.f32 %v943, %v653
      %v945 = vadd.f32 %v944, %v658
      %v946 = vadd.f32 %v945, %v661
      %v947 = vadd.f32 %v946, %v666
      %v948 = vadd.f32 %v947, %v669
      %v949 = vadd.f32 %v948, %v674
      %v950 = vadd.f32 %v949, %v677
      %v951 = vadd.f32 %v950, %v682
      %v952 = vadd.f32 %v951, %v685
      %v953 = vadd.f32 %v952, %v690
      %v954 = vadd.f32 %v953, %v693
      %v955 = vadd.f32 %v954, %v698
      %v956 = vadd.f32 %v955, %v701
      %v957 = vadd.f32 %v956, %v706
      %v958 = vadd.f32 %v957, %v709
      %v959 = vadd.f32 %v958, %v714
      %v960 = vadd.f32 %v959, %v717
      %v961 = vadd.f32 %v960, %v722
      %v962 = vadd.f32 %v961, %v725
      %v963 = vadd.f32 %v962, %v730
      %v964 = vadd.f32 %v963, %v733
      %v965 = vadd.f32 %v964, %v738
      %v966 = vadd.f32 %v965, %v741
      %v967 = vadd.f32 %v966, %v746
      %v968 = vadd.f32 %v967, %v749
      %v969 = vadd.f32 %v968, %v754
      %v970 = vadd.f32 %v969, %v757
      %v971 = vadd.f32 %v970, %v762
      %v972 = vadd.f32 %v971, %v765
      %v973 = vadd.f32 %v972, %v770
      %v974 = vadd.f32 %v973, %v773
      %v975 = vadd.f32 %v974, %v778
      %v976 = vadd.f32 %v975, %v781
      %v977 = vadd.f32 %v976, %v786
      %v978 = vadd.f32 %v977, %v789
      %v979 = vadd.f32 %v978, %v794
      %v980 = vadd.f32 %v979, %v797
      %v981 = vadd.f32 %v980, %v802
      %v982 = vadd.f32 %v981, %v805
      %v983 = vadd.f32 %v982, %v810
      %v984 = vadd.f32 %v983, %v813
      %v985 = vadd.f32 %v984, %v818
      %v986 = vadd.f32 %v985, %v821
      %v987 = vadd.f32 %v986, %v826
      %v988 = vadd.f32 %v987, %v829
      %v989 = vadd.f32 %v988, %v834
      %v990 = vadd.f32 %v989, %v837
      %v991 = vadd.f32 %v990, %v842
      %v992 = vadd.f32 %v991, %v845
      %v993 = vadd.f32 %v992, %v850
      %v994 = vadd.f32 %v993, %v853
      %v995 = vadd.f32 %v994, %v858
      %v996 = vadd.f32 %v995, %v861
      %v997 = vadd.f32 %v996, %v866
      %v998 = vadd.f32 %v997, %v869
      %v999 = vrot.slane %v998, 4
      %v1000 = vadd.f32 %v998, %v999
      %v1001 = vrot.slane %v1000, 2
      %v1002 = vadd.f32 %v1000, %v1001
      %v1003 = vrot.slane %v1002, 1
      %v1004 = vadd.f32 %v1002, %v1003
      %v1005 = vmul.f32 %v618, %v618
      %v1006 = vmul.f32 %v621, %v621
      %v1007 = vmul.f32 %v626, %v626
      %v1008 = vmul.f32 %v629, %v629
      %v1009 = vmul.f32 %v634, %v634
      %v1010 = vmul.f32 %v637, %v637
      %v1011 = vmul.f32 %v642, %v642
      %v1012 = vmul.f32 %v645, %v645
      %v1013 = vmul.f32 %v650, %v650
      %v1014 = vmul.f32 %v653, %v653
      %v1015 = vmul.f32 %v658, %v658
      %v1016 = vmul.f32 %v661, %v661
      %v1017 = vmul.f32 %v666, %v666
      %v1018 = vmul.f32 %v669, %v669
      %v1019 = vmul.f32 %v674, %v674
      %v1020 = vmul.f32 %v677, %v677
      %v1021 = vmul.f32 %v682, %v682
      %v1022 = vmul.f32 %v685, %v685
      %v1023 = vmul.f32 %v690, %v690
      %v1024 = vmul.f32 %v693, %v693
      %v1025 = vmul.f32 %v698, %v698
      %v1026 = vmul.f32 %v701, %v701
      %v1027 = vmul.f32 %v706, %v706
      %v1028 = vmul.f32 %v709, %v709
      %v1029 = vmul.f32 %v714, %v714
      %v1030 = vmul.f32 %v717, %v717
      %v1031 = vmul.f32 %v722, %v722
      %v1032 = vmul.f32 %v725, %v725
      %v1033 = vmul.f32 %v730, %v730
      %v1034 = vmul.f32 %v733, %v733
      %v1035 = vmul.f32 %v738, %v738
      %v1036 = vmul.f32 %v741, %v741
      %v1037 = vmul.f32 %v746, %v746
      %v1038 = vmul.f32 %v749, %v749
      %v1039 = vmul.f32 %v754, %v754
      %v1040 = vmul.f32 %v757, %v757
      %v1041 = vmul.f32 %v762, %v762
      %v1042 = vmul.f32 %v765, %v765
      %v1043 = vmul.f32 %v770, %v770
      %v1044 = vmul.f32 %v773, %v773
      %v1045 = vmul.f32 %v778, %v778
      %v1046 = vmul.f32 %v781, %v781
      %v1047 = vmul.f32 %v786, %v786
      %v1048 = vmul.f32 %v789, %v789
      %v1049 = vmul.f32 %v794, %v794
      %v1050 = vmul.f32 %v797, %v797
      %v1051 = vmul.f32 %v802, %v802
      %v1052 = vmul.f32 %v805, %v805
      %v1053 = vmul.f32 %v810, %v810
      %v1054 = vmul.f32 %v813, %v813
      %v1055 = vmul.f32 %v818, %v818
      %v1056 = vmul.f32 %v821, %v821
      %v1057 = vmul.f32 %v826, %v826
      %v1058 = vmul.f32 %v829, %v829
      %v1059 = vmul.f32 %v834, %v834
      %v1060 = vmul.f32 %v837, %v837
      %v1061 = vmul.f32 %v842, %v842
      %v1062 = vmul.f32 %v845, %v845
      %v1063 = vmul.f32 %v850, %v850
      %v1064 = vmul.f32 %v853, %v853
      %v1065 = vmul.f32 %v858, %v858
      %v1066 = vmul.f32 %v861, %v861
      %v1067 = vmul.f32 %v866, %v866
      %v1068 = vmul.f32 %v869, %v869
      %v1069 = vadd.f32 %v1005, %v1006
      %v1070 = vadd.f32 %v1069, %v1007
      %v1071 = vadd.f32 %v1070, %v1008
      %v1072 = vadd.f32 %v1071, %v1009
      %v1073 = vadd.f32 %v1072, %v1010
      %v1074 = vadd.f32 %v1073, %v1011
      %v1075 = vadd.f32 %v1074, %v1012
      %v1076 = vadd.f32 %v1075, %v1013
      %v1077 = vadd.f32 %v1076, %v1014
      %v1078 = vadd.f32 %v1077, %v1015
      %v1079 = vadd.f32 %v1078, %v1016
      %v1080 = vadd.f32 %v1079, %v1017
      %v1081 = vadd.f32 %v1080, %v1018
      %v1082 = vadd.f32 %v1081, %v1019
      %v1083 = vadd.f32 %v1082, %v1020
      %v1084 = vadd.f32 %v1083, %v1021
      %v1085 = vadd.f32 %v1084, %v1022
      %v1086 = vadd.f32 %v1085, %v1023
      %v1087 = vadd.f32 %v1086, %v1024
      %v1088 = vadd.f32 %v1087, %v1025
      %v1089 = vadd.f32 %v1088, %v1026
      %v1090 = vadd.f32 %v1089, %v1027
      %v1091 = vadd.f32 %v1090, %v1028
      %v1092 = vadd.f32 %v1091, %v1029
      %v1093 = vadd.f32 %v1092, %v1030
      %v1094 = vadd.f32 %v1093, %v1031
      %v1095 = vadd.f32 %v1094, %v1032
      %v1096 = vadd.f32 %v1095, %v1033
      %v1097 = vadd.f32 %v1096, %v1034
      %v1098 = vadd.f32 %v1097, %v1035
      %v1099 = vadd.f32 %v1098, %v1036
      %v1100 = vadd.f32 %v1099, %v1037
      %v1101 = vadd.f32 %v1100, %v1038
      %v1102 = vadd.f32 %v1101, %v1039
      %v1103 = vadd.f32 %v1102, %v1040
      %v1104 = vadd.f32 %v1103, %v1041
      %v1105 = vadd.f32 %v1104, %v1042
      %v1106 = vadd.f32 %v1105, %v1043
      %v1107 = vadd.f32 %v1106, %v1044
      %v1108 = vadd.f32 %v1107, %v1045
      %v1109 = vadd.f32 %v1108, %v1046
      %v1110 = vadd.f32 %v1109, %v1047
      %v1111 = vadd.f32 %v1110, %v1048
      %v1112 = vadd.f32 %v1111, %v1049
      %v1113 = vadd.f32 %v1112, %v1050
      %v1114 = vadd.f32 %v1113, %v1051
      %v1115 = vadd.f32 %v1114, %v1052
      %v1116 = vadd.f32 %v1115, %v1053
      %v1117 = vadd.f32 %v1116, %v1054
      %v1118 = vadd.f32 %v1117, %v1055
      %v1119 = vadd.f32 %v1118, %v1056
      %v1120 = vadd.f32 %v1119, %v1057
      %v1121 = vadd.f32 %v1120, %v1058
      %v1122 = vadd.f32 %v1121, %v1059
      %v1123 = vadd.f32 %v1122, %v1060
      %v1124 = vadd.f32 %v1123, %v1061
      %v1125 = vadd.f32 %v1124, %v1062
      %v1126 = vadd.f32 %v1125, %v1063
      %v1127 = vadd.f32 %v1126, %v1064
      %v1128 = vadd.f32 %v1127, %v1065
      %v1129 = vadd.f32 %v1128, %v1066
      %v1130 = vadd.f32 %v1129, %v1067
      %v1131 = vadd.f32 %v1130, %v1068
      %v1132 = vrot.slane %v1131, 4
      %v1133 = vadd.f32 %v1131, %v1132
      %v1134 = vrot.slane %v1133, 2
      %v1135 = vadd.f32 %v1133, %v1134
      %v1136 = vrot.slane %v1135, 1
      %v1137 = vadd.f32 %v1135, %v1136
      %vm1138 = vcmask 1040384
      %v1139 = vsel %vm1138, %v1004, %v1137
      %vm1140 = vcmask 1041408
      %v1141 = vsel %vm1140, %v1139, 0.0
      %p1142 = scmp.eq.s32.totalorder %s20, 0
      // Predicated region
      $region29: #{dt_forward.90} parent=27 // pred_check
        %p1143 = pneg %p1142
      $region30: #{dt_forward.90} parent=27 // pred_check_branch
        %1145 = sbr.rel (%p1143) target = $region32
      $region31: #{dt_forward.90} parent=27 // pred_region
        %1146 = vst [vmem:[%s220] sm:$0xff] %v1141
      $region32: #{dt_forward.90} parent=27 // pred_fallthru
        _
      %p1147 = scmp.gt.s32.totalorder %s20, 0
      // Predicated region
      $region33: #{dt_forward.90} parent=27 // pred_check
        %p1148 = pneg %p1147
      $region34: #{dt_forward.90} parent=27 // pred_check_branch
        %1150 = sbr.rel (%p1148) target = $region36
      $region35: #{dt_forward.90} parent=27 // pred_region
        %v1151 = vld [vmem:[%s220] sm:$0xff]
        %v1152 = vadd.f32 %v1151, %v1141
        %1153 = vst [vmem:[%s220] sm:$0xff] %v1152
      $region36: #{dt_forward.90} parent=27 // pred_fallthru
        _
      %s1154 = smul.u32 64, %s20
      %p1155 = scmp.lt.s32.totalorder %s19, 1
      %s1156 = scalar_select %p1155, %s19, 1
      %p1157 = scmp.lt.s32.totalorder %s1154, 127
      %s1158 = scalar_select %p1157, %s1154, 127
      %s1159 = smul.addr %s1156, 128
      %s1160 = sadd.s32 %s1158, %s1159
      %s1161 = smul.addr %s1160, 8
      %s1162 = scalar_lea.vmem %s2, %s1161
      %p1163 = scmp.lt.s32.totalorder %s19, 1
      %s1164 = scalar_select %p1163, %s19, 1
      %s1165 = smul.addr %s1164, 8
      %s1166 = scalar_lea.vmem %s3, %s1165
      // Predicated region
      $region37: #{dt_forward.90} parent=27 // pred_check
        %p1167 = pneg %p96
      $region38: #{dt_forward.90} parent=27 // pred_check_branch
        %1169 = sbr.rel (%p1167) target = $region40
      $region39: #{dt_forward.90} parent=27 // pred_region
        %s1170 = smul.u32 64, %s20
      $region40: #{dt_forward.90} parent=27 // pred_fallthru
        _
      // Predicated region
      $region41: #{dt_forward.90} parent=27 // pred_check
        %p1171 = pneg %p122
      $region42: #{dt_forward.90} parent=27 // pred_check_branch
        %1173 = sbr.rel (%p1171) target = $region44
      $region43: #{dt_forward.90} parent=27 // pred_region
        _
      $region44: #{dt_forward.90} parent=27 // pred_fallthru
        _
    $region28: #{dt_forward.90} parent=5 // pred_fallthru
      _
    %p1174 = scmp.le.s32.totalorder 2, %s10
    // Predicated region
    $region45: #{dt_forward.90} parent=5 // pred_check
      %p1175 = pneg %p1174
    $region46: #{dt_forward.90} parent=5 // pred_check_branch
      %1177 = sbr.rel (%p1175) target = $region48
    $region47: #{dt_forward.90} parent=5 // pred_region
      %s1178 = ssub.s32 %s10, 2
      // Predicated region
      $region49: #{dt_forward.90} parent=47 // pred_check
        %p1179 = pneg %p102
      $region50: #{dt_forward.90} parent=47 // pred_check_branch
        %1181 = sbr.rel (%p1179) target = $region52
      $region51: #{dt_forward.90} parent=47 // pred_region
        %s1182 = smul.u32 64, %s22
        %p1183 = scmp.lt.s32.totalorder %s21, 1
        %s1184 = scalar_select %p1183, %s21, 1
        %p1185 = scmp.lt.s32.totalorder %s1182, 127
        %s1186 = scalar_select %p1185, %s1182, 127
        %s1187 = smul.addr %s1184, 128
        %s1188 = sadd.s32 %s1186, %s1187
        %s1189 = smul.addr %s1188, 8
        %s1190 = scalar_lea.vmem %s2, %s1189
      $region52: #{dt_forward.90} parent=47 // pred_fallthru
        _
      // Predicated region
      $region53: #{dt_forward.90} parent=47 // pred_check
        %p1191 = pneg %p128
      $region54: #{dt_forward.90} parent=47 // pred_check_branch
        %1193 = sbr.rel (%p1191) target = $region56
      $region55: #{dt_forward.90} parent=47 // pred_region
        %p1194 = scmp.lt.s32.totalorder %s21, 1
        %s1195 = scalar_select %p1194, %s21, 1
        %s1196 = smul.addr %s1195, 8
        %s1197 = scalar_lea.vmem %s3, %s1196
      $region56: #{dt_forward.90} parent=47 // pred_fallthru
        _
    $region48: #{dt_forward.90} parent=5 // pred_fallthru
      _
  $region6: #{dt_forward.90} parent=0 // loop_footer
    %s14 = sadd.s32 1, %s10
  $region7: #{dt_forward.90} parent=0 // loop_footer_branch
    %9 = sbr.rel target = $region3
  $region8: #{dt_forward.90} parent=0 // loop_exit
    _

// kernel: dt_forward.110
$region0: #{dt_forward.110}
  #allocation0 [shape = 'u32[]', space=smem, size = 0x4, offset = 0x4, fixed_abs, tag = 'smem constant byte address 0x4 - core index']
  #allocation1 [shape = 'u32[144,128]{1,0:T(1,128)}', space=vmem, size = 0x12000, scoped, tag = 'internal scratch']
  %s0 = inlined_call_operand.vmem [shape: bf16[2,1024,20], index: 0, kind: input, shape index: {}]
  %s1 = inlined_call_operand.vmem [shape: bf16[20,128], index: 1, kind: input, shape index: {}]
  %s2 = inlined_call_operand.vmem [shape: f32[2,1024,128], index: 2, kind: output, shape index: {0}]
  %s3 = inlined_call_operand.vmem [shape: f32[2,8,128], index: 3, kind: output, shape index: {1}]
  %4 = xla_tuple %s2, %s3
  %s5 = sld [smem:[#allocation0]]
  $region57: #{dt_forward.110} parent=0
    _
  %s7 = ssub.s32 1, %s5
  %s8 = scalar_select 0, %s7, %s5
  loop: start=0, step=1, limit=6
  $region2: #{dt_forward.110} parent=0 // loop_pre_header
    _
  $region3: #{dt_forward.110} parent=0 // loop_header
    %s10 = sphi 0, %s14
    %p11 = scmp.ge.s32.totalorder %s10, 6
    %s17 = sphi 0, %s29
    %s18 = sphi 0, %s25
    %s19 = sphi 0, %s17
    %s20 = sphi 0, %s18
    %s21 = sphi 0, %s19
    %s22 = sphi 0, %s20
    %s34 = sphi 0, %s36
    %s37 = sphi 0, %s34
    %s38 = sphi 0, %s37
    %s54 = sphi 0, %s38
    %s58 = sphi 0, %s58
    %s60 = sphi 0, %s58
    %s61 = sphi 0, %s60
    %s75 = sphi 0, %s61
    %s83 = sphi 0, %s85
    %s86 = sphi 0, %s83
    %s87 = sphi 0, %s86
    %s103 = sphi 0, %s87
    %s109 = sphi 0, %s111
    %s112 = sphi 0, %s109
    %s113 = sphi 0, %s112
    %s129 = sphi 0, %s113
  $region4: #{dt_forward.110} parent=0 // loop_header_branch
    %13 = sbr.rel (%p11) target = $region8
  $region5: #{dt_forward.110} parent=0 // loop_body
    %s15 = ssub.s32 %s10, 1
    %s16 = ssub.s32 %s10, 2
    %s23 = sadd.s32 1, %s18
    %p24 = scmp.ge.s32.totalorder %s23, 2
    %s25 = scalar_select %p24, 0, %s23
    %s26 = sadd.s32 1, %s17
    %s27 = scalar_select %p24, %s26, %s17
    %p28 = scmp.ge.s32.totalorder %s27, 2
    %s29 = scalar_select %p28, 0, %s27
    %s30 = ssub.s32 %s17, %s29
    %s31 = ssub.s32 %s18, %s25
    %s32 = sor.u32 %s30, %s31
    %p33 = scmp.eq.s32.totalorder %s32, 0
    %s35 = sadd.s32 %s34, 1
    %s36 = scalar_select %p33, %s34, %s35
    %p39 = pneg %p33
    %p40 = scmp.eq.s32.totalorder %s10, 3
    %p41 = por %p39, %p40
    %p42 = scmp.ne.s32.totalorder %s34, %s37
    %p43 = scmp.eq.s32.totalorder %s10, 0
    %p44 = por %p42, %p43
    %p45 = scmp.ne.s32.totalorder %s34, %s37
    %p46 = scmp.eq.s32.totalorder %s15, 3
    %p47 = por %p45, %p46
    %p48 = scmp.ne.s32.totalorder %s37, %s38
    %p49 = scmp.eq.s32.totalorder %s15, 0
    %p50 = por %p48, %p49
    %p51 = scmp.ne.s32.totalorder %s37, %s38
    %p52 = scmp.eq.s32.totalorder %s16, 3
    %p53 = por %p51, %p52
    %p55 = scmp.ne.s32.totalorder %s38, %s54
    %p56 = scmp.eq.s32.totalorder %s16, 0
    %p57 = por %p55, %p56
    %s59 = sadd.s32 %s58, 1
    %p62 = scmp.eq.s32.totalorder %s10, 3
    %p63 = scmp.ne.s32.totalorder %s58, %s60
    %p64 = scmp.eq.s32.totalorder %s10, 0
    %p65 = por %p63, %p64
    %p66 = scmp.ne.s32.totalorder %s58, %s60
    %p67 = scmp.eq.s32.totalorder %s15, 3
    %p68 = por %p66, %p67
    %p69 = scmp.ne.s32.totalorder %s60, %s61
    %p70 = scmp.eq.s32.totalorder %s15, 0
    %p71 = por %p69, %p70
    %p72 = scmp.ne.s32.totalorder %s60, %s61
    %p73 = scmp.eq.s32.totalorder %s16, 3
    %p74 = por %p72, %p73
    %p76 = scmp.ne.s32.totalorder %s61, %s75
    %p77 = scmp.eq.s32.totalorder %s16, 0
    %p78 = por %p76, %p77
    %s79 = ssub.s32 %s17, %s29
    %s80 = ssub.s32 %s18, %s25
    %s81 = sor.u32 %s79, %s80
    %p82 = scmp.eq.s32.totalorder %s81, 0
    %s84 = sadd.s32 %s83, 1
    %s85 = scalar_select %p82, %s83, %s84
    %p88 = pneg %p82
    %p89 = scmp.eq.s32.totalorder %s10, 3
    %p90 = por %p88, %p89
    %p91 = scmp.ne.s32.totalorder %s83, %s86
    %p92 = scmp.eq.s32.totalorder %s10, 0
    %p93 = por %p91, %p92
    %p94 = scmp.ne.s32.totalorder %s83, %s86
    %p95 = scmp.eq.s32.totalorder %s15, 3
    %p96 = por %p94, %p95
    %p97 = scmp.ne.s32.totalorder %s86, %s87
    %p98 = scmp.eq.s32.totalorder %s15, 0
    %p99 = por %p97, %p98
    %p100 = scmp.ne.s32.totalorder %s86, %s87
    %p101 = scmp.eq.s32.totalorder %s16, 3
    %p102 = por %p100, %p101
    %p104 = scmp.ne.s32.totalorder %s87, %s103
    %p105 = scmp.eq.s32.totalorder %s16, 0
    %p106 = por %p104, %p105
    %s107 = ssub.s32 %s17, %s29
    %p108 = scmp.eq.s32.totalorder %s107, 0
    %s110 = sadd.s32 %s109, 1
    %s111 = scalar_select %p108, %s109, %s110
    %p114 = pneg %p108
    %p115 = scmp.eq.s32.totalorder %s10, 3
    %p116 = por %p114, %p115
    %p117 = scmp.ne.s32.totalorder %s109, %s112
    %p118 = scmp.eq.s32.totalorder %s10, 0
    %p119 = por %p117, %p118
    %p120 = scmp.ne.s32.totalorder %s109, %s112
    %p121 = scmp.eq.s32.totalorder %s15, 3
    %p122 = por %p120, %p121
    %p123 = scmp.ne.s32.totalorder %s112, %s113
    %p124 = scmp.eq.s32.totalorder %s15, 0
    %p125 = por %p123, %p124
    %p126 = scmp.ne.s32.totalorder %s112, %s113
    %p127 = scmp.eq.s32.totalorder %s16, 3
    %p128 = por %p126, %p127
    %p130 = scmp.ne.s32.totalorder %s113, %s129
    %p131 = scmp.eq.s32.totalorder %s16, 0
    %p132 = por %p130, %p131
    %p133 = scmp.le.s32.totalorder 1, %s10
    %p134 = scmp.lt.s32.totalorder %s10, 5
    %p135 = pnand %p133, %p134
    %p136 = pneg %p135
    // Predicated region
    $region9: #{dt_forward.110} parent=5 // pred_check
      _
    $region10: #{dt_forward.110} parent=5 // pred_check_branch
      %138 = sbr.rel (%p135) target = $region12
    $region11: #{dt_forward.110} parent=5 // pred_region
      %s139 = ssub.s32 %s10, 1
      // Predicated region
      $region13: #{dt_forward.110} parent=11 // pred_check
        %p140 = pneg %p71
      $region14: #{dt_forward.110} parent=11 // pred_check_branch
        %142 = sbr.rel (%p140) target = $region16
      $region15: #{dt_forward.110} parent=11 // pred_region
        _
      $region16: #{dt_forward.110} parent=11 // pred_fallthru
        _
    $region12: #{dt_forward.110} parent=5 // pred_fallthru
      _
    %p143 = scmp.lt.s32.totalorder %s10, 4
    // Predicated region
    $region17: #{dt_forward.110} parent=5 // pred_check
      %p144 = pneg %p143
    $region18: #{dt_forward.110} parent=5 // pred_check_branch
      %146 = sbr.rel (%p144) target = $region20
    $region19: #{dt_forward.110} parent=5 // pred_region
      // Predicated region
      $region21: #{dt_forward.110} parent=19 // pred_check
        %p147 = pneg %p44
      $region22: #{dt_forward.110} parent=19 // pred_check_branch
        %149 = sbr.rel (%p147) target = $region24
      $region23: #{dt_forward.110} parent=19 // pred_region
        %s150 = smul.u32 64, %s18
        %p151 = scmp.lt.s32.totalorder %s17, 1
        %s152 = scalar_select %p151, %s17, 1
        %p153 = scmp.lt.s32.totalorder %s150, 127
        %s154 = scalar_select %p153, %s150, 127
        %s155 = smul.addr %s152, 128
        %s156 = sadd.s32 %s154, %s155
        %s157 = smul.addr %s156, 4
        %s158 = scalar_lea.vmem %s0, %s157
        %s159 = smul.u32 64, %s18
      $region24: #{dt_forward.110} parent=19 // pred_fallthru
        _
    $region20: #{dt_forward.110} parent=5 // pred_fallthru
      _
    %p160 = scmp.le.s32.totalorder 1, %s10
    %p161 = scmp.lt.s32.totalorder %s10, 5
    %p162 = pnand %p160, %p161
    %p163 = pneg %p162
    // Predicated region
    $region25: #{dt_forward.110} parent=5 // pred_check
      _
    $region26: #{dt_forward.110} parent=5 // pred_check_branch
      %165 = sbr.rel (%p162) target = $region28
    $region27: #{dt_forward.110} parent=5 // pred_region
      %s166 = ssub.s32 %s10, 1
      %s167 = smul.u32 64, %s20
      %p168 = scmp.lt.s32.totalorder %s19, 1
      %s169 = scalar_select %p168, %s19, 1
      %p170 = scmp.lt.s32.totalorder %s167, 127
      %s171 = scalar_select %p170, %s167, 127
      %s172 = smul.addr %s169, 128
      %s173 = sadd.s32 %s171, %s172
      %s174 = smul.addr %s173, 4
      %s175 = scalar_lea.vmem %s0, %s174
      %p176 = pneg %p50
      %p177 = pneg %p47
      %p178 = pneg %p71
      %p179 = pneg %p68
      %p180 = pneg %p99
      %p181 = pneg %p96
      %s182 = smul.u32 64, %s20
      %p183 = scmp.lt.s32.totalorder %s19, 1
      %s184 = scalar_select %p183, %s19, 1
      %p185 = scmp.lt.s32.totalorder %s182, 127
      %s186 = scalar_select %p185, %s182, 127
      %s187 = smul.addr %s184, 128
      %s188 = sadd.s32 %s186, %s187
      %s189 = smul.addr %s188, 8
      %s190 = scalar_lea.vmem %s2, %s189
      %p191 = pneg %p125
      %p192 = pneg %p122
      %p193 = scmp.lt.s32.totalorder %s19, 1
      %s194 = scalar_select %p193, %s19, 1
      %s195 = smul.addr %s194, 8
      %s196 = scalar_lea.vmem %s3, %s195
      %s197 = smul.u32 64, %s20
      %p198 = scmp.lt.s32.totalorder %s19, 1
      %s199 = scalar_select %p198, %s19, 1
      %p200 = scmp.lt.s32.totalorder %s197, 127
      %s201 = scalar_select %p200, %s197, 127
      %s202 = smul.addr %s199, 128
      %s203 = sadd.s32 %s201, %s202
      %s204 = smul.addr %s203, 4
      %s205 = scalar_lea.vmem %s0, %s204
      %s206 = smul.u32 64, %s20
      %s207 = smul.u32 64, %s20
      %p208 = scmp.lt.s32.totalorder %s19, 1
      %s209 = scalar_select %p208, %s19, 1
      %p210 = scmp.lt.s32.totalorder %s207, 127
      %s211 = scalar_select %p210, %s207, 127
      %s212 = smul.addr %s209, 128
      %s213 = sadd.s32 %s211, %s212
      %s214 = smul.addr %s213, 8
      %s215 = scalar_lea.vmem %s2, %s214
      %s216 = smul.u32 64, %s20
      %p217 = scmp.lt.s32.totalorder %s19, 1
      %s218 = scalar_select %p217, %s19, 1
      %s219 = smul.addr %s218, 8
      %s220 = scalar_lea.vmem %s3, %s219
      %v222 = vld [vmem:[%s205] sm:$0xf]
      %v223 = vld [vmem:[%s205 + $0x4] sm:$0xf]
      %v224 = vld [vmem:[%s205 + $0x8] sm:$0xf]
      %v225 = vld [vmem:[%s205 + $0xc] sm:$0xf]
      %v226 = vld [vmem:[%s205 + $0x10] sm:$0xf]
      %v227 = vld [vmem:[%s205 + $0x14] sm:$0xf]
      %v228 = vld [vmem:[%s205 + $0x18] sm:$0xf]
      %v229 = vld [vmem:[%s205 + $0x1c] sm:$0xf]
      %v230 = vld [vmem:[%s205 + $0x20] sm:$0xf]
      %v231 = vld [vmem:[%s205 + $0x24] sm:$0xf]
      %v232 = vld [vmem:[%s205 + $0x28] sm:$0xf]
      %v233 = vld [vmem:[%s205 + $0x2c] sm:$0xf]
      %v234 = vld [vmem:[%s205 + $0x30] sm:$0xf]
      %v235 = vld [vmem:[%s205 + $0x34] sm:$0xf]
      %v236 = vld [vmem:[%s205 + $0x38] sm:$0xf]
      %v237 = vld [vmem:[%s205 + $0x3c] sm:$0xf]
      %v238 = vld [vmem:[%s205 + $0x40] sm:$0xf]
      %v239 = vld [vmem:[%s205 + $0x44] sm:$0xf]
      %v240 = vld [vmem:[%s205 + $0x48] sm:$0xf]
      %v241 = vld [vmem:[%s205 + $0x4c] sm:$0xf]
      %v242 = vld [vmem:[%s205 + $0x50] sm:$0xf]
      %v243 = vld [vmem:[%s205 + $0x54] sm:$0xf]
      %v244 = vld [vmem:[%s205 + $0x58] sm:$0xf]
      %v245 = vld [vmem:[%s205 + $0x5c] sm:$0xf]
      %v246 = vld [vmem:[%s205 + $0x60] sm:$0xf]
      %v247 = vld [vmem:[%s205 + $0x64] sm:$0xf]
      %v248 = vld [vmem:[%s205 + $0x68] sm:$0xf]
      %v249 = vld [vmem:[%s205 + $0x6c] sm:$0xf]
      %v250 = vld [vmem:[%s205 + $0x70] sm:$0xf]
      %v251 = vld [vmem:[%s205 + $0x74] sm:$0xf]
      %v252 = vld [vmem:[%s205 + $0x78] sm:$0xf]
      %v253 = vld [vmem:[%s205 + $0x7c] sm:$0xf]
      %v254 = vld [vmem:[%s205 + $0x80] sm:$0xf]
      %v255 = vld [vmem:[%s205 + $0x84] sm:$0xf]
      %v256 = vld [vmem:[%s205 + $0x88] sm:$0xf]
      %v257 = vld [vmem:[%s205 + $0x8c] sm:$0xf]
      %v258 = vld [vmem:[%s205 + $0x90] sm:$0xf]
      %v259 = vld [vmem:[%s205 + $0x94] sm:$0xf]
      %v260 = vld [vmem:[%s205 + $0x98] sm:$0xf]
      %v261 = vld [vmem:[%s205 + $0x9c] sm:$0xf]
      %v262 = vld [vmem:[%s205 + $0xa0] sm:$0xf]
      %v263 = vld [vmem:[%s205 + $0xa4] sm:$0xf]
      %v264 = vld [vmem:[%s205 + $0xa8] sm:$0xf]
      %v265 = vld [vmem:[%s205 + $0xac] sm:$0xf]
      %v266 = vld [vmem:[%s205 + $0xb0] sm:$0xf]
      %v267 = vld [vmem:[%s205 + $0xb4] sm:$0xf]
      %v268 = vld [vmem:[%s205 + $0xb8] sm:$0xf]
      %v269 = vld [vmem:[%s205 + $0xbc] sm:$0xf]
      %v270 = vld [vmem:[%s205 + $0xc0] sm:$0xf]
      %v271 = vld [vmem:[%s205 + $0xc4] sm:$0xf]
      %v272 = vld [vmem:[%s205 + $0xc8] sm:$0xf]
      %v273 = vld [vmem:[%s205 + $0xcc] sm:$0xf]
      %v274 = vld [vmem:[%s205 + $0xd0] sm:$0xf]
      %v275 = vld [vmem:[%s205 + $0xd4] sm:$0xf]
      %v276 = vld [vmem:[%s205 + $0xd8] sm:$0xf]
      %v277 = vld [vmem:[%s205 + $0xdc] sm:$0xf]
      %v278 = vld [vmem:[%s205 + $0xe0] sm:$0xf]
      %v279 = vld [vmem:[%s205 + $0xe4] sm:$0xf]
      %v280 = vld [vmem:[%s205 + $0xe8] sm:$0xf]
      %v281 = vld [vmem:[%s205 + $0xec] sm:$0xf]
      %v282 = vld [vmem:[%s205 + $0xf0] sm:$0xf]
      %v283 = vld [vmem:[%s205 + $0xf4] sm:$0xf]
      %v284 = vld [vmem:[%s205 + $0xf8] sm:$0xf]
      %v285 = vld [vmem:[%s205 + $0xfc] sm:$0xf]
      %v286 = vld [vmem:[%s1] sm:$0xf]
      %v287 = vld [vmem:[%s1 + $0x4] sm:$0xf]
      %v288 = vld [vmem:[%s1 + $0x8] sm:$0x3]
      %v353 = vunpack.c.l.b16 %v222
      %v354 = vunpack.c.l.b16 %v223
      %v355 = vunpack.c.l.b16 %v224
      %v356 = vunpack.c.l.b16 %v225
      %v357 = vunpack.c.l.b16 %v226
      %v358 = vunpack.c.l.b16 %v227
      %v359 = vunpack.c.l.b16 %v228
      %v360 = vunpack.c.l.b16 %v229
      %v361 = vunpack.c.l.b16 %v230
      %v362 = vunpack.c.l.b16 %v231
      %v363 = vunpack.c.l.b16 %v232
      %v364 = vunpack.c.l.b16 %v233
      %v365 = vunpack.c.l.b16 %v234
      %v366 = vunpack.c.l.b16 %v235
      %v367 = vunpack.c.l.b16 %v236
      %v368 = vunpack.c.l.b16 %v237
      %v369 = vunpack.c.l.b16 %v238
      %v370 = vunpack.c.l.b16 %v239
      %v371 = vunpack.c.l.b16 %v240
      %v372 = vunpack.c.l.b16 %v241
      %v373 = vunpack.c.l.b16 %v242
      %v374 = vunpack.c.l.b16 %v243
      %v375 = vunpack.c.l.b16 %v244
      %v376 = vunpack.c.l.b16 %v245
      %v377 = vunpack.c.l.b16 %v246
      %v378 = vunpack.c.l.b16 %v247
      %v379 = vunpack.c.l.b16 %v248
      %v380 = vunpack.c.l.b16 %v249
      %v381 = vunpack.c.l.b16 %v250
      %v382 = vunpack.c.l.b16 %v251
      %v383 = vunpack.c.l.b16 %v252
      %v384 = vunpack.c.l.b16 %v253
      %v385 = vunpack.c.l.b16 %v254
      %v386 = vunpack.c.l.b16 %v255
      %v387 = vunpack.c.l.b16 %v256
      %v388 = vunpack.c.l.b16 %v257
      %v389 = vunpack.c.l.b16 %v258
      %v390 = vunpack.c.l.b16 %v259
      %v391 = vunpack.c.l.b16 %v260
      %v392 = vunpack.c.l.b16 %v261
      %v393 = vunpack.c.l.b16 %v262
      %v394 = vunpack.c.l.b16 %v263
      %v395 = vunpack.c.l.b16 %v264
      %v396 = vunpack.c.l.b16 %v265
      %v397 = vunpack.c.l.b16 %v266
      %v398 = vunpack.c.l.b16 %v267
      %v399 = vunpack.c.l.b16 %v268
      %v400 = vunpack.c.l.b16 %v269
      %v401 = vunpack.c.l.b16 %v270
      %v402 = vunpack.c.l.b16 %v271
      %v403 = vunpack.c.l.b16 %v272
      %v404 = vunpack.c.l.b16 %v273
      %v405 = vunpack.c.l.b16 %v274
      %v406 = vunpack.c.l.b16 %v275
      %v407 = vunpack.c.l.b16 %v276
      %v408 = vunpack.c.l.b16 %v277
      %v409 = vunpack.c.l.b16 %v278
      %v410 = vunpack.c.l.b16 %v279
      %v411 = vunpack.c.l.b16 %v280
      %v412 = vunpack.c.l.b16 %v281
      %v413 = vunpack.c.l.b16 %v282
      %v414 = vunpack.c.l.b16 %v283
      %v415 = vunpack.c.l.b16 %v284
      %v416 = vunpack.c.l.b16 %v285
      %v417 = vpack.c.b16 %v354, %v353
      %v418 = vpack.c.b16 %v356, %v355
      %v419 = vpack.c.b16 %v358, %v357
      %v420 = vpack.c.b16 %v360, %v359
      %v421 = vpack.c.b16 %v362, %v361
      %v422 = vpack.c.b16 %v364, %v363
      %v423 = vpack.c.b16 %v366, %v365
      %v424 = vpack.c.b16 %v368, %v367
      %v425 = vpack.c.b16 %v370, %v369
      %v426 = vpack.c.b16 %v372, %v371
      %v427 = vpack.c.b16 %v374, %v373
      %v428 = vpack.c.b16 %v376, %v375
      %v429 = vpack.c.b16 %v378, %v377
      %v430 = vpack.c.b16 %v380, %v379
      %v431 = vpack.c.b16 %v382, %v381
      %v432 = vpack.c.b16 %v384, %v383
      %v433 = vpack.c.b16 %v386, %v385
      %v434 = vpack.c.b16 %v388, %v387
      %v435 = vpack.c.b16 %v390, %v389
      %v436 = vpack.c.b16 %v392, %v391
      %v437 = vpack.c.b16 %v394, %v393
      %v438 = vpack.c.b16 %v396, %v395
      %v439 = vpack.c.b16 %v398, %v397
      %v440 = vpack.c.b16 %v400, %v399
      %v441 = vpack.c.b16 %v402, %v401
      %v442 = vpack.c.b16 %v404, %v403
      %v443 = vpack.c.b16 %v406, %v405
      %v444 = vpack.c.b16 %v408, %v407
      %v445 = vpack.c.b16 %v410, %v409
      %v446 = vpack.c.b16 %v412, %v411
      %v447 = vpack.c.b16 %v414, %v413
      %v448 = vpack.c.b16 %v416, %v415
      %v452 = vunpack.c.l.b16 %v286
      %v453 = vunpack.c.l.b16 %v287
      %v454 = vunpack.c.l.b16 %v288
      %v455 = vpack.c.b16 %v453, %v452
      %v456 = vpack.c.b16 %v454, %v454
      %vm458 = vcmask 162816
      %v460 = vsel %vm458, %v417, 0
      %v463 = vsel %vm458, %v418, 0
      %v466 = vsel %vm458, %v419, 0
      %v469 = vsel %vm458, %v420, 0
      %v472 = vsel %vm458, %v421, 0
      %v475 = vsel %vm458, %v422, 0
      %v478 = vsel %vm458, %v423, 0
      %v481 = vsel %vm458, %v424, 0
      %v484 = vsel %vm458, %v425, 0
      %v487 = vsel %vm458, %v426, 0
      %v490 = vsel %vm458, %v427, 0
      %v493 = vsel %vm458, %v428, 0
      %v496 = vsel %vm458, %v429, 0
      %v499 = vsel %vm458, %v430, 0
      %v502 = vsel %vm458, %v431, 0
      %v505 = vsel %vm458, %v432, 0
      %v508 = vsel %vm458, %v433, 0
      %v511 = vsel %vm458, %v434, 0
      %v514 = vsel %vm458, %v435, 0
      %v517 = vsel %vm458, %v436, 0
      %v520 = vsel %vm458, %v437, 0
      %v523 = vsel %vm458, %v438, 0
      %v526 = vsel %vm458, %v439, 0
      %v529 = vsel %vm458, %v440, 0
      %v532 = vsel %vm458, %v441, 0
      %v535 = vsel %vm458, %v442, 0
      %v538 = vsel %vm458, %v443, 0
      %v541 = vsel %vm458, %v444, 0
      %v544 = vsel %vm458, %v445, 0
      %v547 = vsel %vm458, %v446, 0
      %v550 = vsel %vm458, %v447, 0
      %v553 = vsel %vm458, %v448, 0
      %vm555 = vcmask 1041408
      %v557 = vsel %vm555, %v456, 0
      %559 = vmatprep.subr.bf16.mxu0 0
      %560 = vmatpush1.bf16.msra.mxu0 %v455
      %561 = vmatprep.subr.bf16.mxu0 0
      %562 = vmatpush1.bf16.msra.mxu0 %v557
      %563 = vmatprep.subr.bf16.mxu0 0
      %564 = vmatpush1.bf16.msra.mxu0 0
      %565 = vmatprep.subr.bf16.mxu0 0
      %566 = vmatpush1.bf16.msra.mxu0 0
      %567 = vmatprep.subr.bf16.mxu0 0
      %568 = vmatpush1.bf16.msra.mxu0 0
      %569 = vmatprep.subr.bf16.mxu0 0
      %570 = vmatpush1.bf16.msra.mxu0 0
      %571 = vmatprep.subr.bf16.mxu0 0
      %572 = vmatpush1.bf16.msra.mxu0 0
      %573 = vmatprep.subr.bf16.mxu0 0
      %574 = vmatpush1.bf16.msra.mxu0 0
      %575 = vmatprep.subr.bf16.mxu0 0
      %576 = vmatpush1.bf16.msra.mxu0 0
      %577 = vmatprep.subr.bf16.mxu0 0
      %578 = vmatpush1.bf16.msra.mxu0 0
      %579 = vmatprep.subr.bf16.mxu0 0
      %580 = vmatpush1.bf16.msra.mxu0 0
      %581 = vmatprep.subr.bf16.mxu0 0
      %582 = vmatpush1.bf16.msra.mxu0 0
      %583 = vmatprep.subr.bf16.mxu0 0
      %584 = vmatpush1.bf16.msra.mxu0 0
      %585 = vmatprep.subr.bf16.mxu0 0
      %586 = vmatpush1.bf16.msra.mxu0 0
      %587 = vmatprep.subr.bf16.mxu0 0
      %588 = vmatpush1.bf16.msra.mxu0 0
      %589 = vmatprep.subr.bf16.mxu0 0
      %590 = vmatpush1.bf16.msra.mxu0 0
      %591 = vmatprep.mubr.bf16.mxu0 0
      %592 = vmatmul.mubr.bf16.gmra.mrb[0].mxu0 %v460
      %v593 = vpop.f32.mrb[0].mxu0
      %v594 = vadd.f32 0.0, %v593
      %v595 = vpop.f32.mrb[0].mxu0
      %v596 = vpop.f32.mrb[0].mxu0
      %v597 = vadd.f32 0.0, %v596
      %v598 = vpop.f32.mrb[0].mxu0
      %599 = vmatprep.mubr.bf16.mxu0 0
      %600 = vmatmul.mubr.bf16.gmra.mrb[0].mxu0 %v463
      %v601 = vpop.f32.mrb[0].mxu0
      %v602 = vadd.f32 0.0, %v601
      %v603 = vpop.f32.mrb[0].mxu0
      %v604 = vpop.f32.mrb[0].mxu0
      %v605 = vadd.f32 0.0, %v604
      %v606 = vpop.f32.mrb[0].mxu0
      %607 = vmatprep.mubr.bf16.mxu0 0
      %608 = vmatmul.mubr.bf16.gmra.mrb[0].mxu0 %v466
      %v609 = vpop.f32.mrb[0].mxu0
      %v610 = vadd.f32 0.0, %v609
      %v611 = vpop.f32.mrb[0].mxu0
      %v612 = vpop.f32.mrb[0].mxu0
      %v613 = vadd.f32 0.0, %v612
      %v614 = vpop.f32.mrb[0].mxu0
      %615 = vmatprep.mubr.bf16.mxu0 0
      %616 = vmatmul.mubr.bf16.gmra.mrb[0].mxu0 %v469
      %v617 = vpop.f32.mrb[0].mxu0
      %v618 = vadd.f32 0.0, %v617
      %v619 = vpop.f32.mrb[0].mxu0
      %v620 = vpop.f32.mrb[0].mxu0
      %v621 = vadd.f32 0.0, %v620
      %v622 = vpop.f32.mrb[0].mxu0
      %623 = vmatprep.mubr.bf16.mxu0 0
      %624 = vmatmul.mubr.bf16.gmra.mrb[0].mxu0 %v472
      %v625 = vpop.f32.mrb[0].mxu0
      %v626 = vadd.f32 0.0, %v625
      %v627 = vpop.f32.mrb[0].mxu0
      %v628 = vpop.f32.mrb[0].mxu0
      %v629 = vadd.f32 0.0, %v628
      %v630 = vpop.f32.mrb[0].mxu0
      %631 = vmatprep.mubr.bf16.mxu0 0
      %632 = vmatmul.mubr.bf16.gmra.mrb[0].mxu0 %v475
      %v633 = vpop.f32.mrb[0].mxu0
      %v634 = vadd.f32 0.0, %v633
      %v635 = vpop.f32.mrb[0].mxu0
      %v636 = vpop.f32.mrb[0].mxu0
      %v637 = vadd.f32 0.0, %v636
      %v638 = vpop.f32.mrb[0].mxu0
      %639 = vmatprep.mubr.bf16.mxu0 0
      %640 = vmatmul.mubr.bf16.gmra.mrb[0].mxu0 %v478
      %v641 = vpop.f32.mrb[0].mxu0
      %v642 = vadd.f32 0.0, %v641
      %v643 = vpop.f32.mrb[0].mxu0
      %v644 = vpop.f32.mrb[0].mxu0
      %v645 = vadd.f32 0.0, %v644
      %v646 = vpop.f32.mrb[0].mxu0
      %647 = vmatprep.mubr.bf16.mxu0 0
      %648 = vmatmul.mubr.bf16.gmra.mrb[0].mxu0 %v481
      %v649 = vpop.f32.mrb[0].mxu0
      %v650 = vadd.f32 0.0, %v649
      %v651 = vpop.f32.mrb[0].mxu0
      %v652 = vpop.f32.mrb[0].mxu0
      %v653 = vadd.f32 0.0, %v652
      %v654 = vpop.f32.mrb[0].mxu0
      %655 = vmatprep.mubr.bf16.mxu0 0
      %656 = vmatmul.mubr.bf16.gmra.mrb[0].mxu0 %v484
      %v657 = vpop.f32.mrb[0].mxu0
      %v658 = vadd.f32 0.0, %v657
      %v659 = vpop.f32.mrb[0].mxu0
      %v660 = vpop.f32.mrb[0].mxu0
      %v661 = vadd.f32 0.0, %v660
      %v662 = vpop.f32.mrb[0].mxu0
      %663 = vmatprep.mubr.bf16.mxu0 0
      %664 = vmatmul.mubr.bf16.gmra.mrb[0].mxu0 %v487
      %v665 = vpop.f32.mrb[0].mxu0
      %v666 = vadd.f32 0.0, %v665
      %v667 = vpop.f32.mrb[0].mxu0
      %v668 = vpop.f32.mrb[0].mxu0
      %v669 = vadd.f32 0.0, %v668
      %v670 = vpop.f32.mrb[0].mxu0
      %671 = vmatprep.mubr.bf16.mxu0 0
      %672 = vmatmul.mubr.bf16.gmra.mrb[0].mxu0 %v490
      %v673 = vpop.f32.mrb[0].mxu0
      %v674 = vadd.f32 0.0, %v673
      %v675 = vpop.f32.mrb[0].mxu0
      %v676 = vpop.f32.mrb[0].mxu0
      %v677 = vadd.f32 0.0, %v676
      %v678 = vpop.f32.mrb[0].mxu0
      %679 = vmatprep.mubr.bf16.mxu0 0
      %680 = vmatmul.mubr.bf16.gmra.mrb[0].mxu0 %v493
      %v681 = vpop.f32.mrb[0].mxu0
      %v682 = vadd.f32 0.0, %v681
      %v683 = vpop.f32.mrb[0].mxu0
      %v684 = vpop.f32.mrb[0].mxu0
      %v685 = vadd.f32 0.0, %v684
      %v686 = vpop.f32.mrb[0].mxu0
      %687 = vmatprep.mubr.bf16.mxu0 0
      %688 = vmatmul.mubr.bf16.gmra.mrb[0].mxu0 %v496
      %v689 = vpop.f32.mrb[0].mxu0
      %v690 = vadd.f32 0.0, %v689
      %v691 = vpop.f32.mrb[0].mxu0
      %v692 = vpop.f32.mrb[0].mxu0
      %v693 = vadd.f32 0.0, %v692
      %v694 = vpop.f32.mrb[0].mxu0
      %695 = vmatprep.mubr.bf16.mxu0 0
      %696 = vmatmul.mubr.bf16.gmra.mrb[0].mxu0 %v499
      %v697 = vpop.f32.mrb[0].mxu0
      %v698 = vadd.f32 0.0, %v697
      %v699 = vpop.f32.mrb[0].mxu0
      %v700 = vpop.f32.mrb[0].mxu0
      %v701 = vadd.f32 0.0, %v700
      %v702 = vpop.f32.mrb[0].mxu0
      %703 = vmatprep.mubr.bf16.mxu0 0
      %704 = vmatmul.mubr.bf16.gmra.mrb[0].mxu0 %v502
      %v705 = vpop.f32.mrb[0].mxu0
      %v706 = vadd.f32 0.0, %v705
      %v707 = vpop.f32.mrb[0].mxu0
      %v708 = vpop.f32.mrb[0].mxu0
      %v709 = vadd.f32 0.0, %v708
      %v710 = vpop.f32.mrb[0].mxu0
      %711 = vmatprep.mubr.bf16.mxu0 0
      %712 = vmatmul.mubr.bf16.gmra.mrb[0].mxu0 %v505
      %v713 = vpop.f32.mrb[0].mxu0
      %v714 = vadd.f32 0.0, %v713
      %v715 = vpop.f32.mrb[0].mxu0
      %v716 = vpop.f32.mrb[0].mxu0
      %v717 = vadd.f32 0.0, %v716
      %v718 = vpop.f32.mrb[0].mxu0
      %719 = vmatprep.mubr.bf16.mxu0 0
      %720 = vmatmul.mubr.bf16.gmra.mrb[0].mxu0 %v508
      %v721 = vpop.f32.mrb[0].mxu0
      %v722 = vadd.f32 0.0, %v721
      %v723 = vpop.f32.mrb[0].mxu0
      %v724 = vpop.f32.mrb[0].mxu0
      %v725 = vadd.f32 0.0, %v724
      %v726 = vpop.f32.mrb[0].mxu0
      %727 = vmatprep.mubr.bf16.mxu0 0
      %728 = vmatmul.mubr.bf16.gmra.mrb[0].mxu0 %v511
      %v729 = vpop.f32.mrb[0].mxu0
      %v730 = vadd.f32 0.0, %v729
      %v731 = vpop.f32.mrb[0].mxu0
      %v732 = vpop.f32.mrb[0].mxu0
      %v733 = vadd.f32 0.0, %v732
      %v734 = vpop.f32.mrb[0].mxu0
      %735 = vmatprep.mubr.bf16.mxu0 0
      %736 = vmatmul.mubr.bf16.gmra.mrb[0].mxu0 %v514
      %v737 = vpop.f32.mrb[0].mxu0
      %v738 = vadd.f32 0.0, %v737
      %v739 = vpop.f32.mrb[0].mxu0
      %v740 = vpop.f32.mrb[0].mxu0
      %v741 = vadd.f32 0.0, %v740
      %v742 = vpop.f32.mrb[0].mxu0
      %743 = vmatprep.mubr.bf16.mxu0 0
      %744 = vmatmul.mubr.bf16.gmra.mrb[0].mxu0 %v517
      %v745 = vpop.f32.mrb[0].mxu0
      %v746 = vadd.f32 0.0, %v745
      %v747 = vpop.f32.mrb[0].mxu0
      %v748 = vpop.f32.mrb[0].mxu0
      %v749 = vadd.f32 0.0, %v748
      %v750 = vpop.f32.mrb[0].mxu0
      %751 = vmatprep.mubr.bf16.mxu0 0
      %752 = vmatmul.mubr.bf16.gmra.mrb[0].mxu0 %v520
      %v753 = vpop.f32.mrb[0].mxu0
      %v754 = vadd.f32 0.0, %v753
      %v755 = vpop.f32.mrb[0].mxu0
      %v756 = vpop.f32.mrb[0].mxu0
      %v757 = vadd.f32 0.0, %v756
      %v758 = vpop.f32.mrb[0].mxu0
      %759 = vmatprep.mubr.bf16.mxu0 0
      %760 = vmatmul.mubr.bf16.gmra.mrb[0].mxu0 %v523
      %v761 = vpop.f32.mrb[0].mxu0
      %v762 = vadd.f32 0.0, %v761
      %v763 = vpop.f32.mrb[0].mxu0
      %v764 = vpop.f32.mrb[0].mxu0
      %v765 = vadd.f32 0.0, %v764
      %v766 = vpop.f32.mrb[0].mxu0
      %767 = vmatprep.mubr.bf16.mxu0 0
      %768 = vmatmul.mubr.bf16.gmra.mrb[0].mxu0 %v526
      %v769 = vpop.f32.mrb[0].mxu0
      %v770 = vadd.f32 0.0, %v769
      %v771 = vpop.f32.mrb[0].mxu0
      %v772 = vpop.f32.mrb[0].mxu0
      %v773 = vadd.f32 0.0, %v772
      %v774 = vpop.f32.mrb[0].mxu0
      %775 = vmatprep.mubr.bf16.mxu0 0
      %776 = vmatmul.mubr.bf16.gmra.mrb[0].mxu0 %v529
      %v777 = vpop.f32.mrb[0].mxu0
      %v778 = vadd.f32 0.0, %v777
      %v779 = vpop.f32.mrb[0].mxu0
      %v780 = vpop.f32.mrb[0].mxu0
      %v781 = vadd.f32 0.0, %v780
      %v782 = vpop.f32.mrb[0].mxu0
      %783 = vmatprep.mubr.bf16.mxu0 0
      %784 = vmatmul.mubr.bf16.gmra.mrb[0].mxu0 %v532
      %v785 = vpop.f32.mrb[0].mxu0
      %v786 = vadd.f32 0.0, %v785
      %v787 = vpop.f32.mrb[0].mxu0
      %v788 = vpop.f32.mrb[0].mxu0
      %v789 = vadd.f32 0.0, %v788
      %v790 = vpop.f32.mrb[0].mxu0
      %791 = vmatprep.mubr.bf16.mxu0 0
      %792 = vmatmul.mubr.bf16.gmra.mrb[0].mxu0 %v535
      %v793 = vpop.f32.mrb[0].mxu0
      %v794 = vadd.f32 0.0, %v793
      %v795 = vpop.f32.mrb[0].mxu0
      %v796 = vpop.f32.mrb[0].mxu0
      %v797 = vadd.f32 0.0, %v796
      %v798 = vpop.f32.mrb[0].mxu0
      %799 = vmatprep.mubr.bf16.mxu0 0
      %800 = vmatmul.mubr.bf16.gmra.mrb[0].mxu0 %v538
      %v801 = vpop.f32.mrb[0].mxu0
      %v802 = vadd.f32 0.0, %v801
      %v803 = vpop.f32.mrb[0].mxu0
      %v804 = vpop.f32.mrb[0].mxu0
      %v805 = vadd.f32 0.0, %v804
      %v806 = vpop.f32.mrb[0].mxu0
      %807 = vmatprep.mubr.bf16.mxu0 0
      %808 = vmatmul.mubr.bf16.gmra.mrb[0].mxu0 %v541
      %v809 = vpop.f32.mrb[0].mxu0
      %v810 = vadd.f32 0.0, %v809
      %v811 = vpop.f32.mrb[0].mxu0
      %v812 = vpop.f32.mrb[0].mxu0
      %v813 = vadd.f32 0.0, %v812
      %v814 = vpop.f32.mrb[0].mxu0
      %815 = vmatprep.mubr.bf16.mxu0 0
      %816 = vmatmul.mubr.bf16.gmra.mrb[0].mxu0 %v544
      %v817 = vpop.f32.mrb[0].mxu0
      %v818 = vadd.f32 0.0, %v817
      %v819 = vpop.f32.mrb[0].mxu0
      %v820 = vpop.f32.mrb[0].mxu0
      %v821 = vadd.f32 0.0, %v820
      %v822 = vpop.f32.mrb[0].mxu0
      %823 = vmatprep.mubr.bf16.mxu0 0
      %824 = vmatmul.mubr.bf16.gmra.mrb[0].mxu0 %v547
      %v825 = vpop.f32.mrb[0].mxu0
      %v826 = vadd.f32 0.0, %v825
      %v827 = vpop.f32.mrb[0].mxu0
      %v828 = vpop.f32.mrb[0].mxu0
      %v829 = vadd.f32 0.0, %v828
      %v830 = vpop.f32.mrb[0].mxu0
      %831 = vmatprep.mubr.bf16.mxu0 0
      %832 = vmatmul.mubr.bf16.gmra.mrb[0].mxu0 %v550
      %v833 = vpop.f32.mrb[0].mxu0
      %v834 = vadd.f32 0.0, %v833
      %v835 = vpop.f32.mrb[0].mxu0
      %v836 = vpop.f32.mrb[0].mxu0
      %v837 = vadd.f32 0.0, %v836
      %v838 = vpop.f32.mrb[0].mxu0
      %839 = vmatprep.mubr.bf16.mxu0 0
      %840 = vmatmul.mubr.bf16.gmra.mrb[0].mxu0 %v553
      %v841 = vpop.f32.mrb[0].mxu0
      %v842 = vadd.f32 0.0, %v841
      %v843 = vpop.f32.mrb[0].mxu0
      %v844 = vpop.f32.mrb[0].mxu0
      %v845 = vadd.f32 0.0, %v844
      %v846 = vpop.f32.mrb[0].mxu0
      %847 = vdwg.mxu0
      %848 = vst [vmem:[%s215] sm:$0xff] %v594
      %849 = vst [vmem:[%s215 + $0x8] sm:$0xff] %v597
      %850 = vst [vmem:[%s215 + $0x10] sm:$0xff] %v602
      %851 = vst [vmem:[%s215 + $0x18] sm:$0xff] %v605
      %852 = vst [vmem:[%s215 + $0x20] sm:$0xff] %v610
      %853 = vst [vmem:[%s215 + $0x28] sm:$0xff] %v613
      %854 = vst [vmem:[%s215 + $0x30] sm:$0xff] %v618
      %855 = vst [vmem:[%s215 + $0x38] sm:$0xff] %v621
      %856 = vst [vmem:[%s215 + $0x40] sm:$0xff] %v626
      %857 = vst [vmem:[%s215 + $0x48] sm:$0xff] %v629
      %858 = vst [vmem:[%s215 + $0x50] sm:$0xff] %v634
      %859 = vst [vmem:[%s215 + $0x58] sm:$0xff] %v637
      %860 = vst [vmem:[%s215 + $0x60] sm:$0xff] %v642
      %861 = vst [vmem:[%s215 + $0x68] sm:$0xff] %v645
      %862 = vst [vmem:[%s215 + $0x70] sm:$0xff] %v650
      %863 = vst [vmem:[%s215 + $0x78] sm:$0xff] %v653
      %864 = vst [vmem:[%s215 + $0x80] sm:$0xff] %v658
      %865 = vst [vmem:[%s215 + $0x88] sm:$0xff] %v661
      %866 = vst [vmem:[%s215 + $0x90] sm:$0xff] %v666
      %867 = vst [vmem:[%s215 + $0x98] sm:$0xff] %v669
      %868 = vst [vmem:[%s215 + $0xa0] sm:$0xff] %v674
      %869 = vst [vmem:[%s215 + $0xa8] sm:$0xff] %v677
      %870 = vst [vmem:[%s215 + $0xb0] sm:$0xff] %v682
      %871 = vst [vmem:[%s215 + $0xb8] sm:$0xff] %v685
      %872 = vst [vmem:[%s215 + $0xc0] sm:$0xff] %v690
      %873 = vst [vmem:[%s215 + $0xc8] sm:$0xff] %v693
      %874 = vst [vmem:[%s215 + $0xd0] sm:$0xff] %v698
      %875 = vst [vmem:[%s215 + $0xd8] sm:$0xff] %v701
      %876 = vst [vmem:[%s215 + $0xe0] sm:$0xff] %v706
      %877 = vst [vmem:[%s215 + $0xe8] sm:$0xff] %v709
      %878 = vst [vmem:[%s215 + $0xf0] sm:$0xff] %v714
      %879 = vst [vmem:[%s215 + $0xf8] sm:$0xff] %v717
      %880 = vst [vmem:[%s215 + $0x100] sm:$0xff] %v722
      %881 = vst [vmem:[%s215 + $0x108] sm:$0xff] %v725
      %882 = vst [vmem:[%s215 + $0x110] sm:$0xff] %v730
      %883 = vst [vmem:[%s215 + $0x118] sm:$0xff] %v733
      %884 = vst [vmem:[%s215 + $0x120] sm:$0xff] %v738
      %885 = vst [vmem:[%s215 + $0x128] sm:$0xff] %v741
      %886 = vst [vmem:[%s215 + $0x130] sm:$0xff] %v746
      %887 = vst [vmem:[%s215 + $0x138] sm:$0xff] %v749
      %888 = vst [vmem:[%s215 + $0x140] sm:$0xff] %v754
      %889 = vst [vmem:[%s215 + $0x148] sm:$0xff] %v757
      %890 = vst [vmem:[%s215 + $0x150] sm:$0xff] %v762
      %891 = vst [vmem:[%s215 + $0x158] sm:$0xff] %v765
      %892 = vst [vmem:[%s215 + $0x160] sm:$0xff] %v770
      %893 = vst [vmem:[%s215 + $0x168] sm:$0xff] %v773
      %894 = vst [vmem:[%s215 + $0x170] sm:$0xff] %v778
      %895 = vst [vmem:[%s215 + $0x178] sm:$0xff] %v781
      %896 = vst [vmem:[%s215 + $0x180] sm:$0xff] %v786
      %897 = vst [vmem:[%s215 + $0x188] sm:$0xff] %v789
      %898 = vst [vmem:[%s215 + $0x190] sm:$0xff] %v794
      %899 = vst [vmem:[%s215 + $0x198] sm:$0xff] %v797
      %900 = vst [vmem:[%s215 + $0x1a0] sm:$0xff] %v802
      %901 = vst [vmem:[%s215 + $0x1a8] sm:$0xff] %v805
      %902 = vst [vmem:[%s215 + $0x1b0] sm:$0xff] %v810
      %903 = vst [vmem:[%s215 + $0x1b8] sm:$0xff] %v813
      %904 = vst [vmem:[%s215 + $0x1c0] sm:$0xff] %v818
      %905 = vst [vmem:[%s215 + $0x1c8] sm:$0xff] %v821
      %906 = vst [vmem:[%s215 + $0x1d0] sm:$0xff] %v826
      %907 = vst [vmem:[%s215 + $0x1d8] sm:$0xff] %v829
      %908 = vst [vmem:[%s215 + $0x1e0] sm:$0xff] %v834
      %909 = vst [vmem:[%s215 + $0x1e8] sm:$0xff] %v837
      %910 = vst [vmem:[%s215 + $0x1f0] sm:$0xff] %v842
      %911 = vst [vmem:[%s215 + $0x1f8] sm:$0xff] %v845
      %v912 = vadd.f32 %v594, %v597
      %v913 = vadd.f32 %v912, %v602
      %v914 = vadd.f32 %v913, %v605
      %v915 = vadd.f32 %v914, %v610
      %v916 = vadd.f32 %v915, %v613
      %v917 = vadd.f32 %v916, %v618
      %v918 = vadd.f32 %v917, %v621
      %v919 = vadd.f32 %v918, %v626
      %v920 = vadd.f32 %v919, %v629
      %v921 = vadd.f32 %v920, %v634
      %v922 = vadd.f32 %v921, %v637
      %v923 = vadd.f32 %v922, %v642
      %v924 = vadd.f32 %v923, %v645
      %v925 = vadd.f32 %v924, %v650
      %v926 = vadd.f32 %v925, %v653
      %v927 = vadd.f32 %v926, %v658
      %v928 = vadd.f32 %v927, %v661
      %v929 = vadd.f32 %v928, %v666
      %v930 = vadd.f32 %v929, %v669
      %v931 = vadd.f32 %v930, %v674
      %v932 = vadd.f32 %v931, %v677
      %v933 = vadd.f32 %v932, %v682
      %v934 = vadd.f32 %v933, %v685
      %v935 = vadd.f32 %v934, %v690
      %v936 = vadd.f32 %v935, %v693
      %v937 = vadd.f32 %v936, %v698
      %v938 = vadd.f32 %v937, %v701
      %v939 = vadd.f32 %v938, %v706
      %v940 = vadd.f32 %v939, %v709
      %v941 = vadd.f32 %v940, %v714
      %v942 = vadd.f32 %v941, %v717
      %v943 = vadd.f32 %v942, %v722
      %v944 = vadd.f32 %v943, %v725
      %v945 = vadd.f32 %v944, %v730
      %v946 = vadd.f32 %v945, %v733
      %v947 = vadd.f32 %v946, %v738
      %v948 = vadd.f32 %v947, %v741
      %v949 = vadd.f32 %v948, %v746
      %v950 = vadd.f32 %v949, %v749
      %v951 = vadd.f32 %v950, %v754
      %v952 = vadd.f32 %v951, %v757
      %v953 = vadd.f32 %v952, %v762
      %v954 = vadd.f32 %v953, %v765
      %v955 = vadd.f32 %v954, %v770
      %v956 = vadd.f32 %v955, %v773
      %v957 = vadd.f32 %v956, %v778
      %v958 = vadd.f32 %v957, %v781
      %v959 = vadd.f32 %v958, %v786
      %v960 = vadd.f32 %v959, %v789
      %v961 = vadd.f32 %v960, %v794
      %v962 = vadd.f32 %v961, %v797
      %v963 = vadd.f32 %v962, %v802
      %v964 = vadd.f32 %v963, %v805
      %v965 = vadd.f32 %v964, %v810
      %v966 = vadd.f32 %v965, %v813
      %v967 = vadd.f32 %v966, %v818
      %v968 = vadd.f32 %v967, %v821
      %v969 = vadd.f32 %v968, %v826
      %v970 = vadd.f32 %v969, %v829
      %v971 = vadd.f32 %v970, %v834
      %v972 = vadd.f32 %v971, %v837
      %v973 = vadd.f32 %v972, %v842
      %v974 = vadd.f32 %v973, %v845
      %v975 = vrot.slane %v974, 4
      %v976 = vadd.f32 %v974, %v975
      %v977 = vrot.slane %v976, 2
      %v978 = vadd.f32 %v976, %v977
      %v979 = vrot.slane %v978, 1
      %v980 = vadd.f32 %v978, %v979
      %v981 = vmul.f32 %v594, %v594
      %v982 = vmul.f32 %v597, %v597
      %v983 = vmul.f32 %v602, %v602
      %v984 = vmul.f32 %v605, %v605
      %v985 = vmul.f32 %v610, %v610
      %v986 = vmul.f32 %v613, %v613
      %v987 = vmul.f32 %v618, %v618
      %v988 = vmul.f32 %v621, %v621
      %v989 = vmul.f32 %v626, %v626
      %v990 = vmul.f32 %v629, %v629
      %v991 = vmul.f32 %v634, %v634
      %v992 = vmul.f32 %v637, %v637
      %v993 = vmul.f32 %v642, %v642
      %v994 = vmul.f32 %v645, %v645
      %v995 = vmul.f32 %v650, %v650
      %v996 = vmul.f32 %v653, %v653
      %v997 = vmul.f32 %v658, %v658
      %v998 = vmul.f32 %v661, %v661
      %v999 = vmul.f32 %v666, %v666
      %v1000 = vmul.f32 %v669, %v669
      %v1001 = vmul.f32 %v674, %v674
      %v1002 = vmul.f32 %v677, %v677
      %v1003 = vmul.f32 %v682, %v682
      %v1004 = vmul.f32 %v685, %v685
      %v1005 = vmul.f32 %v690, %v690
      %v1006 = vmul.f32 %v693, %v693
      %v1007 = vmul.f32 %v698, %v698
      %v1008 = vmul.f32 %v701, %v701
      %v1009 = vmul.f32 %v706, %v706
      %v1010 = vmul.f32 %v709, %v709
      %v1011 = vmul.f32 %v714, %v714
      %v1012 = vmul.f32 %v717, %v717
      %v1013 = vmul.f32 %v722, %v722
      %v1014 = vmul.f32 %v725, %v725
      %v1015 = vmul.f32 %v730, %v730
      %v1016 = vmul.f32 %v733, %v733
      %v1017 = vmul.f32 %v738, %v738
      %v1018 = vmul.f32 %v741, %v741
      %v1019 = vmul.f32 %v746, %v746
      %v1020 = vmul.f32 %v749, %v749
      %v1021 = vmul.f32 %v754, %v754
      %v1022 = vmul.f32 %v757, %v757
      %v1023 = vmul.f32 %v762, %v762
      %v1024 = vmul.f32 %v765, %v765
      %v1025 = vmul.f32 %v770, %v770
      %v1026 = vmul.f32 %v773, %v773
      %v1027 = vmul.f32 %v778, %v778
      %v1028 = vmul.f32 %v781, %v781
      %v1029 = vmul.f32 %v786, %v786
      %v1030 = vmul.f32 %v789, %v789
      %v1031 = vmul.f32 %v794, %v794
      %v1032 = vmul.f32 %v797, %v797
      %v1033 = vmul.f32 %v802, %v802
      %v1034 = vmul.f32 %v805, %v805
      %v1035 = vmul.f32 %v810, %v810
      %v1036 = vmul.f32 %v813, %v813
      %v1037 = vmul.f32 %v818, %v818
      %v1038 = vmul.f32 %v821, %v821
      %v1039 = vmul.f32 %v826, %v826
      %v1040 = vmul.f32 %v829, %v829
      %v1041 = vmul.f32 %v834, %v834
      %v1042 = vmul.f32 %v837, %v837
      %v1043 = vmul.f32 %v842, %v842
      %v1044 = vmul.f32 %v845, %v845
      %v1045 = vadd.f32 %v981, %v982
      %v1046 = vadd.f32 %v1045, %v983
      %v1047 = vadd.f32 %v1046, %v984
      %v1048 = vadd.f32 %v1047, %v985
      %v1049 = vadd.f32 %v1048, %v986
      %v1050 = vadd.f32 %v1049, %v987
      %v1051 = vadd.f32 %v1050, %v988
      %v1052 = vadd.f32 %v1051, %v989
      %v1053 = vadd.f32 %v1052, %v990
      %v1054 = vadd.f32 %v1053, %v991
      %v1055 = vadd.f32 %v1054, %v992
      %v1056 = vadd.f32 %v1055, %v993
      %v1057 = vadd.f32 %v1056, %v994
      %v1058 = vadd.f32 %v1057, %v995
      %v1059 = vadd.f32 %v1058, %v996
      %v1060 = vadd.f32 %v1059, %v997
      %v1061 = vadd.f32 %v1060, %v998
      %v1062 = vadd.f32 %v1061, %v999
      %v1063 = vadd.f32 %v1062, %v1000
      %v1064 = vadd.f32 %v1063, %v1001
      %v1065 = vadd.f32 %v1064, %v1002
      %v1066 = vadd.f32 %v1065, %v1003
      %v1067 = vadd.f32 %v1066, %v1004
      %v1068 = vadd.f32 %v1067, %v1005
      %v1069 = vadd.f32 %v1068, %v1006
      %v1070 = vadd.f32 %v1069, %v1007
      %v1071 = vadd.f32 %v1070, %v1008
      %v1072 = vadd.f32 %v1071, %v1009
      %v1073 = vadd.f32 %v1072, %v1010
      %v1074 = vadd.f32 %v1073, %v1011
      %v1075 = vadd.f32 %v1074, %v1012
      %v1076 = vadd.f32 %v1075, %v1013
      %v1077 = vadd.f32 %v1076, %v1014
      %v1078 = vadd.f32 %v1077, %v1015
      %v1079 = vadd.f32 %v1078, %v1016
      %v1080 = vadd.f32 %v1079, %v1017
      %v1081 = vadd.f32 %v1080, %v1018
      %v1082 = vadd.f32 %v1081, %v1019
      %v1083 = vadd.f32 %v1082, %v1020
      %v1084 = vadd.f32 %v1083, %v1021
      %v1085 = vadd.f32 %v1084, %v1022
      %v1086 = vadd.f32 %v1085, %v1023
      %v1087 = vadd.f32 %v1086, %v1024
      %v1088 = vadd.f32 %v1087, %v1025
      %v1089 = vadd.f32 %v1088, %v1026
      %v1090 = vadd.f32 %v1089, %v1027
      %v1091 = vadd.f32 %v1090, %v1028
      %v1092 = vadd.f32 %v1091, %v1029
      %v1093 = vadd.f32 %v1092, %v1030
      %v1094 = vadd.f32 %v1093, %v1031
      %v1095 = vadd.f32 %v1094, %v1032
      %v1096 = vadd.f32 %v1095, %v1033
      %v1097 = vadd.f32 %v1096, %v1034
      %v1098 = vadd.f32 %v1097, %v1035
      %v1099 = vadd.f32 %v1098, %v1036
      %v1100 = vadd.f32 %v1099, %v1037
      %v1101 = vadd.f32 %v1100, %v1038
      %v1102 = vadd.f32 %v1101, %v1039
      %v1103 = vadd.f32 %v1102, %v1040
      %v1104 = vadd.f32 %v1103, %v1041
      %v1105 = vadd.f32 %v1104, %v1042
      %v1106 = vadd.f32 %v1105, %v1043
      %v1107 = vadd.f32 %v1106, %v1044
      %v1108 = vrot.slane %v1107, 4
      %v1109 = vadd.f32 %v1107, %v1108
      %v1110 = vrot.slane %v1109, 2
      %v1111 = vadd.f32 %v1109, %v1110
      %v1112 = vrot.slane %v1111, 1
      %v1113 = vadd.f32 %v1111, %v1112
      %vm1114 = vcmask 1040384
      %v1115 = vsel %vm1114, %v980, %v1113
      %v1116 = vsel %vm555, %v1115, 0.0
      %p1117 = scmp.eq.s32.totalorder %s20, 0
      // Predicated region
      $region29: #{dt_forward.110} parent=27 // pred_check
        %p1118 = pneg %p1117
      $region30: #{dt_forward.110} parent=27 // pred_check_branch
        %1120 = sbr.rel (%p1118) target = $region32
      $region31: #{dt_forward.110} parent=27 // pred_region
        %1121 = vst [vmem:[%s220] sm:$0xff] %v1116
      $region32: #{dt_forward.110} parent=27 // pred_fallthru
        _
      %p1122 = scmp.gt.s32.totalorder %s20, 0
      // Predicated region
      $region33: #{dt_forward.110} parent=27 // pred_check
        %p1123 = pneg %p1122
      $region34: #{dt_forward.110} parent=27 // pred_check_branch
        %1125 = sbr.rel (%p1123) target = $region36
      $region35: #{dt_forward.110} parent=27 // pred_region
        %v1126 = vld [vmem:[%s220] sm:$0xff]
        %v1127 = vadd.f32 %v1126, %v1116
        %1128 = vst [vmem:[%s220] sm:$0xff] %v1127
      $region36: #{dt_forward.110} parent=27 // pred_fallthru
        _
      %s1129 = smul.u32 64, %s20
      %p1130 = scmp.lt.s32.totalorder %s19, 1
      %s1131 = scalar_select %p1130, %s19, 1
      %p1132 = scmp.lt.s32.totalorder %s1129, 127
      %s1133 = scalar_select %p1132, %s1129, 127
      %s1134 = smul.addr %s1131, 128
      %s1135 = sadd.s32 %s1133, %s1134
      %s1136 = smul.addr %s1135, 8
      %s1137 = scalar_lea.vmem %s2, %s1136
      %p1138 = scmp.lt.s32.totalorder %s19, 1
      %s1139 = scalar_select %p1138, %s19, 1
      %s1140 = smul.addr %s1139, 8
      %s1141 = scalar_lea.vmem %s3, %s1140
      // Predicated region
      $region37: #{dt_forward.110} parent=27 // pred_check
        %p1142 = pneg %p96
      $region38: #{dt_forward.110} parent=27 // pred_check_branch
        %1144 = sbr.rel (%p1142) target = $region40
      $region39: #{dt_forward.110} parent=27 // pred_region
        %s1145 = smul.u32 64, %s20
      $region40: #{dt_forward.110} parent=27 // pred_fallthru
        _
      // Predicated region
      $region41: #{dt_forward.110} parent=27 // pred_check
        %p1146 = pneg %p122
      $region42: #{dt_forward.110} parent=27 // pred_check_branch
        %1148 = sbr.rel (%p1146) target = $region44
      $region43: #{dt_forward.110} parent=27 // pred_region
        _
      $region44: #{dt_forward.110} parent=27 // pred_fallthru
        _
    $region28: #{dt_forward.110} parent=5 // pred_fallthru
      _
    %p1149 = scmp.le.s32.totalorder 2, %s10
    // Predicated region
    $region45: #{dt_forward.110} parent=5 // pred_check
      %p1150 = pneg %p1149
    $region46: #{dt_forward.110} parent=5 // pred_check_branch
      %1152 = sbr.rel (%p1150) target = $region48
    $region47: #{dt_forward.110} parent=5 // pred_region
      %s1153 = ssub.s32 %s10, 2
      // Predicated region
      $region49: #{dt_forward.110} parent=47 // pred_check
        %p1154 = pneg %p102
      $region50: #{dt_forward.110} parent=47 // pred_check_branch
        %1156 = sbr.rel (%p1154) target = $region52
      $region51: #{dt_forward.110} parent=47 // pred_region
        %s1157 = smul.u32 64, %s22
        %p1158 = scmp.lt.s32.totalorder %s21, 1
        %s1159 = scalar_select %p1158, %s21, 1
        %p1160 = scmp.lt.s32.totalorder %s1157, 127
        %s1161 = scalar_select %p1160, %s1157, 127
        %s1162 = smul.addr %s1159, 128
        %s1163 = sadd.s32 %s1161, %s1162
        %s1164 = smul.addr %s1163, 8
        %s1165 = scalar_lea.vmem %s2, %s1164
      $region52: #{dt_forward.110} parent=47 // pred_fallthru
        _
      // Predicated region
      $region53: #{dt_forward.110} parent=47 // pred_check
        %p1166 = pneg %p128
      $region54: #{dt_forward.110} parent=47 // pred_check_branch
        %1168 = sbr.rel (%p1166) target = $region56
      $region55: #{dt_forward.110} parent=47 // pred_region
        %p1169 = scmp.lt.s32.totalorder %s21, 1
        %s1170 = scalar_select %p1169, %s21, 1
        %s1171 = smul.addr %s1170, 8
        %s1172 = scalar_lea.vmem %s3, %s1171
      $region56: #{dt_forward.110} parent=47 // pred_fallthru
        _
    $region48: #{dt_forward.110} parent=5 // pred_fallthru
      _
  $region6: #{dt_forward.110} parent=0 // loop_footer
    %s14 = sadd.s32 1, %s10
  $region7: #{dt_forward.110} parent=0 // loop_footer_branch
    %9 = sbr.rel target = $region3
  $region8: #{dt_forward.110} parent=0 // loop_exit
    _

// kernel: dt_forward.80
$region0: #{dt_forward.80}
  #allocation0 [shape = 'u32[]', space=smem, size = 0x4, offset = 0x4, fixed_abs, tag = 'smem constant byte address 0x4 - core index']
  #allocation1 [shape = 'u32[144,128]{1,0:T(1,128)}', space=vmem, size = 0x12000, scoped, tag = 'internal scratch']
  %s0 = inlined_call_operand.vmem [shape: bf16[1,18,36], index: 0, kind: input, shape index: {}]
  %s1 = inlined_call_operand.vmem [shape: bf16[36,128], index: 1, kind: input, shape index: {}]
  %s2 = inlined_call_operand.vmem [shape: f32[1,18,128], index: 2, kind: output, shape index: {0}]
  %s3 = inlined_call_operand.vmem [shape: f32[1,8,128], index: 3, kind: output, shape index: {1}]
  %4 = xla_tuple %s2, %s3
  %s5 = sld [smem:[#allocation0]]
  $region34: #{dt_forward.80} parent=0
    _
  %s7 = ssub.s32 1, %s5
  %s8 = scalar_select 0, %s7, %s5
  // Predicated region
  $region2: #{dt_forward.80} parent=0 // pred_check
    _
  $region3: #{dt_forward.80} parent=0 // pred_check_branch
    %10 = sbr.rel (0) target = $region5
  $region4: #{dt_forward.80} parent=0 // pred_region
    _
  $region5: #{dt_forward.80} parent=0 // pred_fallthru
    _
  // Predicated region
  $region6: #{dt_forward.80} parent=0 // pred_check
    _
  $region7: #{dt_forward.80} parent=0 // pred_check_branch
    %12 = sbr.rel (0) target = $region9
  $region8: #{dt_forward.80} parent=0 // pred_region
    _
  $region9: #{dt_forward.80} parent=0 // pred_fallthru
    _
  %v14 = vld [vmem:[%s0] sm:$0xf]
  %v15 = vld [vmem:[%s0 + $0x4] sm:$0xf]
  %v16 = vld [vmem:[%s0 + $0x8] sm:$0x1]
  %v17 = vld [vmem:[%s1] sm:$0xf]
  %v18 = vld [vmem:[%s1 + $0x4] sm:$0xf]
  %v19 = vld [vmem:[%s1 + $0x8] sm:$0xf]
  %v20 = vld [vmem:[%s1 + $0xc] sm:$0xf]
  %v21 = vld [vmem:[%s1 + $0x10] sm:$0x3]
  %v25 = vunpack.c.l.b16 %v14
  %v26 = vunpack.c.l.b16 %v15
  %v27 = vunpack.c.l.b16 %v16
  %v28 = vpack.c.b16 %v26, %v25
  %v29 = vpack.c.b16 %v27, %v27
  %v35 = vunpack.c.l.b16 %v17
  %v36 = vunpack.c.l.b16 %v18
  %v37 = vunpack.c.l.b16 %v19
  %v38 = vunpack.c.l.b16 %v20
  %v39 = vunpack.c.l.b16 %v21
  %v40 = vpack.c.b16 %v36, %v35
  %v41 = vpack.c.b16 %v38, %v37
  %v42 = vpack.c.b16 %v39, %v39
  %vm45 = vcmask 293888
  %v47 = vsel %vm45, %v28, 0
  %v50 = vsel %vm45, %v29, 0
  %vm52 = vcmask 1041408
  %v54 = vsel %vm52, %v42, 0
  %56 = vmatprep.subr.bf16.mxu0 0
  %57 = vmatpush1.bf16.msra.mxu0 %v40
  %58 = vmatprep.subr.bf16.mxu0 0
  %59 = vmatpush1.bf16.msra.mxu0 %v41
  %60 = vmatprep.subr.bf16.mxu0 0
  %61 = vmatpush1.bf16.msra.mxu0 %v54
  %62 = vmatprep.subr.bf16.mxu0 0
  %63 = vmatpush1.bf16.msra.mxu0 0
  %64 = vmatprep.subr.bf16.mxu0 0
  %65 = vmatpush1.bf16.msra.mxu0 0
  %66 = vmatprep.subr.bf16.mxu0 0
  %67 = vmatpush1.bf16.msra.mxu0 0
  %68 = vmatprep.subr.bf16.mxu0 0
  %69 = vmatpush1.bf16.msra.mxu0 0
  %70 = vmatprep.subr.bf16.mxu0 0
  %71 = vmatpush1.bf16.msra.mxu0 0
  %72 = vmatprep.subr.bf16.mxu0 0
  %73 = vmatpush1.bf16.msra.mxu0 0
  %74 = vmatprep.subr.bf16.mxu0 0
  %75 = vmatpush1.bf16.msra.mxu0 0
  %76 = vmatprep.subr.bf16.mxu0 0
  %77 = vmatpush1.bf16.msra.mxu0 0
  %78 = vmatprep.subr.bf16.mxu0 0
  %79 = vmatpush1.bf16.msra.mxu0 0
  %80 = vmatprep.subr.bf16.mxu0 0
  %81 = vmatpush1.bf16.msra.mxu0 0
  %82 = vmatprep.subr.bf16.mxu0 0
  %83 = vmatpush1.bf16.msra.mxu0 0
  %84 = vmatprep.subr.bf16.mxu0 0
  %85 = vmatpush1.bf16.msra.mxu0 0
  %86 = vmatprep.subr.bf16.mxu0 0
  %87 = vmatpush1.bf16.msra.mxu0 0
  %88 = vmatprep.mubr.bf16.mxu0 0
  %89 = vmatmul.mubr.bf16.gmra.mrb[0].mxu0 %v47
  %v90 = vpop.f32.mrb[0].mxu0
  %v91 = vadd.f32 0.0, %v90
  %v92 = vpop.f32.mrb[0].mxu0
  %v93 = vpop.f32.mrb[0].mxu0
  %v94 = vadd.f32 0.0, %v93
  %v95 = vpop.f32.mrb[0].mxu0
  %96 = vmatprep.mubr.bf16.mxu0 0
  %97 = vmatmul.mubr.bf16.gmra.mrb[0].mxu0 %v50
  %v98 = vpop.f32.mrb[0].mxu0
  %v99 = vadd.f32 0.0, %v98
  %v100 = vpop.f32.mrb[0].mxu0
  %v101 = vpop.f32.mrb[0].mxu0
  %v102 = vpop.f32.mrb[0].mxu0
  %103 = vdwg.mxu0
  %104 = vst [vmem:[%s2] sm:$0xff] %v91
  %105 = vst [vmem:[%s2 + $0x8] sm:$0xff] %v94
  %106 = vst [vmem:[%s2 + $0x10] sm:$0x3] %v99
  %v107 = vadd.f32 %v91, %v94
  %v108 = vsel %vm52, %v99, 0.0
  %v109 = vadd.f32 %v107, %v108
  %v110 = vrot.slane %v109, 4
  %v111 = vadd.f32 %v109, %v110
  %v112 = vrot.slane %v111, 2
  %v113 = vadd.f32 %v111, %v112
  %v114 = vrot.slane %v113, 1
  %v115 = vadd.f32 %v113, %v114
  %v116 = vmul.f32 %v91, %v91
  %v117 = vmul.f32 %v94, %v94
  %v118 = vmul.f32 %v99, %v99
  %v119 = vadd.f32 %v116, %v117
  %v120 = vsel %vm52, %v118, 0.0
  %v121 = vadd.f32 %v119, %v120
  %v122 = vrot.slane %v121, 4
  %v123 = vadd.f32 %v121, %v122
  %v124 = vrot.slane %v123, 2
  %v125 = vadd.f32 %v123, %v124
  %v126 = vrot.slane %v125, 1
  %v127 = vadd.f32 %v125, %v126
  %vm128 = vcmask 1040384
  %v129 = vsel %vm128, %v115, %v127
  %v130 = vsel %vm52, %v129, 0.0
  %p131 = scmp.eq.s32.totalorder 0, 0
  // Predicated region
  $region10: #{dt_forward.80} parent=0 // pred_check
    %p132 = pneg %p131
  $region11: #{dt_forward.80} parent=0 // pred_check_branch
    %134 = sbr.rel (%p132) target = $region13
  $region12: #{dt_forward.80} parent=0 // pred_region
    %135 = vst [vmem:[%s3] sm:$0xff] %v130
  $region13: #{dt_forward.80} parent=0 // pred_fallthru
    _
  %p136 = scmp.gt.s32.totalorder 0, 0
  // Predicated region
  $region14: #{dt_forward.80} parent=0 // pred_check
    %p137 = pneg %p136
  $region15: #{dt_forward.80} parent=0 // pred_check_branch
    %139 = sbr.rel (%p137) target = $region17
  $region16: #{dt_forward.80} parent=0 // pred_region
    %v140 = vld [vmem:[%s3] sm:$0xff]
    %v141 = vadd.f32 %v140, %v130
    %142 = vst [vmem:[%s3] sm:$0xff] %v141
  $region17: #{dt_forward.80} parent=0 // pred_fallthru
    _
  // Predicated region
  $region18: #{dt_forward.80} parent=0 // pred_check
    _
  $region19: #{dt_forward.80} parent=0 // pred_check_branch
    %144 = sbr.rel (0) target = $region21
  $region20: #{dt_forward.80} parent=0 // pred_region
    _
  $region21: #{dt_forward.80} parent=0 // pred_fallthru
    _
  // Predicated region
  $region22: #{dt_forward.80} parent=0 // pred_check
    _
  $region23: #{dt_forward.80} parent=0 // pred_check_branch
    %146 = sbr.rel (0) target = $region25
  $region24: #{dt_forward.80} parent=0 // pred_region
    _
  $region25: #{dt_forward.80} parent=0 // pred_fallthru
    _
  // Predicated region
  $region26: #{dt_forward.80} parent=0 // pred_check
    _
  $region27: #{dt_forward.80} parent=0 // pred_check_branch
    %148 = sbr.rel (0) target = $region29
  $region28: #{dt_forward.80} parent=0 // pred_region
    _
  $region29: #{dt_forward.80} parent=0 // pred_fallthru
    _
  // Predicated region
  $region30: #{dt_forward.80} parent=0 // pred_check
    _
  $region31: #{dt_forward.80} parent=0 // pred_check_branch
    %150 = sbr.rel (0) target = $region33
  $region32: #{dt_forward.80} parent=0 // pred_region
    _
  $region33: #{dt_forward.80} parent=0 // pred_fallthru
    _

// kernel: dt_forward.81
$region0: #{dt_forward.81}
  #allocation0 [shape = 'u32[]', space=smem, size = 0x4, offset = 0x4, fixed_abs, tag = 'smem constant byte address 0x4 - core index']
  #allocation1 [shape = 'u32[144,128]{1,0:T(1,128)}', space=vmem, size = 0x12000, scoped, tag = 'internal scratch']
  %s0 = inlined_call_operand.vmem [shape: f32[1,18,128], index: 0, kind: input, shape index: {}, may-alias: {0,4}]
  %s1 = inlined_call_operand.vmem [shape: f32[1,8,128], index: 1, kind: input, shape index: {}]
  %s2 = inlined_call_operand.vmem [shape: f32[1,128], index: 2, kind: input, shape index: {}]
  %s3 = inlined_call_operand.vmem [shape: f32[1,128], index: 3, kind: input, shape index: {}]
  %s4 = inlined_call_operand.vmem [shape: f32[1,18,128], index: 4, kind: output, shape index: {}, may-alias: {0,4}]
  %s5 = sld [smem:[#allocation0]]
  $region26: #{dt_forward.81} parent=0
    _
  %s7 = ssub.s32 1, %s5
  %s8 = scalar_select 0, %s7, %s5
  // Predicated region
  $region2: #{dt_forward.81} parent=0 // pred_check
    _
  $region3: #{dt_forward.81} parent=0 // pred_check_branch
    %10 = sbr.rel (0) target = $region5
  $region4: #{dt_forward.81} parent=0 // pred_region
    _
  $region5: #{dt_forward.81} parent=0 // pred_fallthru
    _
  // Predicated region
  $region6: #{dt_forward.81} parent=0 // pred_check
    _
  $region7: #{dt_forward.81} parent=0 // pred_check_branch
    %12 = sbr.rel (0) target = $region9
  $region8: #{dt_forward.81} parent=0 // pred_region
    _
  $region9: #{dt_forward.81} parent=0 // pred_fallthru
    _
  // Predicated region
  $region10: #{dt_forward.81} parent=0 // pred_check
    _
  $region11: #{dt_forward.81} parent=0 // pred_check_branch
    %14 = sbr.rel (0) target = $region13
  $region12: #{dt_forward.81} parent=0 // pred_region
    _
  $region13: #{dt_forward.81} parent=0 // pred_fallthru
    _
  // Predicated region
  $region14: #{dt_forward.81} parent=0 // pred_check
    _
  $region15: #{dt_forward.81} parent=0 // pred_check_branch
    %16 = sbr.rel (0) target = $region17
  $region16: #{dt_forward.81} parent=0 // pred_region
    _
  $region17: #{dt_forward.81} parent=0 // pred_fallthru
    _
  %v17 = vld [vmem:[%s0] sm:$0xff]
  %v18 = vld [vmem:[%s0 + $0x8] sm:$0xff]
  %v19 = vld [vmem:[%s0 + $0x10] sm:$0x3]
  %v20 = vld [vmem:[%s1] sm:$0xff]
  %v21 = vmul.f32 %v20, 0.055555556
  %v22 = vmul.f32 %v21, %v21
  %v24 = vrot.slane %v22, 7
  %v26 = vsub.f32 %v21, %v24
  %v27 = vadd.f32 %v26, 0.001
  %v28 = vrsqrt.pop %v27
  %v29 = vlaneseq
  %v30 = vshrl.u32 %v29, 7
  %v31 = vsub.s32 0, %v30
  %v32 = vrot.slane %v21, %v31
  %v33 = vsub.f32 %v17, %v32
  %v34 = vsub.f32 %v18, %v32
  %v35 = vsub.f32 %v19, %v32
  %v36 = vld [vmem:[%s2] sm:$0x1]
  %v38 = vlaneseq
  %v39 = vshrl.u32 %v38, 7
  %v40 = vsub.s32 0, %v39
  %v41 = vrot.slane %v36, %v40
  %v43 = vmul.f32 %v28, %v41
  %v44 = vlaneseq
  %v45 = vshrl.u32 %v44, 7
  %v46 = vsub.s32 1, %v45
  %v47 = vrot.slane %v43, %v46
  %v48 = vmul.f32 %v33, %v47
  %v49 = vmul.f32 %v34, %v47
  %v50 = vmul.f32 %v35, %v47
  %v51 = vld [vmem:[%s3] sm:$0x1]
  %v53 = vlaneseq
  %v54 = vshrl.u32 %v53, 7
  %v55 = vsub.s32 0, %v54
  %v56 = vrot.slane %v51, %v55
  %v58 = vadd.f32 %v48, %v56
  %v59 = vadd.f32 %v49, %v56
  %v60 = vadd.f32 %v50, %v56
  %vm61 = vcmp.ge.f32.partialorder %v58, 0.0
  %vm62 = vcmp.ge.f32.partialorder %v59, 0.0
  %vm63 = vcmp.ge.f32.partialorder %v60, 0.0
  %v64 = vmul.f32 %v58, 0.1
  %v65 = vmul.f32 %v59, 0.1
  %v66 = vmul.f32 %v60, 0.1
  %v67 = vsel %vm61, %v58, %v64
  %v68 = vsel %vm62, %v59, %v65
  %v69 = vsel %vm63, %v60, %v66
  %70 = vst [vmem:[%s4] sm:$0xff] %v67
  %71 = vst [vmem:[%s4 + $0x8] sm:$0xff] %v68
  %72 = vst [vmem:[%s4 + $0x10] sm:$0x3] %v69
  // Predicated region
  $region18: #{dt_forward.81} parent=0 // pred_check
    _
  $region19: #{dt_forward.81} parent=0 // pred_check_branch
    %74 = sbr.rel (0) target = $region21
  $region20: #{dt_forward.81} parent=0 // pred_region
    _
  $region21: #{dt_forward.81} parent=0 // pred_fallthru
    _
  // Predicated region
  $region22: #{dt_forward.81} parent=0 // pred_check
    _
  $region23: #{dt_forward.81} parent=0 // pred_check_branch
    %76 = sbr.rel (0) target = $region25
  $region24: #{dt_forward.81} parent=0 // pred_region
    _
  $region25: #{dt_forward.81} parent=0 // pred_fallthru
    _

// kernel: dt_forward.82
$region0: #{dt_forward.82}
  #allocation0 [shape = 'u32[]', space=smem, size = 0x4, offset = 0x4, fixed_abs, tag = 'smem constant byte address 0x4 - core index']
  #allocation1 [shape = 'u32[144,128]{1,0:T(1,128)}', space=vmem, size = 0x12000, scoped, tag = 'internal scratch']
  %s0 = inlined_call_operand.vmem [shape: bf16[1,18,72], index: 0, kind: input, shape index: {}]
  %s1 = inlined_call_operand.vmem [shape: bf16[72,128], index: 1, kind: input, shape index: {}]
  %s2 = inlined_call_operand.vmem [shape: f32[1,18,128], index: 2, kind: output, shape index: {0}]
  %s3 = inlined_call_operand.vmem [shape: f32[1,8,128], index: 3, kind: output, shape index: {1}]
  %4 = xla_tuple %s2, %s3
  %s5 = sld [smem:[#allocation0]]
  $region34: #{dt_forward.82} parent=0
    _
  %s7 = ssub.s32 1, %s5
  %s8 = scalar_select 0, %s7, %s5
  // Predicated region
  $region2: #{dt_forward.82} parent=0 // pred_check
    _
  $region3: #{dt_forward.82} parent=0 // pred_check_branch
    %10 = sbr.rel (0) target = $region5
  $region4: #{dt_forward.82} parent=0 // pred_region
    _
  $region5: #{dt_forward.82} parent=0 // pred_fallthru
    _
  // Predicated region
  $region6: #{dt_forward.82} parent=0 // pred_check
    _
  $region7: #{dt_forward.82} parent=0 // pred_check_branch
    %12 = sbr.rel (0) target = $region9
  $region8: #{dt_forward.82} parent=0 // pred_region
    _
  $region9: #{dt_forward.82} parent=0 // pred_fallthru
    _
  %v14 = vld [vmem:[%s0] sm:$0xf]
  %v15 = vld [vmem:[%s0 + $0x4] sm:$0xf]
  %v16 = vld [vmem:[%s0 + $0x8] sm:$0x1]
  %v17 = vld [vmem:[%s1] sm:$0xf]
  %v18 = vld [vmem:[%s1 + $0x4] sm:$0xf]
  %v19 = vld [vmem:[%s1 + $0x8] sm:$0xf]
  %v20 = vld [vmem:[%s1 + $0xc] sm:$0xf]
  %v21 = vld [vmem:[%s1 + $0x10] sm:$0xf]
  %v22 = vld [vmem:[%s1 + $0x14] sm:$0xf]
  %v23 = vld [vmem:[%s1 + $0x18] sm:$0xf]
  %v24 = vld [vmem:[%s1 + $0x1c] sm:$0xf]
  %v25 = vld [vmem:[%s1 + $0x20] sm:$0xf]
  %v29 = vunpack.c.l.b16 %v14
  %v30 = vunpack.c.l.b16 %v15
  %v31 = vunpack.c.l.b16 %v16
  %v32 = vpack.c.b16 %v30, %v29
  %v33 = vpack.c.b16 %v31, %v31
  %v43 = vunpack.c.l.b16 %v17
  %v44 = vunpack.c.l.b16 %v18
  %v45 = vunpack.c.l.b16 %v19
  %v46 = vunpack.c.l.b16 %v20
  %v47 = vunpack.c.l.b16 %v21
  %v48 = vunpack.c.l.b16 %v22
  %v49 = vunpack.c.l.b16 %v23
  %v50 = vunpack.c.l.b16 %v24
  %v51 = vunpack.c.l.b16 %v25
  %v52 = vpack.c.b16 %v44, %v43
  %v53 = vpack.c.b16 %v46, %v45
  %v54 = vpack.c.b16 %v48, %v47
  %v55 = vpack.c.b16 %v50, %v49
  %v56 = vpack.c.b16 %v51, %v51
  %vm61 = vcmask 588800
  %v63 = vsel %vm61, %v32, 0
  %v66 = vsel %vm61, %v33, 0
  %vm68 = vcmask 1043456
  %v70 = vsel %vm68, %v56, 0
  %72 = vmatprep.subr.bf16.mxu0 0
  %73 = vmatpush1.bf16.msra.mxu0 %v52
  %74 = vmatprep.subr.bf16.mxu0 0
  %75 = vmatpush1.bf16.msra.mxu0 %v53
  %76 = vmatprep.subr.bf16.mxu0 0
  %77 = vmatpush1.bf16.msra.mxu0 %v54
  %78 = vmatprep.subr.bf16.mxu0 0
  %79 = vmatpush1.bf16.msra.mxu0 %v55
  %80 = vmatprep.subr.bf16.mxu0 0
  %81 = vmatpush1.bf16.msra.mxu0 %v70
  %82 = vmatprep.subr.bf16.mxu0 0
  %83 = vmatpush1.bf16.msra.mxu0 0
  %84 = vmatprep.subr.bf16.mxu0 0
  %85 = vmatpush1.bf16.msra.mxu0 0
  %86 = vmatprep.subr.bf16.mxu0 0
  %87 = vmatpush1.bf16.msra.mxu0 0
  %88 = vmatprep.subr.bf16.mxu0 0
  %89 = vmatpush1.bf16.msra.mxu0 0
  %90 = vmatprep.subr.bf16.mxu0 0
  %91 = vmatpush1.bf16.msra.mxu0 0
  %92 = vmatprep.subr.bf16.mxu0 0
  %93 = vmatpush1.bf16.msra.mxu0 0
  %94 = vmatprep.subr.bf16.mxu0 0
  %95 = vmatpush1.bf16.msra.mxu0 0
  %96 = vmatprep.subr.bf16.mxu0 0
  %97 = vmatpush1.bf16.msra.mxu0 0
  %98 = vmatprep.subr.bf16.mxu0 0
  %99 = vmatpush1.bf16.msra.mxu0 0
  %100 = vmatprep.subr.bf16.mxu0 0
  %101 = vmatpush1.bf16.msra.mxu0 0
  %102 = vmatprep.subr.bf16.mxu0 0
  %103 = vmatpush1.bf16.msra.mxu0 0
  %104 = vmatprep.mubr.bf16.mxu0 0
  %105 = vmatmul.mubr.bf16.gmra.mrb[0].mxu0 %v63
  %v106 = vpop.f32.mrb[0].mxu0
  %v107 = vadd.f32 0.0, %v106
  %v108 = vpop.f32.mrb[0].mxu0
  %v109 = vpop.f32.mrb[0].mxu0
  %v110 = vadd.f32 0.0, %v109
  %v111 = vpop.f32.mrb[0].mxu0
  %112 = vmatprep.mubr.bf16.mxu0 0
  %113 = vmatmul.mubr.bf16.gmra.mrb[0].mxu0 %v66
  %v114 = vpop.f32.mrb[0].mxu0
  %v115 = vadd.f32 0.0, %v114
  %v116 = vpop.f32.mrb[0].mxu0
  %v117 = vpop.f32.mrb[0].mxu0
  %v118 = vpop.f32.mrb[0].mxu0
  %119 = vdwg.mxu0
  %120 = vst [vmem:[%s2] sm:$0xff] %v107
  %121 = vst [vmem:[%s2 + $0x8] sm:$0xff] %v110
  %122 = vst [vmem:[%s2 + $0x10] sm:$0x3] %v115
  %v123 = vadd.f32 %v107, %v110
  %vm124 = vcmask 1041408
  %v125 = vsel %vm124, %v115, 0.0
  %v126 = vadd.f32 %v123, %v125
  %v127 = vrot.slane %v126, 4
  %v128 = vadd.f32 %v126, %v127
  %v129 = vrot.slane %v128, 2
  %v130 = vadd.f32 %v128, %v129
  %v131 = vrot.slane %v130, 1
  %v132 = vadd.f32 %v130, %v131
  %v133 = vmul.f32 %v107, %v107
  %v134 = vmul.f32 %v110, %v110
  %v135 = vmul.f32 %v115, %v115
  %v136 = vadd.f32 %v133, %v134
  %v137 = vsel %vm124, %v135, 0.0
  %v138 = vadd.f32 %v136, %v137
  %v139 = vrot.slane %v138, 4
  %v140 = vadd.f32 %v138, %v139
  %v141 = vrot.slane %v140, 2
  %v142 = vadd.f32 %v140, %v141
  %v143 = vrot.slane %v142, 1
  %v144 = vadd.f32 %v142, %v143
  %vm145 = vcmask 1040384
  %v146 = vsel %vm145, %v132, %v144
  %v147 = vsel %vm124, %v146, 0.0
  %p148 = scmp.eq.s32.totalorder 0, 0
  // Predicated region
  $region10: #{dt_forward.82} parent=0 // pred_check
    %p149 = pneg %p148
  $region11: #{dt_forward.82} parent=0 // pred_check_branch
    %151 = sbr.rel (%p149) target = $region13
  $region12: #{dt_forward.82} parent=0 // pred_region
    %152 = vst [vmem:[%s3] sm:$0xff] %v147
  $region13: #{dt_forward.82} parent=0 // pred_fallthru
    _
  %p153 = scmp.gt.s32.totalorder 0, 0
  // Predicated region
  $region14: #{dt_forward.82} parent=0 // pred_check
    %p154 = pneg %p153
  $region15: #{dt_forward.82} parent=0 // pred_check_branch
    %156 = sbr.rel (%p154) target = $region17
  $region16: #{dt_forward.82} parent=0 // pred_region
    %v157 = vld [vmem:[%s3] sm:$0xff]
    %v158 = vadd.f32 %v157, %v147
    %159 = vst [vmem:[%s3] sm:$0xff] %v158
  $region17: #{dt_forward.82} parent=0 // pred_fallthru
    _
  // Predicated region
  $region18: #{dt_forward.82} parent=0 // pred_check
    _
  $region19: #{dt_forward.82} parent=0 // pred_check_branch
    %161 = sbr.rel (0) target = $region21
  $region20: #{dt_forward.82} parent=0 // pred_region
    _
  $region21: #{dt_forward.82} parent=0 // pred_fallthru
    _
  // Predicated region
  $region22: #{dt_forward.82} parent=0 // pred_check
    _
  $region23: #{dt_forward.82} parent=0 // pred_check_branch
    %163 = sbr.rel (0) target = $region25
  $region24: #{dt_forward.82} parent=0 // pred_region
    _
  $region25: #{dt_forward.82} parent=0 // pred_fallthru
    _
  // Predicated region
  $region26: #{dt_forward.82} parent=0 // pred_check
    _
  $region27: #{dt_forward.82} parent=0 // pred_check_branch
    %165 = sbr.rel (0) target = $region29
  $region28: #{dt_forward.82} parent=0 // pred_region
    _
  $region29: #{dt_forward.82} parent=0 // pred_fallthru
    _
  // Predicated region
  $region30: #{dt_forward.82} parent=0 // pred_check
    _
  $region31: #{dt_forward.82} parent=0 // pred_check_branch
    %167 = sbr.rel (0) target = $region33
  $region32: #{dt_forward.82} parent=0 // pred_region
    _
  $region33: #{dt_forward.82} parent=0 // pred_fallthru
    _

// kernel: dt_forward.87
$region0: #{dt_forward.87}
  #allocation0 [shape = 'u32[]', space=smem, size = 0x4, offset = 0x4, fixed_abs, tag = 'smem constant byte address 0x4 - core index']
  #allocation1 [shape = 'u32[144,128]{1,0:T(1,128)}', space=vmem, size = 0x12000, scoped, tag = 'internal scratch']
  %s0 = inlined_call_operand.vmem [shape: f32[1,2,128], index: 0, kind: input, shape index: {}, may-alias: {0,4}]
  %s1 = inlined_call_operand.vmem [shape: f32[1,8,128], index: 1, kind: input, shape index: {}]
  %s2 = inlined_call_operand.vmem [shape: f32[1,128], index: 2, kind: input, shape index: {}]
  %s3 = inlined_call_operand.vmem [shape: f32[1,128], index: 3, kind: input, shape index: {}]
  %s4 = inlined_call_operand.vmem [shape: f32[1,2,128], index: 4, kind: output, shape index: {}, may-alias: {0,4}]
  %s5 = sld [smem:[#allocation0]]
  $region26: #{dt_forward.87} parent=0
    _
  %s7 = ssub.s32 1, %s5
  %s8 = scalar_select 0, %s7, %s5
  // Predicated region
  $region2: #{dt_forward.87} parent=0 // pred_check
    _
  $region3: #{dt_forward.87} parent=0 // pred_check_branch
    %10 = sbr.rel (0) target = $region5
  $region4: #{dt_forward.87} parent=0 // pred_region
    _
  $region5: #{dt_forward.87} parent=0 // pred_fallthru
    _
  // Predicated region
  $region6: #{dt_forward.87} parent=0 // pred_check
    _
  $region7: #{dt_forward.87} parent=0 // pred_check_branch
    %12 = sbr.rel (0) target = $region9
  $region8: #{dt_forward.87} parent=0 // pred_region
    _
  $region9: #{dt_forward.87} parent=0 // pred_fallthru
    _
  // Predicated region
  $region10: #{dt_forward.87} parent=0 // pred_check
    _
  $region11: #{dt_forward.87} parent=0 // pred_check_branch
    %14 = sbr.rel (0) target = $region13
  $region12: #{dt_forward.87} parent=0 // pred_region
    _
  $region13: #{dt_forward.87} parent=0 // pred_fallthru
    _
  // Predicated region
  $region14: #{dt_forward.87} parent=0 // pred_check
    _
  $region15: #{dt_forward.87} parent=0 // pred_check_branch
    %16 = sbr.rel (0) target = $region17
  $region16: #{dt_forward.87} parent=0 // pred_region
    _
  $region17: #{dt_forward.87} parent=0 // pred_fallthru
    _
  %v17 = vld [vmem:[%s0] sm:$0x3]
  %v18 = vld [vmem:[%s1] sm:$0xff]
  %v19 = vmul.f32 %v18, 0.5
  %v20 = vmul.f32 %v19, %v19
  %v22 = vrot.slane %v20, 7
  %v24 = vsub.f32 %v19, %v22
  %v25 = vadd.f32 %v24, 0.001
  %v26 = vrsqrt.pop %v25
  %v27 = vlaneseq
  %v28 = vshrl.u32 %v27, 7
  %v29 = vsub.s32 0, %v28
  %v30 = vrot.slane %v19, %v29
  %v31 = vsub.f32 %v17, %v30
  %v32 = vld [vmem:[%s2] sm:$0x1]
  %v34 = vlaneseq
  %v35 = vshrl.u32 %v34, 7
  %v36 = vsub.s32 0, %v35
  %v37 = vrot.slane %v32, %v36
  %v39 = vmul.f32 %v26, %v37
  %v40 = vlaneseq
  %v41 = vshrl.u32 %v40, 7
  %v42 = vsub.s32 1, %v41
  %v43 = vrot.slane %v39, %v42
  %v44 = vmul.f32 %v31, %v43
  %v45 = vld [vmem:[%s3] sm:$0x1]
  %v47 = vlaneseq
  %v48 = vshrl.u32 %v47, 7
  %v49 = vsub.s32 0, %v48
  %v50 = vrot.slane %v45, %v49
  %v52 = vadd.f32 %v44, %v50
  %vm53 = vcmp.ge.f32.partialorder %v52, 0.0
  %v54 = vmul.f32 %v52, 0.1
  %v55 = vsel %vm53, %v52, %v54
  %56 = vst [vmem:[%s4] sm:$0x3] %v55
  // Predicated region
  $region18: #{dt_forward.87} parent=0 // pred_check
    _
  $region19: #{dt_forward.87} parent=0 // pred_check_branch
    %58 = sbr.rel (0) target = $region21
  $region20: #{dt_forward.87} parent=0 // pred_region
    _
  $region21: #{dt_forward.87} parent=0 // pred_fallthru
    _
  // Predicated region
  $region22: #{dt_forward.87} parent=0 // pred_check
    _
  $region23: #{dt_forward.87} parent=0 // pred_check_branch
    %60 = sbr.rel (0) target = $region25
  $region24: #{dt_forward.87} parent=0 // pred_region
    _
  $region25: #{dt_forward.87} parent=0 // pred_fallthru
    _

// kernel: dt_forward.86
$region0: #{dt_forward.86}
  #allocation0 [shape = 'u32[]', space=smem, size = 0x4, offset = 0x4, fixed_abs, tag = 'smem constant byte address 0x4 - core index']
  #allocation1 [shape = 'u32[144,128]{1,0:T(1,128)}', space=vmem, size = 0x12000, scoped, tag = 'internal scratch']
  %s0 = inlined_call_operand.vmem [shape: bf16[1,2,180], index: 0, kind: input, shape index: {}]
  %s1 = inlined_call_operand.vmem [shape: bf16[180,128], index: 1, kind: input, shape index: {}]
  %s2 = inlined_call_operand.vmem [shape: f32[1,2,128], index: 2, kind: output, shape index: {0}]
  %s3 = inlined_call_operand.vmem [shape: f32[1,8,128], index: 3, kind: output, shape index: {1}]
  %4 = xla_tuple %s2, %s3
  %s5 = sld [smem:[#allocation0]]
  $region34: #{dt_forward.86} parent=0
    _
  %s7 = ssub.s32 1, %s5
  %s8 = scalar_select 0, %s7, %s5
  // Predicated region
  $region2: #{dt_forward.86} parent=0 // pred_check
    _
  $region3: #{dt_forward.86} parent=0 // pred_check_branch
    %10 = sbr.rel (0) target = $region5
  $region4: #{dt_forward.86} parent=0 // pred_region
    _
  $region5: #{dt_forward.86} parent=0 // pred_fallthru
    _
  // Predicated region
  $region6: #{dt_forward.86} parent=0 // pred_check
    _
  $region7: #{dt_forward.86} parent=0 // pred_check_branch
    %12 = sbr.rel (0) target = $region9
  $region8: #{dt_forward.86} parent=0 // pred_region
    _
  $region9: #{dt_forward.86} parent=0 // pred_fallthru
    _
  %v14 = vld [vmem:[%s0] sm:$0x3]
  %v15 = vld [vmem:[%s1] sm:$0xf]
  %v16 = vld [vmem:[%s1 + $0x4] sm:$0xf]
  %v17 = vld [vmem:[%s1 + $0x8] sm:$0xf]
  %v18 = vld [vmem:[%s1 + $0xc] sm:$0xf]
  %v19 = vld [vmem:[%s1 + $0x10] sm:$0xf]
  %v20 = vld [vmem:[%s1 + $0x14] sm:$0xf]
  %v21 = vld [vmem:[%s1 + $0x18] sm:$0xf]
  %v22 = vld [vmem:[%s1 + $0x1c] sm:$0xf]
  %v23 = vld [vmem:[%s1 + $0x20] sm:$0xf]
  %v24 = vld [vmem:[%s1 + $0x24] sm:$0xf]
  %v25 = vld [vmem:[%s1 + $0x28] sm:$0xf]
  %v26 = vld [vmem:[%s1 + $0x2c] sm:$0xf]
  %v27 = vld [vmem:[%s1 + $0x30] sm:$0xf]
  %v28 = vld [vmem:[%s1 + $0x34] sm:$0xf]
  %v29 = vld [vmem:[%s1 + $0x38] sm:$0xf]
  %v30 = vld [vmem:[%s1 + $0x3c] sm:$0xf]
  %v31 = vld [vmem:[%s1 + $0x40] sm:$0xf]
  %v32 = vld [vmem:[%s1 + $0x44] sm:$0xf]
  %v33 = vld [vmem:[%s1 + $0x48] sm:$0xf]
  %v34 = vld [vmem:[%s1 + $0x4c] sm:$0xf]
  %v35 = vld [vmem:[%s1 + $0x50] sm:$0xf]
  %v36 = vld [vmem:[%s1 + $0x54] sm:$0xf]
  %v37 = vld [vmem:[%s1 + $0x58] sm:$0x3]
  %v40 = vunpack.c.l.s4 1966171168
  %v41 = vunpack.c.0.s8 %v40
  %v42 = vlaneseq
  %v43 = vshrl.u32 %v42, 7
  %v44 = vsub.s32 %v41, %v43
  %v45 = vrot.slane %v14, %v44
  %v46 = vcombine.high %v45, %v45
  %v48 = vunpack.c.l.s4 1966171168
  %v49 = vunpack.c.0.s8 %v48
  %v50 = vlaneseq
  %v51 = vshrl.u32 %v50, 7
  %v52 = vsub.s32 %v49, %v51
  %v53 = vrot.slane %v45, %v52
  %v55 = vunpack.c.l.s4 1966171168
  %v56 = vunpack.c.0.s8 %v55
  %v57 = vlaneseq
  %v58 = vshrl.u32 %v57, 7
  %v59 = vsub.s32 %v56, %v58
  %v60 = vrot.slane %v46, %v59
  %v85 = vunpack.c.l.b16 %v15
  %v86 = vunpack.c.l.b16 %v16
  %v87 = vunpack.c.l.b16 %v17
  %v88 = vunpack.c.l.b16 %v18
  %v89 = vunpack.c.l.b16 %v19
  %v90 = vunpack.c.l.b16 %v20
  %v91 = vunpack.c.l.b16 %v21
  %v92 = vunpack.c.l.b16 %v22
  %v93 = vunpack.c.l.b16 %v23
  %v94 = vunpack.c.l.b16 %v24
  %v95 = vunpack.c.l.b16 %v25
  %v96 = vunpack.c.l.b16 %v26
  %v97 = vunpack.c.l.b16 %v27
  %v98 = vunpack.c.l.b16 %v28
  %v99 = vunpack.c.l.b16 %v29
  %v100 = vunpack.c.l.b16 %v30
  %v101 = vunpack.c.l.b16 %v31
  %v102 = vunpack.c.l.b16 %v32
  %v103 = vunpack.c.l.b16 %v33
  %v104 = vunpack.c.l.b16 %v34
  %v105 = vunpack.c.l.b16 %v35
  %v106 = vunpack.c.l.b16 %v36
  %v107 = vunpack.c.l.b16 %v37
  %v108 = vpack.c.b16 %v86, %v85
  %v109 = vpack.c.b16 %v88, %v87
  %v110 = vpack.c.b16 %v90, %v89
  %v111 = vpack.c.b16 %v92, %v91
  %v112 = vpack.c.b16 %v94, %v93
  %v113 = vpack.c.b16 %v96, %v95
  %v114 = vpack.c.b16 %v98, %v97
  %v115 = vpack.c.b16 %v100, %v99
  %v116 = vpack.c.b16 %v102, %v101
  %v117 = vpack.c.b16 %v104, %v103
  %v118 = vpack.c.b16 %v106, %v105
  %v119 = vpack.c.b16 %v107, %v107
  %vm131 = vcmask 424960
  %v133 = vsel %vm131, %v60, 0
  %vm135 = vcmask 1041408
  %v137 = vsel %vm135, %v119, 0
  %139 = vmatprep.subr.bf16.mxu0 0
  %140 = vmatpush1.bf16.msra.mxu0 %v108
  %141 = vmatprep.subr.bf16.mxu0 0
  %142 = vmatpush1.bf16.msra.mxu0 %v109
  %143 = vmatprep.subr.bf16.mxu0 0
  %144 = vmatpush1.bf16.msra.mxu0 %v110
  %145 = vmatprep.subr.bf16.mxu0 0
  %146 = vmatpush1.bf16.msra.mxu0 %v111
  %147 = vmatprep.subr.bf16.mxu0 0
  %148 = vmatpush1.bf16.msra.mxu0 %v112
  %149 = vmatprep.subr.bf16.mxu0 0
  %150 = vmatpush1.bf16.msra.mxu0 %v113
  %151 = vmatprep.subr.bf16.mxu0 0
  %152 = vmatpush1.bf16.msra.mxu0 %v114
  %153 = vmatprep.subr.bf16.mxu0 0
  %154 = vmatpush1.bf16.msra.mxu0 %v115
  %155 = vmatprep.subr.bf16.mxu0 0
  %156 = vmatpush1.bf16.msra.mxu0 %v116
  %157 = vmatprep.subr.bf16.mxu0 0
  %158 = vmatpush1.bf16.msra.mxu0 %v117
  %159 = vmatprep.subr.bf16.mxu0 0
  %160 = vmatpush1.bf16.msra.mxu0 %v118
  %161 = vmatprep.subr.bf16.mxu0 0
  %162 = vmatpush1.bf16.msra.mxu0 %v137
  %163 = vmatprep.subr.bf16.mxu0 0
  %164 = vmatpush1.bf16.msra.mxu0 0
  %165 = vmatprep.subr.bf16.mxu0 0
  %166 = vmatpush1.bf16.msra.mxu0 0
  %167 = vmatprep.subr.bf16.mxu0 0
  %168 = vmatpush1.bf16.msra.mxu0 0
  %169 = vmatprep.subr.bf16.mxu0 0
  %170 = vmatpush1.bf16.msra.mxu0 0
  %171 = vmatprep.mubr.bf16.mxu0 %v133
  %172 = vmatmul.mubr.bf16.gmra.mrb[0].mxu0 %v53
  %v173 = vpop.f32.mrb[0].mxu0
  %v174 = vadd.f32 0.0, %v173
  %v175 = vpop.f32.mrb[0].mxu0
  %v176 = vpop.f32.mrb[0].mxu0
  %v177 = vpop.f32.mrb[0].mxu0
  %178 = vdwg.mxu0
  %179 = vst [vmem:[%s2] sm:$0x3] %v174
  %v180 = vsel %vm135, %v174, 0.0
  %v181 = vrot.slane %v180, 4
  %v182 = vadd.f32 %v180, %v181
  %v183 = vrot.slane %v182, 2
  %v184 = vadd.f32 %v182, %v183
  %v185 = vrot.slane %v184, 1
  %v186 = vadd.f32 %v184, %v185
  %v187 = vmul.f32 %v174, %v174
  %v188 = vsel %vm135, %v187, 0.0
  %v189 = vrot.slane %v188, 4
  %v190 = vadd.f32 %v188, %v189
  %v191 = vrot.slane %v190, 2
  %v192 = vadd.f32 %v190, %v191
  %v193 = vrot.slane %v192, 1
  %v194 = vadd.f32 %v192, %v193
  %vm195 = vcmask 1040384
  %v196 = vsel %vm195, %v186, %v194
  %v197 = vsel %vm135, %v196, 0.0
  %p198 = scmp.eq.s32.totalorder 0, 0
  // Predicated region
  $region10: #{dt_forward.86} parent=0 // pred_check
    %p199 = pneg %p198
  $region11: #{dt_forward.86} parent=0 // pred_check_branch
    %201 = sbr.rel (%p199) target = $region13
  $region12: #{dt_forward.86} parent=0 // pred_region
    %202 = vst [vmem:[%s3] sm:$0xff] %v197
  $region13: #{dt_forward.86} parent=0 // pred_fallthru
    _
  %p203 = scmp.gt.s32.totalorder 0, 0
  // Predicated region
  $region14: #{dt_forward.86} parent=0 // pred_check
    %p204 = pneg %p203
  $region15: #{dt_forward.86} parent=0 // pred_check_branch
    %206 = sbr.rel (%p204) target = $region17
  $region16: #{dt_forward.86} parent=0 // pred_region
    %v207 = vld [vmem:[%s3] sm:$0xff]
    %v208 = vadd.f32 %v207, %v197
    %209 = vst [vmem:[%s3] sm:$0xff] %v208
  $region17: #{dt_forward.86} parent=0 // pred_fallthru
    _
  // Predicated region
  $region18: #{dt_forward.86} parent=0 // pred_check
    _
  $region19: #{dt_forward.86} parent=0 // pred_check_branch
    %211 = sbr.rel (0) target = $region21
  $region20: #{dt_forward.86} parent=0 // pred_region
    _
  $region21: #{dt_forward.86} parent=0 // pred_fallthru
    _
  // Predicated region
  $region22: #{dt_forward.86} parent=0 // pred_check
    _
  $region23: #{dt_forward.86} parent=0 // pred_check_branch
    %213 = sbr.rel (0) target = $region25
  $region24: #{dt_forward.86} parent=0 // pred_region
    _
  $region25: #{dt_forward.86} parent=0 // pred_fallthru
    _
  // Predicated region
  $region26: #{dt_forward.86} parent=0 // pred_check
    _
  $region27: #{dt_forward.86} parent=0 // pred_check_branch
    %215 = sbr.rel (0) target = $region29
  $region28: #{dt_forward.86} parent=0 // pred_region
    _
  $region29: #{dt_forward.86} parent=0 // pred_fallthru
    _
  // Predicated region
  $region30: #{dt_forward.86} parent=0 // pred_check
    _
  $region31: #{dt_forward.86} parent=0 // pred_check_branch
    %217 = sbr.rel (0) target = $region33
  $region32: #{dt_forward.86} parent=0 // pred_region
    _
  $region33: #{dt_forward.86} parent=0 // pred_fallthru
    _

</llo_original>
